<compile_context>
chip_gen: v5e
topology: v5e:2x2
jax: 0.10.0
libtpu: 0.0.40
codegen_flags: <defaults>
</compile_context>

<pallas_src>
import math
import functools

import numpy as np
import jax
import jax.numpy as jnp
from jax import lax
from jax.experimental import pallas as pl
from jax.experimental.pallas import tpu as pltpu

LN_EPS = 1e-5  # matches torch.nn.LayerNorm default

# Order of the stacked per-layer parameter operands; MUST match the kernel signature.
PARAM_ORDER = (
    'wq', 'bq', 'wk', 'bk', 'wv', 'bv', 'wo', 'bo', 'g1', 'b1',
    'wq2', 'bq2', 'wk2', 'bk2', 'wv2', 'bv2', 'wo2', 'bo2', 'g2', 'b2',
    'w1', 'bf1', 'w2', 'bf2', 'g3', 'b3',
)
_MATMUL_WEIGHTS = {'wq', 'wk', 'wv', 'wo', 'wq2', 'wk2', 'wv2', 'wo2', 'w1', 'w2'}


# ---------------------------------------------------------------------------
# Kernel: one (batch item, decoder layer) step. Activation carried in VMEM scratch.
# ---------------------------------------------------------------------------
def decoder_kernel(
        x_ref, enc_ref, cos_ref, sin_ref,
        wq_ref, bq_ref, wk_ref, bk_ref, wv_ref, bv_ref, wo_ref, bo_ref,
        g1_ref, b1_ref,
        wq2_ref, bq2_ref, wk2_ref, bk2_ref, wv2_ref, bv2_ref, wo2_ref, bo2_ref,
        g2_ref, b2_ref,
        w1_ref, bf1_ref, w2_ref, bf2_ref,
        g3_ref, b3_ref,
        fg_ref, fb_ref,
        o_ref,
        x_scr,
        *, num_heads, compute_dtype):
    layer = pl.program_id(1)
    S, D = x_scr.shape
    HD = D // num_heads
    half = HD // 2

    # New batch item starts: load its activations into the carried scratch.
    @pl.when(layer == 0)
    def _init():
        x_scr[...] = x_ref[0].astype(jnp.float32)

    x = x_scr[...]            # (S, D)  f32 carried activation
    enc = enc_ref[0]          # (Se, D) encoder output for this batch item
    cos = cos_ref[...]        # (S, half)
    sin = sin_ref[...]        # (S, half)

    def mm(a, w_ref):
        # bf16 (or f32) operands, f32 accumulation on the MXU.
        return jnp.dot(a.astype(compute_dtype), w_ref[0],
                       preferred_element_type=jnp.float32)

    def layer_norm(t, g, b):
        mu = jnp.mean(t, axis=-1, keepdims=True)
        c = t - mu
        var = jnp.mean(c * c, axis=-1, keepdims=True)
        return c * lax.rsqrt(var + LN_EPS) * g + b

    def rope(t):
        # t: (rows, HD) already permuted on the host to [even dims | odd dims].
        x1 = t[:, :half]
        x2 = t[:, half:]
        return jnp.concatenate([x1 * cos - x2 * sin, x1 * sin + x2 * cos], axis=-1)

    def attention(q, k, v, wo_r, bo_r, use_rope):
        # Per-head slices: no head-column masking, no H x redundant MXU FLOPs.
        # NOTE: at realistic head counts replace this unroll with lax.fori_loop
        # or a batched-head einsum to bound code size / vreg live ranges.
        ctx_heads = []
        for h in range(num_heads):
            sl = slice(h * HD, (h + 1) * HD)
            qh, kh, vh = q[:, sl], k[:, sl], v[:, sl]
            if use_rope:
                qh = rope(qh)
                kh = rope(kh)
            qh = qh.astype(compute_dtype)
            kh = kh.astype(compute_dtype)
            # q already carries the 1/sqrt(HD) score scale (folded into Wq).
            s = jnp.einsum('qd,kd->qk', qh, kh,
                           preferred_element_type=jnp.float32)
            s = s - jnp.max(s, axis=-1, keepdims=True)
            e = jnp.exp(s)
            # Deferred softmax normalization: normalize the (S, HD) context
            # instead of the (S, Sk) probability matrix.
            inv = 1.0 / jnp.sum(e, axis=-1, keepdims=True)
            ctx_h = jnp.dot(e.astype(compute_dtype), vh.astype(compute_dtype),
                            preferred_element_type=jnp.float32) * inv
            ctx_heads.append(ctx_h)
        ctx = jnp.concatenate(ctx_heads, axis=-1)           # (S, D), head-major
        return mm(ctx, wo_r) + bo_r[0]

    # ----- self-attention (RoPE) + residual + LayerNorm -----
    q = mm(x, wq_ref) + bq_ref[0]      # Wq: perm + 1/sqrt(HD) folded on host
    k = mm(x, wk_ref) + bk_ref[0]      # Wk: perm folded on host
    v = mm(x, wv_ref) + bv_ref[0]
    x = layer_norm(x + attention(q, k, v, wo_ref, bo_ref, True),
                   g1_ref[0], b1_ref[0])

    # ----- encoder-decoder cross-attention (no RoPE; scale folded into Wq2) -----
    q2 = mm(x, wq2_ref) + bq2_ref[0]
    k2 = mm(enc, wk2_ref) + bk2_ref[0]
    v2 = mm(enc, wv2_ref) + bv2_ref[0]
    x = layer_norm(x + attention(q2, k2, v2, wo2_ref, bo2_ref, False),
                   g2_ref[0], b2_ref[0])

    # ----- feed-forward: linear -> ReLU -> linear, residual + LayerNorm -----
    h1 = jnp.maximum(mm(x, w1_ref) + bf1_ref[0], 0.0)
    x = layer_norm(x + mm(h1, w2_ref) + bf2_ref[0], g3_ref[0], b3_ref[0])

    # Carry to the next layer step of this batch item.
    x_scr[...] = x

    # Final decoder LayerNorm + write-back on the last layer step only.
    @pl.when(layer == pl.num_programs(1) - 1)
    def _finalize():
        y = layer_norm(x, fg_ref[...], fb_ref[...])
        o_ref[...] = y.reshape(1, S, D).astype(o_ref.dtype)


# ---------------------------------------------------------------------------
# Host-side tables & parameter packing
# ---------------------------------------------------------------------------
def make_rope_tables(S, HD):
    half = HD // 2
    inv_freq = 1.0 / (10000.0 ** (np.arange(0, HD, 2, dtype=np.float32) / HD))
    ang = np.einsum('i,j->ij', np.arange(S, dtype=np.float32), inv_freq)  # (S, half)
    return jnp.asarray(np.cos(ang)), jnp.asarray(np.sin(ang))


def init_decoder_params(key, L, D, F):
    """Synthetic per-layer params; weights stored (in, out) so y = x @ W + b."""
    def lin(k, n_in, n_out):
        kw, kb = jax.random.split(k)
        return (jax.random.normal(kw, (n_in, n_out), jnp.float32) * 0.08,
                jax.random.normal(kb, (1, n_out), jnp.float32) * 0.05)

    def ln_params(k):
        kg, kb = jax.random.split(k)
        return (1.0 + 0.1 * jax.random.normal(kg, (1, D), jnp.float32),
                0.1 * jax.random.normal(kb, (1, D), jnp.float32))

    layers = []
    for lk in jax.random.split(key, L):
        ks = jax.random.split(lk, 13)
        layers.append(dict(
            q=lin(ks[0], D, D), k=lin(ks[1], D, D), v=lin(ks[2], D, D), o=lin(ks[3], D, D),
            ln1=ln_params(ks[4]),
            q2=lin(ks[5], D, D), k2=lin(ks[6], D, D), v2=lin(ks[7], D, D), o2=lin(ks[8], D, D),
            ln2=ln_params(ks[9]),
            ff1=lin(ks[10], D, F), ff2=lin(ks[11], F, D),
            ln3=ln_params(ks[12]),
        ))
    return layers


def pack_layer_params(layers, D, H, compute_dtype):
    """Stack per-layer params over a leading L axis.

    Folds into the Q/K projections (exact, linear, free at run time):
      * the even/odd -> [first-half | second-half] per-head column permutation
        used by RoPE (so no strided slicing in-kernel), and
      * the 1/sqrt(head_dim) score scale (into Q only).
    Matmul weights are cast to `compute_dtype` (bf16 for the MXU fast path).
    """
    HD = D // H
    half = HD // 2
    scale = 1.0 / math.sqrt(HD)
    perm = np.concatenate(
        [np.concatenate([h * HD + 2 * np.arange(half),
                         h * HD + 2 * np.arange(half) + 1]) for h in range(H)]
    ).astype(np.int32)

    cols = {n: [] for n in PARAM_ORDER}
    for p in layers:
        wq, bq = p['q']; wk, bk = p['k']; wv, bv = p['v']; wo, bo = p['o']
        cols['wq'].append(wq[:, perm] * scale); cols['bq'].append(bq[:, perm] * scale)
        cols['wk'].append(wk[:, perm]);         cols['bk'].append(bk[:, perm])
        cols['wv'].append(wv);                  cols['bv'].append(bv)
        cols['wo'].append(wo);                  cols['bo'].append(bo)
        cols['g1'].append(p['ln1'][0]);         cols['b1'].append(p['ln1'][1])
        wq2, bq2 = p['q2']; wk2, bk2 = p['k2']; wv2, bv2 = p['v2']; wo2, bo2 = p['o2']
        cols['wq2'].append(wq2 * scale);        cols['bq2'].append(bq2 * scale)
        cols['wk2'].append(wk2);                cols['bk2'].append(bk2)
        cols['wv2'].append(wv2);                cols['bv2'].append(bv2)
        cols['wo2'].append(wo2);                cols['bo2'].append(bo2)
        cols['g2'].append(p['ln2'][0]);         cols['b2'].append(p['ln2'][1])
        w1, b1 = p['ff1']; w2, b2 = p['ff2']
        cols['w1'].append(w1);                  cols['bf1'].append(b1)
        cols['w2'].append(w2);                  cols['bf2'].append(b2)
        cols['g3'].append(p['ln3'][0]);         cols['b3'].append(p['ln3'][1])

    packed = []
    for n in PARAM_ORDER:
        arr = jnp.stack(cols[n])
        if n in _MATMUL_WEIGHTS:
            arr = arr.astype(compute_dtype)     # biases / LN params stay f32
        packed.append(arr)
    return packed


# ---------------------------------------------------------------------------
# Wrapper: (batch, layer) grid; per-layer weight blocks; carried VMEM activation
# ---------------------------------------------------------------------------
def decoder_forward(x, enc, cos, sin, packed, final_g, final_b,
                    *, num_heads, compute_dtype=jnp.bfloat16):
    B, S, D = x.shape
    Se = enc.shape[1]
    L = packed[0].shape[0]

    def per_batch(arr):
        return pl.BlockSpec((1,) + arr.shape[1:], lambda b, l: (b, 0, 0))

    def per_layer(arr):   # streamed + double-buffered across the layer axis
        return pl.BlockSpec((1,) + arr.shape[1:], lambda b, l: (l, 0, 0))

    def shared(arr):      # same block every grid step (fetched once)
        n = arr.ndim
        return pl.BlockSpec(arr.shape, lambda b, l, _n=n: (0,) * _n)

    in_specs = ([per_batch(x), per_batch(enc), shared(cos), shared(sin)]
                + [per_layer(p) for p in packed]
                + [shared(final_g), shared(final_b)])
    out_spec = pl.BlockSpec((1, S, D), lambda b, l: (b, 0, 0))

    grid_spec = pltpu.PrefetchScalarGridSpec(
        num_scalar_prefetch=0,
        grid=(B, L),                       # batch outer, carried layer axis inner
        in_specs=in_specs,
        out_specs=out_spec,
        scratch_shapes=[pltpu.VMEM((S, D), jnp.float32)])   # carried activation

    kern = functools.partial(decoder_kernel,
                             num_heads=num_heads, compute_dtype=compute_dtype)
    # NOTE: at production sizes, size vmem_limit_bytes to the actual resident
    # footprint (2 x one layer's weights + activations) and consider
    # pipeline_mode=pl.Buffered(3) on the weight BlockSpecs for v5e.
    out = pl.pallas_call(
        kern,
        out_shape=jax.ShapeDtypeStruct((B, S, D), jnp.float32),
        grid_spec=grid_spec,
        compiler_params=pltpu.CompilerParams(
            dimension_semantics=("parallel", "arbitrary"),
            vmem_limit_bytes=32 * 1024 * 1024),
    )(x, enc, cos, sin, *packed, final_g, final_b)
    return out


# ---------------------------------------------------------------------------
# Pure-JAX reference (mirrors the PyTorch Decoder forward, f32, eval mode)
# ---------------------------------------------------------------------------
def ref_decoder(x, enc, layers, final_g, final_b, cos, sin, num_heads):
    B, S, D = x.shape
    H = num_heads
    HD = D // H

    def ln(t, g, b):
        m = t.mean(-1, keepdims=True)
        v = ((t - m) ** 2).mean(-1, keepdims=True)
        return (t - m) / jnp.sqrt(v + LN_EPS) * g + b

    def rope(t):  # t: (B, S_, H, HD)
        s_len = t.shape[1]
        t1, t2 = t[..., 0::2], t[..., 1::2]
        c = cos[:s_len][None, :, None, :]
        s = sin[:s_len][None, :, None, :]
        return jnp.concatenate([t1 * c - t2 * s, t1 * s + t2 * c], axis=-1)

    def mha(q_in, k_in, v_in, wq_b, wk_b, wv_b, wo_b, use_rotary):
        (wq, bq), (wk, bk), (wv, bv), (wo, bo) = wq_b, wk_b, wv_b, wo_b
        Bq, Sq, _ = q_in.shape
        Sk = k_in.shape[1]
        q = (q_in @ wq + bq).reshape(Bq, Sq, H, HD)
        k = (k_in @ wk + bk).reshape(Bq, Sk, H, HD)
        v = (v_in @ wv + bv).reshape(Bq, Sk, H, HD)
        if use_rotary:
            q = rope(q)
            k = rope(k)
        q, k, v = (t.transpose(0, 2, 1, 3) for t in (q, k, v))
        sc = jnp.einsum('bhqd,bhkd->bhqk', q, k) / math.sqrt(HD)
        at = jax.nn.softmax(sc, axis=-1)
        ctx = jnp.einsum('bhqk,bhkd->bhqd', at, v)
        ctx = ctx.transpose(0, 2, 1, 3).reshape(Bq, Sq, D)
        return ctx @ wo + bo

    for p in layers:
        x = ln(x + mha(x, x, x, p['q'], p['k'], p['v'], p['o'], True), *p['ln1'])
        x = ln(x + mha(x, enc, enc, p['q2'], p['k2'], p['v2'], p['o2'], False), *p['ln2'])
        (w1, b1), (w2, b2) = p['ff1'], p['ff2']
        x = ln(x + (jnp.maximum(x @ w1 + b1, 0.0) @ w2 + b2), *p['ln3'])
    return ln(x, final_g, final_b)


# ---------------------------------------------------------------------------
if __name__ == "__main__":
    # batch, dec_seq, enc_seq, model_dim, heads, ff_dim, layers
    B, S, SE, D, H, F, L = 2, 8, 10, 32, 4, 64, 2
    # NOTE: real deployments should keep D / head_dim lane-aligned (multiples of
    # 128) — these toy shapes are layout/latency-bound by construction.

    key = jax.random.PRNGKey(0)
    kx, ke, kp, kf = jax.random.split(key, 4)
    x = jax.random.normal(kx, (B, S, D), jnp.float32)
    enc = jax.random.normal(ke, (B, SE, D), jnp.float32)

    layers = init_decoder_params(kp, L, D, F)
    kg, kb = jax.random.split(kf)
    final_g = 1.0 + 0.1 * jax.random.normal(kg, (1, D), jnp.float32)
    final_b = 0.1 * jax.random.normal(kb, (1, D), jnp.float32)

    cos, sin = make_rope_tables(S, D // H)
    y_ref = ref_decoder(x, enc, layers, final_g, final_b, cos, sin, H)

    # 1) f32-operand mode: tight check that the restructured kernel is exact.
    packed_f32 = pack_layer_params(layers, D, H, jnp.float32)
    y32 = jax.block_until_ready(
        decoder_forward(x, enc, cos, sin, packed_f32, final_g, final_b,
                        num_heads=H, compute_dtype=jnp.float32))
    err32 = float(jnp.max(jnp.abs(y32 - y_ref)))
    assert err32 < 1e-3, f"f32 kernel mismatch: max abs err={err32}"

    # 2) bf16-operand fast path (MXU-native, f32 accumulation): looser tolerance
    #    vs the f32 reference, as flagged in the perf review.
    packed_bf16 = pack_layer_params(layers, D, H, jnp.bfloat16)
    y16 = jax.block_until_ready(
        decoder_forward(x, enc, cos, sin, packed_bf16, final_g, final_b,
                        num_heads=H, compute_dtype=jnp.bfloat16))
    err16 = float(jnp.max(jnp.abs(y16 - y_ref)))
    assert err16 < 1e-1, f"bf16 kernel mismatch: max abs err={err16}"

    print("KERNEL_OK")
</pallas_src>

<mosaic_0001>
module attributes {stable_mosaic.version = 11 : i64} {
  func.func @decoder_kernel(%arg0: i32, %arg1: i32, %arg2: memref<1x8x32xf32, #tpu.memory_space<vmem>>, %arg3: memref<1x10x32xf32, #tpu.memory_space<vmem>>, %arg4: memref<8x4xf32, #tpu.memory_space<vmem>>, %arg5: memref<8x4xf32, #tpu.memory_space<vmem>>, %arg6: memref<1x32x32xf32, #tpu.memory_space<vmem>>, %arg7: memref<1x1x32xf32, #tpu.memory_space<vmem>>, %arg8: memref<1x32x32xf32, #tpu.memory_space<vmem>>, %arg9: memref<1x1x32xf32, #tpu.memory_space<vmem>>, %arg10: memref<1x32x32xf32, #tpu.memory_space<vmem>>, %arg11: memref<1x1x32xf32, #tpu.memory_space<vmem>>, %arg12: memref<1x32x32xf32, #tpu.memory_space<vmem>>, %arg13: memref<1x1x32xf32, #tpu.memory_space<vmem>>, %arg14: memref<1x1x32xf32, #tpu.memory_space<vmem>>, %arg15: memref<1x1x32xf32, #tpu.memory_space<vmem>>, %arg16: memref<1x32x32xf32, #tpu.memory_space<vmem>>, %arg17: memref<1x1x32xf32, #tpu.memory_space<vmem>>, %arg18: memref<1x32x32xf32, #tpu.memory_space<vmem>>, %arg19: memref<1x1x32xf32, #tpu.memory_space<vmem>>, %arg20: memref<1x32x32xf32, #tpu.memory_space<vmem>>, %arg21: memref<1x1x32xf32, #tpu.memory_space<vmem>>, %arg22: memref<1x32x32xf32, #tpu.memory_space<vmem>>, %arg23: memref<1x1x32xf32, #tpu.memory_space<vmem>>, %arg24: memref<1x1x32xf32, #tpu.memory_space<vmem>>, %arg25: memref<1x1x32xf32, #tpu.memory_space<vmem>>, %arg26: memref<1x32x64xf32, #tpu.memory_space<vmem>>, %arg27: memref<1x1x64xf32, #tpu.memory_space<vmem>>, %arg28: memref<1x64x32xf32, #tpu.memory_space<vmem>>, %arg29: memref<1x1x32xf32, #tpu.memory_space<vmem>>, %arg30: memref<1x1x32xf32, #tpu.memory_space<vmem>>, %arg31: memref<1x1x32xf32, #tpu.memory_space<vmem>>, %arg32: memref<1x32xf32, #tpu.memory_space<vmem>>, %arg33: memref<1x32xf32, #tpu.memory_space<vmem>>, %arg34: memref<1x8x32xf32, #tpu.memory_space<vmem>>, %arg35: memref<8x32xf32, #tpu.memory_space<vmem>>) attributes {dimension_semantics = [#tpu.dimension_semantics<parallel>, #tpu.dimension_semantics<arbitrary>], iteration_bounds = array<i64: 2, 2>, scalar_prefetch = 0 : i64, scratch_operands = 1 : i64, tpu.core_type = #tpu.core_type<tc>, window_params = [{transform_indices = @transform_0, window_bounds = array<i64: 1, 8, 32>}, {transform_indices = @transform_1, window_bounds = array<i64: 1, 10, 32>}, {pipeline_mode = #tpu.pipeline_mode<synchronous>, transform_indices = @transform_2, window_bounds = array<i64: 8, 4>}, {pipeline_mode = #tpu.pipeline_mode<synchronous>, transform_indices = @transform_3, window_bounds = array<i64: 8, 4>}, {transform_indices = @transform_4, window_bounds = array<i64: 1, 32, 32>}, {transform_indices = @transform_5, window_bounds = array<i64: 1, 1, 32>}, {transform_indices = @transform_6, window_bounds = array<i64: 1, 32, 32>}, {transform_indices = @transform_7, window_bounds = array<i64: 1, 1, 32>}, {transform_indices = @transform_8, window_bounds = array<i64: 1, 32, 32>}, {transform_indices = @transform_9, window_bounds = array<i64: 1, 1, 32>}, {transform_indices = @transform_10, window_bounds = array<i64: 1, 32, 32>}, {transform_indices = @transform_11, window_bounds = array<i64: 1, 1, 32>}, {transform_indices = @transform_12, window_bounds = array<i64: 1, 1, 32>}, {transform_indices = @transform_13, window_bounds = array<i64: 1, 1, 32>}, {transform_indices = @transform_14, window_bounds = array<i64: 1, 32, 32>}, {transform_indices = @transform_15, window_bounds = array<i64: 1, 1, 32>}, {transform_indices = @transform_16, window_bounds = array<i64: 1, 32, 32>}, {transform_indices = @transform_17, window_bounds = array<i64: 1, 1, 32>}, {transform_indices = @transform_18, window_bounds = array<i64: 1, 32, 32>}, {transform_indices = @transform_19, window_bounds = array<i64: 1, 1, 32>}, {transform_indices = @transform_20, window_bounds = array<i64: 1, 32, 32>}, {transform_indices = @transform_21, window_bounds = array<i64: 1, 1, 32>}, {transform_indices = @transform_22, window_bounds = array<i64: 1, 1, 32>}, {transform_indices = @transform_23, window_bounds = array<i64: 1, 1, 32>}, {transform_indices = @transform_24, window_bounds = array<i64: 1, 32, 64>}, {transform_indices = @transform_25, window_bounds = array<i64: 1, 1, 64>}, {transform_indices = @transform_26, window_bounds = array<i64: 1, 64, 32>}, {transform_indices = @transform_27, window_bounds = array<i64: 1, 1, 32>}, {transform_indices = @transform_28, window_bounds = array<i64: 1, 1, 32>}, {transform_indices = @transform_29, window_bounds = array<i64: 1, 1, 32>}, {pipeline_mode = #tpu.pipeline_mode<synchronous>, transform_indices = @transform_30, window_bounds = array<i64: 1, 32>}, {pipeline_mode = #tpu.pipeline_mode<synchronous>, transform_indices = @transform_31, window_bounds = array<i64: 1, 32>}, {transform_indices = @transform_32, window_bounds = array<i64: 1, 8, 32>}]} {
    %c0_i32 = arith.constant 0 : i32
    %0 = arith.cmpi eq, %arg1, %c0_i32 : i32
    %1 = arith.extui %0 : i1 to i32
    %c0_i32_0 = arith.constant 0 : i32
    %2 = arith.cmpi ne, %1, %c0_i32_0 : i32
    scf.if %2 {
      %c0_155 = arith.constant 0 : index
      %c0_156 = arith.constant 0 : index
      %c0_157 = arith.constant 0 : index
      %361 = vector.load %arg2[%c0_155, %c0_156, %c0_157] : memref<1x8x32xf32, #tpu.memory_space<vmem>>, vector<1x8x32xf32>
      %362 = vector.shape_cast %361 : vector<1x8x32xf32> to vector<8x32xf32>
      %c0_158 = arith.constant 0 : index
      %c0_159 = arith.constant 0 : index
      %363 = vector.load %arg35[%c0_158, %c0_159] : memref<8x32xf32, #tpu.memory_space<vmem>>, vector<8x32xf32>
      tpu.vector_store %arg35[%c0_158, %c0_159], %362 {strides = array<i32>} : memref<8x32xf32, #tpu.memory_space<vmem>>, vector<8x32xf32>,
    } else {
    }
    %c0 = arith.constant 0 : index
    %c0_1 = arith.constant 0 : index
    %3 = vector.load %arg35[%c0, %c0_1] : memref<8x32xf32, #tpu.memory_space<vmem>>, vector<8x32xf32>
    %c0_2 = arith.constant 0 : index
    %c0_3 = arith.constant 0 : index
    %c0_4 = arith.constant 0 : index
    %4 = vector.load %arg3[%c0_2, %c0_3, %c0_4] : memref<1x10x32xf32, #tpu.memory_space<vmem>>, vector<1x10x32xf32>
    %5 = vector.shape_cast %4 : vector<1x10x32xf32> to vector<10x32xf32>
    %c0_5 = arith.constant 0 : index
    %c0_6 = arith.constant 0 : index
    %6 = vector.load %arg4[%c0_5, %c0_6] : memref<8x4xf32, #tpu.memory_space<vmem>>, vector<8x4xf32>
    %c0_7 = arith.constant 0 : index
    %c0_8 = arith.constant 0 : index
    %7 = vector.load %arg5[%c0_7, %c0_8] : memref<8x4xf32, #tpu.memory_space<vmem>>, vector<8x4xf32>
    %c0_9 = arith.constant 0 : index
    %c0_10 = arith.constant 0 : index
    %c0_11 = arith.constant 0 : index
    %8 = vector.load %arg6[%c0_9, %c0_10, %c0_11] : memref<1x32x32xf32, #tpu.memory_space<vmem>>, vector<1x32x32xf32>
    %9 = vector.shape_cast %8 : vector<1x32x32xf32> to vector<32x32xf32>
    %cst = arith.constant dense<0.000000e+00> : vector<8x32xf32>
    %10 = tpu.matmul %3, %9, %cst {dimension_numbers = #tpu.dot_dimension_numbers<[1], [0], [0], [1], [0, 0, 1, 1], [], []>} : vector<8x32xf32>, vector<32x32xf32>, vector<8x32xf32> -> vector<8x32xf32>
    %c0_12 = arith.constant 0 : index
    %c0_13 = arith.constant 0 : index
    %c0_14 = arith.constant 0 : index
    %11 = vector.load %arg7[%c0_12, %c0_13, %c0_14] : memref<1x1x32xf32, #tpu.memory_space<vmem>>, vector<1x1x32xf32>
    %12 = vector.shape_cast %11 : vector<1x1x32xf32> to vector<1x32xf32>
    %13 = vector.broadcast %12 : vector<1x32xf32> to vector<8x32xf32>
    %14 = arith.addf %10, %13 : vector<8x32xf32>
    %c0_15 = arith.constant 0 : index
    %c0_16 = arith.constant 0 : index
    %c0_17 = arith.constant 0 : index
    %15 = vector.load %arg8[%c0_15, %c0_16, %c0_17] : memref<1x32x32xf32, #tpu.memory_space<vmem>>, vector<1x32x32xf32>
    %16 = vector.shape_cast %15 : vector<1x32x32xf32> to vector<32x32xf32>
    %cst_18 = arith.constant dense<0.000000e+00> : vector<8x32xf32>
    %17 = tpu.matmul %3, %16, %cst_18 {dimension_numbers = #tpu.dot_dimension_numbers<[1], [0], [0], [1], [0, 0, 1, 1], [], []>} : vector<8x32xf32>, vector<32x32xf32>, vector<8x32xf32> -> vector<8x32xf32>
    %c0_19 = arith.constant 0 : index
    %c0_20 = arith.constant 0 : index
    %c0_21 = arith.constant 0 : index
    %18 = vector.load %arg9[%c0_19, %c0_20, %c0_21] : memref<1x1x32xf32, #tpu.memory_space<vmem>>, vector<1x1x32xf32>
    %19 = vector.shape_cast %18 : vector<1x1x32xf32> to vector<1x32xf32>
    %20 = vector.broadcast %19 : vector<1x32xf32> to vector<8x32xf32>
    %21 = arith.addf %17, %20 : vector<8x32xf32>
    %c0_22 = arith.constant 0 : index
    %c0_23 = arith.constant 0 : index
    %c0_24 = arith.constant 0 : index
    %22 = vector.load %arg10[%c0_22, %c0_23, %c0_24] : memref<1x32x32xf32, #tpu.memory_space<vmem>>, vector<1x32x32xf32>
    %23 = vector.shape_cast %22 : vector<1x32x32xf32> to vector<32x32xf32>
    %cst_25 = arith.constant dense<0.000000e+00> : vector<8x32xf32>
    %24 = tpu.matmul %3, %23, %cst_25 {dimension_numbers = #tpu.dot_dimension_numbers<[1], [0], [0], [1], [0, 0, 1, 1], [], []>} : vector<8x32xf32>, vector<32x32xf32>, vector<8x32xf32> -> vector<8x32xf32>
    %c0_26 = arith.constant 0 : index
    %c0_27 = arith.constant 0 : index
    %c0_28 = arith.constant 0 : index
    %25 = vector.load %arg11[%c0_26, %c0_27, %c0_28] : memref<1x1x32xf32, #tpu.memory_space<vmem>>, vector<1x1x32xf32>
    %26 = vector.shape_cast %25 : vector<1x1x32xf32> to vector<1x32xf32>
    %27 = vector.broadcast %26 : vector<1x32xf32> to vector<8x32xf32>
    %28 = arith.addf %24, %27 : vector<8x32xf32>
    %29 = vector.extract_strided_slice %14 {offsets = [0, 0], sizes = [8, 8], strides = [1, 1]} : vector<8x32xf32> to vector<8x8xf32>
    %30 = vector.extract_strided_slice %21 {offsets = [0, 0], sizes = [8, 8], strides = [1, 1]} : vector<8x32xf32> to vector<8x8xf32>
    %31 = vector.extract_strided_slice %28 {offsets = [0, 0], sizes = [8, 8], strides = [1, 1]} : vector<8x32xf32> to vector<8x8xf32>
    %32 = vector.extract_strided_slice %29 {offsets = [0, 0], sizes = [8, 4], strides = [1, 1]} : vector<8x8xf32> to vector<8x4xf32>
    %33 = vector.extract_strided_slice %29 {offsets = [0, 4], sizes = [8, 4], strides = [1, 1]} : vector<8x8xf32> to vector<8x4xf32>
    %34 = arith.mulf %32, %6 : vector<8x4xf32>
    %35 = arith.mulf %33, %7 : vector<8x4xf32>
    %36 = arith.subf %34, %35 : vector<8x4xf32>
    %37 = arith.mulf %32, %7 : vector<8x4xf32>
    %38 = arith.mulf %33, %6 : vector<8x4xf32>
    %39 = arith.addf %37, %38 : vector<8x4xf32>
    %40 = tpu.concatenate %36, %39 in 1 : vector<8x4xf32>, vector<8x4xf32> -> vector<8x8xf32>
    %41 = vector.extract_strided_slice %30 {offsets = [0, 0], sizes = [8, 4], strides = [1, 1]} : vector<8x8xf32> to vector<8x4xf32>
    %42 = vector.extract_strided_slice %30 {offsets = [0, 4], sizes = [8, 4], strides = [1, 1]} : vector<8x8xf32> to vector<8x4xf32>
    %43 = arith.mulf %41, %6 : vector<8x4xf32>
    %44 = arith.mulf %42, %7 : vector<8x4xf32>
    %45 = arith.subf %43, %44 : vector<8x4xf32>
    %46 = arith.mulf %41, %7 : vector<8x4xf32>
    %47 = arith.mulf %42, %6 : vector<8x4xf32>
    %48 = arith.addf %46, %47 : vector<8x4xf32>
    %49 = tpu.concatenate %45, %48 in 1 : vector<8x4xf32>, vector<8x4xf32> -> vector<8x8xf32>
    "tpu.trace_start"() <{level = 10 : i32, message = "qd,kd->qk"}> : () -> ()
    %cst_29 = arith.constant dense<0.000000e+00> : vector<8x8xf32>
    %50 = tpu.matmul %40, %49, %cst_29 {dimension_numbers = #tpu.dot_dimension_numbers<[1], [1], [0], [0], [0, 0, 1, 0], [], []>} : vector<8x8xf32>, vector<8x8xf32>, vector<8x8xf32> -> vector<8x8xf32>
    "tpu.trace_stop"() : () -> ()
    %cst_30 = arith.constant dense<0xFF800000> : vector<8xf32>
    %51 = vector.multi_reduction <maximumf>, %50, %cst_30 [1] : vector<8x8xf32> to vector<8xf32>
    %52 = vector.shape_cast %51 : vector<8xf32> to vector<8x1xf32>
    %53 = vector.broadcast %52 : vector<8x1xf32> to vector<8x8xf32>
    %54 = arith.subf %50, %53 : vector<8x8xf32>
    %55 = math.exp %54 : vector<8x8xf32>
    %cst_31 = arith.constant dense<0.000000e+00> : vector<8xf32>
    %56 = vector.multi_reduction <add>, %55, %cst_31 [1] : vector<8x8xf32> to vector<8xf32>
    %57 = vector.shape_cast %56 : vector<8xf32> to vector<8x1xf32>
    %cst_32 = arith.constant 1.000000e+00 : f32
    %58 = vector.broadcast %cst_32 : f32 to vector<8x1xf32>
    %59 = arith.divf %58, %57 : vector<8x1xf32>
    %cst_33 = arith.constant dense<0.000000e+00> : vector<8x8xf32>
    %60 = tpu.matmul %55, %31, %cst_33 {dimension_numbers = #tpu.dot_dimension_numbers<[1], [0], [0], [1], [0, 0, 1, 1], [], []>} : vector<8x8xf32>, vector<8x8xf32>, vector<8x8xf32> -> vector<8x8xf32>
    %61 = vector.broadcast %59 : vector<8x1xf32> to vector<8x8xf32>
    %62 = arith.mulf %60, %61 : vector<8x8xf32>
    %63 = vector.extract_strided_slice %14 {offsets = [0, 8], sizes = [8, 8], strides = [1, 1]} : vector<8x32xf32> to vector<8x8xf32>
    %64 = vector.extract_strided_slice %21 {offsets = [0, 8], sizes = [8, 8], strides = [1, 1]} : vector<8x32xf32> to vector<8x8xf32>
    %65 = vector.extract_strided_slice %28 {offsets = [0, 8], sizes = [8, 8], strides = [1, 1]} : vector<8x32xf32> to vector<8x8xf32>
    %66 = vector.extract_strided_slice %63 {offsets = [0, 0], sizes = [8, 4], strides = [1, 1]} : vector<8x8xf32> to vector<8x4xf32>
    %67 = vector.extract_strided_slice %63 {offsets = [0, 4], sizes = [8, 4], strides = [1, 1]} : vector<8x8xf32> to vector<8x4xf32>
    %68 = arith.mulf %66, %6 : vector<8x4xf32>
    %69 = arith.mulf %67, %7 : vector<8x4xf32>
    %70 = arith.subf %68, %69 : vector<8x4xf32>
    %71 = arith.mulf %66, %7 : vector<8x4xf32>
    %72 = arith.mulf %67, %6 : vector<8x4xf32>
    %73 = arith.addf %71, %72 : vector<8x4xf32>
    %74 = tpu.concatenate %70, %73 in 1 : vector<8x4xf32>, vector<8x4xf32> -> vector<8x8xf32>
    %75 = vector.extract_strided_slice %64 {offsets = [0, 0], sizes = [8, 4], strides = [1, 1]} : vector<8x8xf32> to vector<8x4xf32>
    %76 = vector.extract_strided_slice %64 {offsets = [0, 4], sizes = [8, 4], strides = [1, 1]} : vector<8x8xf32> to vector<8x4xf32>
    %77 = arith.mulf %75, %6 : vector<8x4xf32>
    %78 = arith.mulf %76, %7 : vector<8x4xf32>
    %79 = arith.subf %77, %78 : vector<8x4xf32>
    %80 = arith.mulf %75, %7 : vector<8x4xf32>
    %81 = arith.mulf %76, %6 : vector<8x4xf32>
    %82 = arith.addf %80, %81 : vector<8x4xf32>
    %83 = tpu.concatenate %79, %82 in 1 : vector<8x4xf32>, vector<8x4xf32> -> vector<8x8xf32>
    "tpu.trace_start"() <{level = 10 : i32, message = "qd,kd->qk"}> : () -> ()
    %cst_34 = arith.constant dense<0.000000e+00> : vector<8x8xf32>
    %84 = tpu.matmul %74, %83, %cst_34 {dimension_numbers = #tpu.dot_dimension_numbers<[1], [1], [0], [0], [0, 0, 1, 0], [], []>} : vector<8x8xf32>, vector<8x8xf32>, vector<8x8xf32> -> vector<8x8xf32>
    "tpu.trace_stop"() : () -> ()
    %cst_35 = arith.constant dense<0xFF800000> : vector<8xf32>
    %85 = vector.multi_reduction <maximumf>, %84, %cst_35 [1] : vector<8x8xf32> to vector<8xf32>
    %86 = vector.shape_cast %85 : vector<8xf32> to vector<8x1xf32>
    %87 = vector.broadcast %86 : vector<8x1xf32> to vector<8x8xf32>
    %88 = arith.subf %84, %87 : vector<8x8xf32>
    %89 = math.exp %88 : vector<8x8xf32>
    %cst_36 = arith.constant dense<0.000000e+00> : vector<8xf32>
    %90 = vector.multi_reduction <add>, %89, %cst_36 [1] : vector<8x8xf32> to vector<8xf32>
    %91 = vector.shape_cast %90 : vector<8xf32> to vector<8x1xf32>
    %cst_37 = arith.constant 1.000000e+00 : f32
    %92 = vector.broadcast %cst_37 : f32 to vector<8x1xf32>
    %93 = arith.divf %92, %91 : vector<8x1xf32>
    %cst_38 = arith.constant dense<0.000000e+00> : vector<8x8xf32>
    %94 = tpu.matmul %89, %65, %cst_38 {dimension_numbers = #tpu.dot_dimension_numbers<[1], [0], [0], [1], [0, 0, 1, 1], [], []>} : vector<8x8xf32>, vector<8x8xf32>, vector<8x8xf32> -> vector<8x8xf32>
    %95 = vector.broadcast %93 : vector<8x1xf32> to vector<8x8xf32>
    %96 = arith.mulf %94, %95 : vector<8x8xf32>
    %97 = vector.extract_strided_slice %14 {offsets = [0, 16], sizes = [8, 8], strides = [1, 1]} : vector<8x32xf32> to vector<8x8xf32>
    %98 = vector.extract_strided_slice %21 {offsets = [0, 16], sizes = [8, 8], strides = [1, 1]} : vector<8x32xf32> to vector<8x8xf32>
    %99 = vector.extract_strided_slice %28 {offsets = [0, 16], sizes = [8, 8], strides = [1, 1]} : vector<8x32xf32> to vector<8x8xf32>
    %100 = vector.extract_strided_slice %97 {offsets = [0, 0], sizes = [8, 4], strides = [1, 1]} : vector<8x8xf32> to vector<8x4xf32>
    %101 = vector.extract_strided_slice %97 {offsets = [0, 4], sizes = [8, 4], strides = [1, 1]} : vector<8x8xf32> to vector<8x4xf32>
    %102 = arith.mulf %100, %6 : vector<8x4xf32>
    %103 = arith.mulf %101, %7 : vector<8x4xf32>
    %104 = arith.subf %102, %103 : vector<8x4xf32>
    %105 = arith.mulf %100, %7 : vector<8x4xf32>
    %106 = arith.mulf %101, %6 : vector<8x4xf32>
    %107 = arith.addf %105, %106 : vector<8x4xf32>
    %108 = tpu.concatenate %104, %107 in 1 : vector<8x4xf32>, vector<8x4xf32> -> vector<8x8xf32>
    %109 = vector.extract_strided_slice %98 {offsets = [0, 0], sizes = [8, 4], strides = [1, 1]} : vector<8x8xf32> to vector<8x4xf32>
    %110 = vector.extract_strided_slice %98 {offsets = [0, 4], sizes = [8, 4], strides = [1, 1]} : vector<8x8xf32> to vector<8x4xf32>
    %111 = arith.mulf %109, %6 : vector<8x4xf32>
    %112 = arith.mulf %110, %7 : vector<8x4xf32>
    %113 = arith.subf %111, %112 : vector<8x4xf32>
    %114 = arith.mulf %109, %7 : vector<8x4xf32>
    %115 = arith.mulf %110, %6 : vector<8x4xf32>
    %116 = arith.addf %114, %115 : vector<8x4xf32>
    %117 = tpu.concatenate %113, %116 in 1 : vector<8x4xf32>, vector<8x4xf32> -> vector<8x8xf32>
    "tpu.trace_start"() <{level = 10 : i32, message = "qd,kd->qk"}> : () -> ()
    %cst_39 = arith.constant dense<0.000000e+00> : vector<8x8xf32>
    %118 = tpu.matmul %108, %117, %cst_39 {dimension_numbers = #tpu.dot_dimension_numbers<[1], [1], [0], [0], [0, 0, 1, 0], [], []>} : vector<8x8xf32>, vector<8x8xf32>, vector<8x8xf32> -> vector<8x8xf32>
    "tpu.trace_stop"() : () -> ()
    %cst_40 = arith.constant dense<0xFF800000> : vector<8xf32>
    %119 = vector.multi_reduction <maximumf>, %118, %cst_40 [1] : vector<8x8xf32> to vector<8xf32>
    %120 = vector.shape_cast %119 : vector<8xf32> to vector<8x1xf32>
    %121 = vector.broadcast %120 : vector<8x1xf32> to vector<8x8xf32>
    %122 = arith.subf %118, %121 : vector<8x8xf32>
    %123 = math.exp %122 : vector<8x8xf32>
    %cst_41 = arith.constant dense<0.000000e+00> : vector<8xf32>
    %124 = vector.multi_reduction <add>, %123, %cst_41 [1] : vector<8x8xf32> to vector<8xf32>
    %125 = vector.shape_cast %124 : vector<8xf32> to vector<8x1xf32>
    %cst_42 = arith.constant 1.000000e+00 : f32
    %126 = vector.broadcast %cst_42 : f32 to vector<8x1xf32>
    %127 = arith.divf %126, %125 : vector<8x1xf32>
    %cst_43 = arith.constant dense<0.000000e+00> : vector<8x8xf32>
    %128 = tpu.matmul %123, %99, %cst_43 {dimension_numbers = #tpu.dot_dimension_numbers<[1], [0], [0], [1], [0, 0, 1, 1], [], []>} : vector<8x8xf32>, vector<8x8xf32>, vector<8x8xf32> -> vector<8x8xf32>
    %129 = vector.broadcast %127 : vector<8x1xf32> to vector<8x8xf32>
    %130 = arith.mulf %128, %129 : vector<8x8xf32>
    %131 = vector.extract_strided_slice %14 {offsets = [0, 24], sizes = [8, 8], strides = [1, 1]} : vector<8x32xf32> to vector<8x8xf32>
    %132 = vector.extract_strided_slice %21 {offsets = [0, 24], sizes = [8, 8], strides = [1, 1]} : vector<8x32xf32> to vector<8x8xf32>
    %133 = vector.extract_strided_slice %28 {offsets = [0, 24], sizes = [8, 8], strides = [1, 1]} : vector<8x32xf32> to vector<8x8xf32>
    %134 = vector.extract_strided_slice %131 {offsets = [0, 0], sizes = [8, 4], strides = [1, 1]} : vector<8x8xf32> to vector<8x4xf32>
    %135 = vector.extract_strided_slice %131 {offsets = [0, 4], sizes = [8, 4], strides = [1, 1]} : vector<8x8xf32> to vector<8x4xf32>
    %136 = arith.mulf %134, %6 : vector<8x4xf32>
    %137 = arith.mulf %135, %7 : vector<8x4xf32>
    %138 = arith.subf %136, %137 : vector<8x4xf32>
    %139 = arith.mulf %134, %7 : vector<8x4xf32>
    %140 = arith.mulf %135, %6 : vector<8x4xf32>
    %141 = arith.addf %139, %140 : vector<8x4xf32>
    %142 = tpu.concatenate %138, %141 in 1 : vector<8x4xf32>, vector<8x4xf32> -> vector<8x8xf32>
    %143 = vector.extract_strided_slice %132 {offsets = [0, 0], sizes = [8, 4], strides = [1, 1]} : vector<8x8xf32> to vector<8x4xf32>
    %144 = vector.extract_strided_slice %132 {offsets = [0, 4], sizes = [8, 4], strides = [1, 1]} : vector<8x8xf32> to vector<8x4xf32>
    %145 = arith.mulf %143, %6 : vector<8x4xf32>
    %146 = arith.mulf %144, %7 : vector<8x4xf32>
    %147 = arith.subf %145, %146 : vector<8x4xf32>
    %148 = arith.mulf %143, %7 : vector<8x4xf32>
    %149 = arith.mulf %144, %6 : vector<8x4xf32>
    %150 = arith.addf %148, %149 : vector<8x4xf32>
    %151 = tpu.concatenate %147, %150 in 1 : vector<8x4xf32>, vector<8x4xf32> -> vector<8x8xf32>
    "tpu.trace_start"() <{level = 10 : i32, message = "qd,kd->qk"}> : () -> ()
    %cst_44 = arith.constant dense<0.000000e+00> : vector<8x8xf32>
    %152 = tpu.matmul %142, %151, %cst_44 {dimension_numbers = #tpu.dot_dimension_numbers<[1], [1], [0], [0], [0, 0, 1, 0], [], []>} : vector<8x8xf32>, vector<8x8xf32>, vector<8x8xf32> -> vector<8x8xf32>
    "tpu.trace_stop"() : () -> ()
    %cst_45 = arith.constant dense<0xFF800000> : vector<8xf32>
    %153 = vector.multi_reduction <maximumf>, %152, %cst_45 [1] : vector<8x8xf32> to vector<8xf32>
    %154 = vector.shape_cast %153 : vector<8xf32> to vector<8x1xf32>
    %155 = vector.broadcast %154 : vector<8x1xf32> to vector<8x8xf32>
    %156 = arith.subf %152, %155 : vector<8x8xf32>
    %157 = math.exp %156 : vector<8x8xf32>
    %cst_46 = arith.constant dense<0.000000e+00> : vector<8xf32>
    %158 = vector.multi_reduction <add>, %157, %cst_46 [1] : vector<8x8xf32> to vector<8xf32>
    %159 = vector.shape_cast %158 : vector<8xf32> to vector<8x1xf32>
    %cst_47 = arith.constant 1.000000e+00 : f32
    %160 = vector.broadcast %cst_47 : f32 to vector<8x1xf32>
    %161 = arith.divf %160, %159 : vector<8x1xf32>
    %cst_48 = arith.constant dense<0.000000e+00> : vector<8x8xf32>
    %162 = tpu.matmul %157, %133, %cst_48 {dimension_numbers = #tpu.dot_dimension_numbers<[1], [0], [0], [1], [0, 0, 1, 1], [], []>} : vector<8x8xf32>, vector<8x8xf32>, vector<8x8xf32> -> vector<8x8xf32>
    %163 = vector.broadcast %161 : vector<8x1xf32> to vector<8x8xf32>
    %164 = arith.mulf %162, %163 : vector<8x8xf32>
    %165 = tpu.concatenate %62, %96, %130, %164 in 1 : vector<8x8xf32>, vector<8x8xf32>, vector<8x8xf32>, vector<8x8xf32> -> vector<8x32xf32>
    %c0_49 = arith.constant 0 : index
    %c0_50 = arith.constant 0 : index
    %c0_51 = arith.constant 0 : index
    %166 = vector.load %arg12[%c0_49, %c0_50, %c0_51] : memref<1x32x32xf32, #tpu.memory_space<vmem>>, vector<1x32x32xf32>
    %167 = vector.shape_cast %166 : vector<1x32x32xf32> to vector<32x32xf32>
    %cst_52 = arith.constant dense<0.000000e+00> : vector<8x32xf32>
    %168 = tpu.matmul %165, %167, %cst_52 {dimension_numbers = #tpu.dot_dimension_numbers<[1], [0], [0], [1], [0, 0, 1, 1], [], []>} : vector<8x32xf32>, vector<32x32xf32>, vector<8x32xf32> -> vector<8x32xf32>
    %c0_53 = arith.constant 0 : index
    %c0_54 = arith.constant 0 : index
    %c0_55 = arith.constant 0 : index
    %169 = vector.load %arg13[%c0_53, %c0_54, %c0_55] : memref<1x1x32xf32, #tpu.memory_space<vmem>>, vector<1x1x32xf32>
    %170 = vector.shape_cast %169 : vector<1x1x32xf32> to vector<1x32xf32>
    %171 = vector.broadcast %170 : vector<1x32xf32> to vector<8x32xf32>
    %172 = arith.addf %168, %171 : vector<8x32xf32>
    %173 = arith.addf %3, %172 : vector<8x32xf32>
    %c0_56 = arith.constant 0 : index
    %c0_57 = arith.constant 0 : index
    %c0_58 = arith.constant 0 : index
    %174 = vector.load %arg14[%c0_56, %c0_57, %c0_58] : memref<1x1x32xf32, #tpu.memory_space<vmem>>, vector<1x1x32xf32>
    %175 = vector.shape_cast %174 : vector<1x1x32xf32> to vector<1x32xf32>
    %c0_59 = arith.constant 0 : index
    %c0_60 = arith.constant 0 : index
    %c0_61 = arith.constant 0 : index
    %176 = vector.load %arg15[%c0_59, %c0_60, %c0_61] : memref<1x1x32xf32, #tpu.memory_space<vmem>>, vector<1x1x32xf32>
    %177 = vector.shape_cast %176 : vector<1x1x32xf32> to vector<1x32xf32>
    %cst_62 = arith.constant dense<0.000000e+00> : vector<8xf32>
    %178 = vector.multi_reduction <add>, %173, %cst_62 [1] : vector<8x32xf32> to vector<8xf32>
    %179 = vector.shape_cast %178 : vector<8xf32> to vector<8x1xf32>
    %cst_63 = arith.constant 3.200000e+01 : f32
    %180 = vector.broadcast %cst_63 : f32 to vector<8x1xf32>
    %181 = arith.divf %179, %180 : vector<8x1xf32>
    %182 = vector.broadcast %181 : vector<8x1xf32> to vector<8x32xf32>
    %183 = arith.subf %173, %182 : vector<8x32xf32>
    %184 = arith.mulf %183, %183 : vector<8x32xf32>
    %cst_64 = arith.constant dense<0.000000e+00> : vector<8xf32>
    %185 = vector.multi_reduction <add>, %184, %cst_64 [1] : vector<8x32xf32> to vector<8xf32>
    %186 = vector.shape_cast %185 : vector<8xf32> to vector<8x1xf32>
    %cst_65 = arith.constant 3.200000e+01 : f32
    %187 = vector.broadcast %cst_65 : f32 to vector<8x1xf32>
    %188 = arith.divf %186, %187 : vector<8x1xf32>
    %cst_66 = arith.constant 9.99999974E-6 : f32
    %189 = vector.broadcast %cst_66 : f32 to vector<8x1xf32>
    %190 = arith.addf %188, %189 : vector<8x1xf32>
    %191 = math.rsqrt %190 : vector<8x1xf32>
    %192 = vector.broadcast %191 : vector<8x1xf32> to vector<8x32xf32>
    %193 = arith.mulf %183, %192 : vector<8x32xf32>
    %194 = vector.broadcast %175 : vector<1x32xf32> to vector<8x32xf32>
    %195 = arith.mulf %193, %194 : vector<8x32xf32>
    %196 = vector.broadcast %177 : vector<1x32xf32> to vector<8x32xf32>
    %197 = arith.addf %195, %196 : vector<8x32xf32>
    %c0_67 = arith.constant 0 : index
    %c0_68 = arith.constant 0 : index
    %c0_69 = arith.constant 0 : index
    %198 = vector.load %arg16[%c0_67, %c0_68, %c0_69] : memref<1x32x32xf32, #tpu.memory_space<vmem>>, vector<1x32x32xf32>
    %199 = vector.shape_cast %198 : vector<1x32x32xf32> to vector<32x32xf32>
    %cst_70 = arith.constant dense<0.000000e+00> : vector<8x32xf32>
    %200 = tpu.matmul %197, %199, %cst_70 {dimension_numbers = #tpu.dot_dimension_numbers<[1], [0], [0], [1], [0, 0, 1, 1], [], []>} : vector<8x32xf32>, vector<32x32xf32>, vector<8x32xf32> -> vector<8x32xf32>
    %c0_71 = arith.constant 0 : index
    %c0_72 = arith.constant 0 : index
    %c0_73 = arith.constant 0 : index
    %201 = vector.load %arg17[%c0_71, %c0_72, %c0_73] : memref<1x1x32xf32, #tpu.memory_space<vmem>>, vector<1x1x32xf32>
    %202 = vector.shape_cast %201 : vector<1x1x32xf32> to vector<1x32xf32>
    %203 = vector.broadcast %202 : vector<1x32xf32> to vector<8x32xf32>
    %204 = arith.addf %200, %203 : vector<8x32xf32>
    %c0_74 = arith.constant 0 : index
    %c0_75 = arith.constant 0 : index
    %c0_76 = arith.constant 0 : index
    %205 = vector.load %arg18[%c0_74, %c0_75, %c0_76] : memref<1x32x32xf32, #tpu.memory_space<vmem>>, vector<1x32x32xf32>
    %206 = vector.shape_cast %205 : vector<1x32x32xf32> to vector<32x32xf32>
    %cst_77 = arith.constant dense<0.000000e+00> : vector<10x32xf32>
    %207 = tpu.matmul %5, %206, %cst_77 {dimension_numbers = #tpu.dot_dimension_numbers<[1], [0], [0], [1], [0, 0, 1, 1], [], []>} : vector<10x32xf32>, vector<32x32xf32>, vector<10x32xf32> -> vector<10x32xf32>
    %c0_78 = arith.constant 0 : index
    %c0_79 = arith.constant 0 : index
    %c0_80 = arith.constant 0 : index
    %208 = vector.load %arg19[%c0_78, %c0_79, %c0_80] : memref<1x1x32xf32, #tpu.memory_space<vmem>>, vector<1x1x32xf32>
    %209 = vector.shape_cast %208 : vector<1x1x32xf32> to vector<1x32xf32>
    %210 = vector.broadcast %209 : vector<1x32xf32> to vector<10x32xf32>
    %211 = arith.addf %207, %210 : vector<10x32xf32>
    %c0_81 = arith.constant 0 : index
    %c0_82 = arith.constant 0 : index
    %c0_83 = arith.constant 0 : index
    %212 = vector.load %arg20[%c0_81, %c0_82, %c0_83] : memref<1x32x32xf32, #tpu.memory_space<vmem>>, vector<1x32x32xf32>
    %213 = vector.shape_cast %212 : vector<1x32x32xf32> to vector<32x32xf32>
    %cst_84 = arith.constant dense<0.000000e+00> : vector<10x32xf32>
    %214 = tpu.matmul %5, %213, %cst_84 {dimension_numbers = #tpu.dot_dimension_numbers<[1], [0], [0], [1], [0, 0, 1, 1], [], []>} : vector<10x32xf32>, vector<32x32xf32>, vector<10x32xf32> -> vector<10x32xf32>
    %c0_85 = arith.constant 0 : index
    %c0_86 = arith.constant 0 : index
    %c0_87 = arith.constant 0 : index
    %215 = vector.load %arg21[%c0_85, %c0_86, %c0_87] : memref<1x1x32xf32, #tpu.memory_space<vmem>>, vector<1x1x32xf32>
    %216 = vector.shape_cast %215 : vector<1x1x32xf32> to vector<1x32xf32>
    %217 = vector.broadcast %216 : vector<1x32xf32> to vector<10x32xf32>
    %218 = arith.addf %214, %217 : vector<10x32xf32>
    %219 = vector.extract_strided_slice %204 {offsets = [0, 0], sizes = [8, 8], strides = [1, 1]} : vector<8x32xf32> to vector<8x8xf32>
    %220 = vector.extract_strided_slice %211 {offsets = [0, 0], sizes = [10, 8], strides = [1, 1]} : vector<10x32xf32> to vector<10x8xf32>
    %221 = vector.extract_strided_slice %218 {offsets = [0, 0], sizes = [10, 8], strides = [1, 1]} : vector<10x32xf32> to vector<10x8xf32>
    "tpu.trace_start"() <{level = 10 : i32, message = "qd,kd->qk"}> : () -> ()
    %cst_88 = arith.constant dense<0.000000e+00> : vector<8x10xf32>
    %222 = tpu.matmul %219, %220, %cst_88 {dimension_numbers = #tpu.dot_dimension_numbers<[1], [1], [0], [0], [0, 0, 1, 0], [], []>} : vector<8x8xf32>, vector<10x8xf32>, vector<8x10xf32> -> vector<8x10xf32>
    "tpu.trace_stop"() : () -> ()
    %cst_89 = arith.constant dense<0xFF800000> : vector<8xf32>
    %223 = vector.multi_reduction <maximumf>, %222, %cst_89 [1] : vector<8x10xf32> to vector<8xf32>
    %224 = vector.shape_cast %223 : vector<8xf32> to vector<8x1xf32>
    %225 = vector.broadcast %224 : vector<8x1xf32> to vector<8x10xf32>
    %226 = arith.subf %222, %225 : vector<8x10xf32>
    %227 = math.exp %226 : vector<8x10xf32>
    %cst_90 = arith.constant dense<0.000000e+00> : vector<8xf32>
    %228 = vector.multi_reduction <add>, %227, %cst_90 [1] : vector<8x10xf32> to vector<8xf32>
    %229 = vector.shape_cast %228 : vector<8xf32> to vector<8x1xf32>
    %cst_91 = arith.constant 1.000000e+00 : f32
    %230 = vector.broadcast %cst_91 : f32 to vector<8x1xf32>
    %231 = arith.divf %230, %229 : vector<8x1xf32>
    %cst_92 = arith.constant dense<0.000000e+00> : vector<8x8xf32>
    %232 = tpu.matmul %227, %221, %cst_92 {dimension_numbers = #tpu.dot_dimension_numbers<[1], [0], [0], [1], [0, 0, 1, 1], [], []>} : vector<8x10xf32>, vector<10x8xf32>, vector<8x8xf32> -> vector<8x8xf32>
    %233 = vector.broadcast %231 : vector<8x1xf32> to vector<8x8xf32>
    %234 = arith.mulf %232, %233 : vector<8x8xf32>
    %235 = vector.extract_strided_slice %204 {offsets = [0, 8], sizes = [8, 8], strides = [1, 1]} : vector<8x32xf32> to vector<8x8xf32>
    %236 = vector.extract_strided_slice %211 {offsets = [0, 8], sizes = [10, 8], strides = [1, 1]} : vector<10x32xf32> to vector<10x8xf32>
    %237 = vector.extract_strided_slice %218 {offsets = [0, 8], sizes = [10, 8], strides = [1, 1]} : vector<10x32xf32> to vector<10x8xf32>
    "tpu.trace_start"() <{level = 10 : i32, message = "qd,kd->qk"}> : () -> ()
    %cst_93 = arith.constant dense<0.000000e+00> : vector<8x10xf32>
    %238 = tpu.matmul %235, %236, %cst_93 {dimension_numbers = #tpu.dot_dimension_numbers<[1], [1], [0], [0], [0, 0, 1, 0], [], []>} : vector<8x8xf32>, vector<10x8xf32>, vector<8x10xf32> -> vector<8x10xf32>
    "tpu.trace_stop"() : () -> ()
    %cst_94 = arith.constant dense<0xFF800000> : vector<8xf32>
    %239 = vector.multi_reduction <maximumf>, %238, %cst_94 [1] : vector<8x10xf32> to vector<8xf32>
    %240 = vector.shape_cast %239 : vector<8xf32> to vector<8x1xf32>
    %241 = vector.broadcast %240 : vector<8x1xf32> to vector<8x10xf32>
    %242 = arith.subf %238, %241 : vector<8x10xf32>
    %243 = math.exp %242 : vector<8x10xf32>
    %cst_95 = arith.constant dense<0.000000e+00> : vector<8xf32>
    %244 = vector.multi_reduction <add>, %243, %cst_95 [1] : vector<8x10xf32> to vector<8xf32>
    %245 = vector.shape_cast %244 : vector<8xf32> to vector<8x1xf32>
    %cst_96 = arith.constant 1.000000e+00 : f32
    %246 = vector.broadcast %cst_96 : f32 to vector<8x1xf32>
    %247 = arith.divf %246, %245 : vector<8x1xf32>
    %cst_97 = arith.constant dense<0.000000e+00> : vector<8x8xf32>
    %248 = tpu.matmul %243, %237, %cst_97 {dimension_numbers = #tpu.dot_dimension_numbers<[1], [0], [0], [1], [0, 0, 1, 1], [], []>} : vector<8x10xf32>, vector<10x8xf32>, vector<8x8xf32> -> vector<8x8xf32>
    %249 = vector.broadcast %247 : vector<8x1xf32> to vector<8x8xf32>
    %250 = arith.mulf %248, %249 : vector<8x8xf32>
    %251 = vector.extract_strided_slice %204 {offsets = [0, 16], sizes = [8, 8], strides = [1, 1]} : vector<8x32xf32> to vector<8x8xf32>
    %252 = vector.extract_strided_slice %211 {offsets = [0, 16], sizes = [10, 8], strides = [1, 1]} : vector<10x32xf32> to vector<10x8xf32>
    %253 = vector.extract_strided_slice %218 {offsets = [0, 16], sizes = [10, 8], strides = [1, 1]} : vector<10x32xf32> to vector<10x8xf32>
    "tpu.trace_start"() <{level = 10 : i32, message = "qd,kd->qk"}> : () -> ()
    %cst_98 = arith.constant dense<0.000000e+00> : vector<8x10xf32>
    %254 = tpu.matmul %251, %252, %cst_98 {dimension_numbers = #tpu.dot_dimension_numbers<[1], [1], [0], [0], [0, 0, 1, 0], [], []>} : vector<8x8xf32>, vector<10x8xf32>, vector<8x10xf32> -> vector<8x10xf32>
    "tpu.trace_stop"() : () -> ()
    %cst_99 = arith.constant dense<0xFF800000> : vector<8xf32>
    %255 = vector.multi_reduction <maximumf>, %254, %cst_99 [1] : vector<8x10xf32> to vector<8xf32>
    %256 = vector.shape_cast %255 : vector<8xf32> to vector<8x1xf32>
    %257 = vector.broadcast %256 : vector<8x1xf32> to vector<8x10xf32>
    %258 = arith.subf %254, %257 : vector<8x10xf32>
    %259 = math.exp %258 : vector<8x10xf32>
    %cst_100 = arith.constant dense<0.000000e+00> : vector<8xf32>
    %260 = vector.multi_reduction <add>, %259, %cst_100 [1] : vector<8x10xf32> to vector<8xf32>
    %261 = vector.shape_cast %260 : vector<8xf32> to vector<8x1xf32>
    %cst_101 = arith.constant 1.000000e+00 : f32
    %262 = vector.broadcast %cst_101 : f32 to vector<8x1xf32>
    %263 = arith.divf %262, %261 : vector<8x1xf32>
    %cst_102 = arith.constant dense<0.000000e+00> : vector<8x8xf32>
    %264 = tpu.matmul %259, %253, %cst_102 {dimension_numbers = #tpu.dot_dimension_numbers<[1], [0], [0], [1], [0, 0, 1, 1], [], []>} : vector<8x10xf32>, vector<10x8xf32>, vector<8x8xf32> -> vector<8x8xf32>
    %265 = vector.broadcast %263 : vector<8x1xf32> to vector<8x8xf32>
    %266 = arith.mulf %264, %265 : vector<8x8xf32>
    %267 = vector.extract_strided_slice %204 {offsets = [0, 24], sizes = [8, 8], strides = [1, 1]} : vector<8x32xf32> to vector<8x8xf32>
    %268 = vector.extract_strided_slice %211 {offsets = [0, 24], sizes = [10, 8], strides = [1, 1]} : vector<10x32xf32> to vector<10x8xf32>
    %269 = vector.extract_strided_slice %218 {offsets = [0, 24], sizes = [10, 8], strides = [1, 1]} : vector<10x32xf32> to vector<10x8xf32>
    "tpu.trace_start"() <{level = 10 : i32, message = "qd,kd->qk"}> : () -> ()
    %cst_103 = arith.constant dense<0.000000e+00> : vector<8x10xf32>
    %270 = tpu.matmul %267, %268, %cst_103 {dimension_numbers = #tpu.dot_dimension_numbers<[1], [1], [0], [0], [0, 0, 1, 0], [], []>} : vector<8x8xf32>, vector<10x8xf32>, vector<8x10xf32> -> vector<8x10xf32>
    "tpu.trace_stop"() : () -> ()
    %cst_104 = arith.constant dense<0xFF800000> : vector<8xf32>
    %271 = vector.multi_reduction <maximumf>, %270, %cst_104 [1] : vector<8x10xf32> to vector<8xf32>
    %272 = vector.shape_cast %271 : vector<8xf32> to vector<8x1xf32>
    %273 = vector.broadcast %272 : vector<8x1xf32> to vector<8x10xf32>
    %274 = arith.subf %270, %273 : vector<8x10xf32>
    %275 = math.exp %274 : vector<8x10xf32>
    %cst_105 = arith.constant dense<0.000000e+00> : vector<8xf32>
    %276 = vector.multi_reduction <add>, %275, %cst_105 [1] : vector<8x10xf32> to vector<8xf32>
    %277 = vector.shape_cast %276 : vector<8xf32> to vector<8x1xf32>
    %cst_106 = arith.constant 1.000000e+00 : f32
    %278 = vector.broadcast %cst_106 : f32 to vector<8x1xf32>
    %279 = arith.divf %278, %277 : vector<8x1xf32>
    %cst_107 = arith.constant dense<0.000000e+00> : vector<8x8xf32>
    %280 = tpu.matmul %275, %269, %cst_107 {dimension_numbers = #tpu.dot_dimension_numbers<[1], [0], [0], [1], [0, 0, 1, 1], [], []>} : vector<8x10xf32>, vector<10x8xf32>, vector<8x8xf32> -> vector<8x8xf32>
    %281 = vector.broadcast %279 : vector<8x1xf32> to vector<8x8xf32>
    %282 = arith.mulf %280, %281 : vector<8x8xf32>
    %283 = tpu.concatenate %234, %250, %266, %282 in 1 : vector<8x8xf32>, vector<8x8xf32>, vector<8x8xf32>, vector<8x8xf32> -> vector<8x32xf32>
    %c0_108 = arith.constant 0 : index
    %c0_109 = arith.constant 0 : index
    %c0_110 = arith.constant 0 : index
    %284 = vector.load %arg22[%c0_108, %c0_109, %c0_110] : memref<1x32x32xf32, #tpu.memory_space<vmem>>, vector<1x32x32xf32>
    %285 = vector.shape_cast %284 : vector<1x32x32xf32> to vector<32x32xf32>
    %cst_111 = arith.constant dense<0.000000e+00> : vector<8x32xf32>
    %286 = tpu.matmul %283, %285, %cst_111 {dimension_numbers = #tpu.dot_dimension_numbers<[1], [0], [0], [1], [0, 0, 1, 1], [], []>} : vector<8x32xf32>, vector<32x32xf32>, vector<8x32xf32> -> vector<8x32xf32>
    %c0_112 = arith.constant 0 : index
    %c0_113 = arith.constant 0 : index
    %c0_114 = arith.constant 0 : index
    %287 = vector.load %arg23[%c0_112, %c0_113, %c0_114] : memref<1x1x32xf32, #tpu.memory_space<vmem>>, vector<1x1x32xf32>
    %288 = vector.shape_cast %287 : vector<1x1x32xf32> to vector<1x32xf32>
    %289 = vector.broadcast %288 : vector<1x32xf32> to vector<8x32xf32>
    %290 = arith.addf %286, %289 : vector<8x32xf32>
    %291 = arith.addf %197, %290 : vector<8x32xf32>
    %c0_115 = arith.constant 0 : index
    %c0_116 = arith.constant 0 : index
    %c0_117 = arith.constant 0 : index
    %292 = vector.load %arg24[%c0_115, %c0_116, %c0_117] : memref<1x1x32xf32, #tpu.memory_space<vmem>>, vector<1x1x32xf32>
    %293 = vector.shape_cast %292 : vector<1x1x32xf32> to vector<1x32xf32>
    %c0_118 = arith.constant 0 : index
    %c0_119 = arith.constant 0 : index
    %c0_120 = arith.constant 0 : index
    %294 = vector.load %arg25[%c0_118, %c0_119, %c0_120] : memref<1x1x32xf32, #tpu.memory_space<vmem>>, vector<1x1x32xf32>
    %295 = vector.shape_cast %294 : vector<1x1x32xf32> to vector<1x32xf32>
    %cst_121 = arith.constant dense<0.000000e+00> : vector<8xf32>
    %296 = vector.multi_reduction <add>, %291, %cst_121 [1] : vector<8x32xf32> to vector<8xf32>
    %297 = vector.shape_cast %296 : vector<8xf32> to vector<8x1xf32>
    %cst_122 = arith.constant 3.200000e+01 : f32
    %298 = vector.broadcast %cst_122 : f32 to vector<8x1xf32>
    %299 = arith.divf %297, %298 : vector<8x1xf32>
    %300 = vector.broadcast %299 : vector<8x1xf32> to vector<8x32xf32>
    %301 = arith.subf %291, %300 : vector<8x32xf32>
    %302 = arith.mulf %301, %301 : vector<8x32xf32>
    %cst_123 = arith.constant dense<0.000000e+00> : vector<8xf32>
    %303 = vector.multi_reduction <add>, %302, %cst_123 [1] : vector<8x32xf32> to vector<8xf32>
    %304 = vector.shape_cast %303 : vector<8xf32> to vector<8x1xf32>
    %cst_124 = arith.constant 3.200000e+01 : f32
    %305 = vector.broadcast %cst_124 : f32 to vector<8x1xf32>
    %306 = arith.divf %304, %305 : vector<8x1xf32>
    %cst_125 = arith.constant 9.99999974E-6 : f32
    %307 = vector.broadcast %cst_125 : f32 to vector<8x1xf32>
    %308 = arith.addf %306, %307 : vector<8x1xf32>
    %309 = math.rsqrt %308 : vector<8x1xf32>
    %310 = vector.broadcast %309 : vector<8x1xf32> to vector<8x32xf32>
    %311 = arith.mulf %301, %310 : vector<8x32xf32>
    %312 = vector.broadcast %293 : vector<1x32xf32> to vector<8x32xf32>
    %313 = arith.mulf %311, %312 : vector<8x32xf32>
    %314 = vector.broadcast %295 : vector<1x32xf32> to vector<8x32xf32>
    %315 = arith.addf %313, %314 : vector<8x32xf32>
    %c0_126 = arith.constant 0 : index
    %c0_127 = arith.constant 0 : index
    %c0_128 = arith.constant 0 : index
    %316 = vector.load %arg26[%c0_126, %c0_127, %c0_128] : memref<1x32x64xf32, #tpu.memory_space<vmem>>, vector<1x32x64xf32>
    %317 = vector.shape_cast %316 : vector<1x32x64xf32> to vector<32x64xf32>
    %cst_129 = arith.constant dense<0.000000e+00> : vector<8x64xf32>
    %318 = tpu.matmul %315, %317, %cst_129 {dimension_numbers = #tpu.dot_dimension_numbers<[1], [0], [0], [1], [0, 0, 1, 1], [], []>} : vector<8x32xf32>, vector<32x64xf32>, vector<8x64xf32> -> vector<8x64xf32>
    %c0_130 = arith.constant 0 : index
    %c0_131 = arith.constant 0 : index
    %c0_132 = arith.constant 0 : index
    %319 = vector.load %arg27[%c0_130, %c0_131, %c0_132] : memref<1x1x64xf32, #tpu.memory_space<vmem>>, vector<1x1x64xf32>
    %320 = vector.shape_cast %319 : vector<1x1x64xf32> to vector<1x64xf32>
    %321 = vector.broadcast %320 : vector<1x64xf32> to vector<8x64xf32>
    %322 = arith.addf %318, %321 : vector<8x64xf32>
    %cst_133 = arith.constant 0.000000e+00 : f32
    %323 = vector.broadcast %cst_133 : f32 to vector<8x64xf32>
    %324 = arith.maximumf %322, %323 : vector<8x64xf32>
    %c0_134 = arith.constant 0 : index
    %c0_135 = arith.constant 0 : index
    %c0_136 = arith.constant 0 : index
    %325 = vector.load %arg28[%c0_134, %c0_135, %c0_136] : memref<1x64x32xf32, #tpu.memory_space<vmem>>, vector<1x64x32xf32>
    %326 = vector.shape_cast %325 : vector<1x64x32xf32> to vector<64x32xf32>
    %cst_137 = arith.constant dense<0.000000e+00> : vector<8x32xf32>
    %327 = tpu.matmul %324, %326, %cst_137 {dimension_numbers = #tpu.dot_dimension_numbers<[1], [0], [0], [1], [0, 0, 1, 1], [], []>} : vector<8x64xf32>, vector<64x32xf32>, vector<8x32xf32> -> vector<8x32xf32>
    %328 = arith.addf %315, %327 : vector<8x32xf32>
    %c0_138 = arith.constant 0 : index
    %c0_139 = arith.constant 0 : index
    %c0_140 = arith.constant 0 : index
    %329 = vector.load %arg29[%c0_138, %c0_139, %c0_140] : memref<1x1x32xf32, #tpu.memory_space<vmem>>, vector<1x1x32xf32>
    %330 = vector.shape_cast %329 : vector<1x1x32xf32> to vector<1x32xf32>
    %331 = vector.broadcast %330 : vector<1x32xf32> to vector<8x32xf32>
    %332 = arith.addf %328, %331 : vector<8x32xf32>
    %c0_141 = arith.constant 0 : index
    %c0_142 = arith.constant 0 : index
    %c0_143 = arith.constant 0 : index
    %333 = vector.load %arg30[%c0_141, %c0_142, %c0_143] : memref<1x1x32xf32, #tpu.memory_space<vmem>>, vector<1x1x32xf32>
    %334 = vector.shape_cast %333 : vector<1x1x32xf32> to vector<1x32xf32>
    %c0_144 = arith.constant 0 : index
    %c0_145 = arith.constant 0 : index
    %c0_146 = arith.constant 0 : index
    %335 = vector.load %arg31[%c0_144, %c0_145, %c0_146] : memref<1x1x32xf32, #tpu.memory_space<vmem>>, vector<1x1x32xf32>
    %336 = vector.shape_cast %335 : vector<1x1x32xf32> to vector<1x32xf32>
    %cst_147 = arith.constant dense<0.000000e+00> : vector<8xf32>
    %337 = vector.multi_reduction <add>, %332, %cst_147 [1] : vector<8x32xf32> to vector<8xf32>
    %338 = vector.shape_cast %337 : vector<8xf32> to vector<8x1xf32>
    %cst_148 = arith.constant 3.200000e+01 : f32
    %339 = vector.broadcast %cst_148 : f32 to vector<8x1xf32>
    %340 = arith.divf %338, %339 : vector<8x1xf32>
    %341 = vector.broadcast %340 : vector<8x1xf32> to vector<8x32xf32>
    %342 = arith.subf %332, %341 : vector<8x32xf32>
    %343 = arith.mulf %342, %342 : vector<8x32xf32>
    %cst_149 = arith.constant dense<0.000000e+00> : vector<8xf32>
    %344 = vector.multi_reduction <add>, %343, %cst_149 [1] : vector<8x32xf32> to vector<8xf32>
    %345 = vector.shape_cast %344 : vector<8xf32> to vector<8x1xf32>
    %cst_150 = arith.constant 3.200000e+01 : f32
    %346 = vector.broadcast %cst_150 : f32 to vector<8x1xf32>
    %347 = arith.divf %345, %346 : vector<8x1xf32>
    %cst_151 = arith.constant 9.99999974E-6 : f32
    %348 = vector.broadcast %cst_151 : f32 to vector<8x1xf32>
    %349 = arith.addf %347, %348 : vector<8x1xf32>
    %350 = math.rsqrt %349 : vector<8x1xf32>
    %351 = vector.broadcast %350 : vector<8x1xf32> to vector<8x32xf32>
    %352 = arith.mulf %342, %351 : vector<8x32xf32>
    %353 = vector.broadcast %334 : vector<1x32xf32> to vector<8x32xf32>
    %354 = arith.mulf %352, %353 : vector<8x32xf32>
    %355 = vector.broadcast %336 : vector<1x32xf32> to vector<8x32xf32>
    %356 = arith.addf %354, %355 : vector<8x32xf32>
    %c0_152 = arith.constant 0 : index
    %c0_153 = arith.constant 0 : index
    %357 = vector.load %arg35[%c0_152, %c0_153] : memref<8x32xf32, #tpu.memory_space<vmem>>, vector<8x32xf32>
    tpu.vector_store %arg35[%c0_152, %c0_153], %356 {strides = array<i32>} : memref<8x32xf32, #tpu.memory_space<vmem>>, vector<8x32xf32>,
    %c1_i32 = arith.constant 1 : i32
    %358 = arith.cmpi eq, %arg1, %c1_i32 : i32
    %359 = arith.extui %358 : i1 to i32
    %c0_i32_154 = arith.constant 0 : i32
    %360 = arith.cmpi ne, %359, %c0_i32_154 : i32
    scf.if %360 {
      %c0_155 = arith.constant 0 : index
      %c0_156 = arith.constant 0 : index
      %361 = vector.load %arg32[%c0_155, %c0_156] : memref<1x32xf32, #tpu.memory_space<vmem>>, vector<1x32xf32>
      %c0_157 = arith.constant 0 : index
      %c0_158 = arith.constant 0 : index
      %362 = vector.load %arg33[%c0_157, %c0_158] : memref<1x32xf32, #tpu.memory_space<vmem>>, vector<1x32xf32>
      %cst_159 = arith.constant dense<0.000000e+00> : vector<8xf32>
      %363 = vector.multi_reduction <add>, %356, %cst_159 [1] : vector<8x32xf32> to vector<8xf32>
      %364 = vector.shape_cast %363 : vector<8xf32> to vector<8x1xf32>
      %cst_160 = arith.constant 3.200000e+01 : f32
      %365 = vector.broadcast %cst_160 : f32 to vector<8x1xf32>
      %366 = arith.divf %364, %365 : vector<8x1xf32>
      %367 = vector.broadcast %366 : vector<8x1xf32> to vector<8x32xf32>
      %368 = arith.subf %356, %367 : vector<8x32xf32>
      %369 = arith.mulf %368, %368 : vector<8x32xf32>
      %cst_161 = arith.constant dense<0.000000e+00> : vector<8xf32>
      %370 = vector.multi_reduction <add>, %369, %cst_161 [1] : vector<8x32xf32> to vector<8xf32>
      %371 = vector.shape_cast %370 : vector<8xf32> to vector<8x1xf32>
      %cst_162 = arith.constant 3.200000e+01 : f32
      %372 = vector.broadcast %cst_162 : f32 to vector<8x1xf32>
      %373 = arith.divf %371, %372 : vector<8x1xf32>
      %cst_163 = arith.constant 9.99999974E-6 : f32
      %374 = vector.broadcast %cst_163 : f32 to vector<8x1xf32>
      %375 = arith.addf %373, %374 : vector<8x1xf32>
      %376 = math.rsqrt %375 : vector<8x1xf32>
      %377 = vector.broadcast %376 : vector<8x1xf32> to vector<8x32xf32>
      %378 = arith.mulf %368, %377 : vector<8x32xf32>
      %379 = vector.broadcast %361 : vector<1x32xf32> to vector<8x32xf32>
      %380 = arith.mulf %378, %379 : vector<8x32xf32>
      %381 = vector.broadcast %362 : vector<1x32xf32> to vector<8x32xf32>
      %382 = arith.addf %380, %381 : vector<8x32xf32>
      %383 = vector.shape_cast %382 : vector<8x32xf32> to vector<1x8x32xf32>
      %c0_164 = arith.constant 0 : index
      %c0_165 = arith.constant 0 : index
      %c0_166 = arith.constant 0 : index
      %384 = vector.load %arg34[%c0_164, %c0_165, %c0_166] : memref<1x8x32xf32, #tpu.memory_space<vmem>>, vector<1x8x32xf32>
      tpu.vector_store %arg34[%c0_164, %c0_165, %c0_166], %383 {strides = array<i32>} : memref<1x8x32xf32, #tpu.memory_space<vmem>>, vector<1x8x32xf32>,
    } else {
    }
    return
  }
  func.func @transform_0(%arg0: i32, %arg1: i32) -> (i32, i32, i32) {
    %c0_i32 = arith.constant 0 : i32
    %c0_i32_0 = arith.constant 0 : i32
    %c0_i32_1 = arith.constant 0 : i32
    return %arg0, %c0_i32, %c0_i32_0 : i32, i32, i32
  }
  func.func @transform_1(%arg0: i32, %arg1: i32) -> (i32, i32, i32) {
    %c0_i32 = arith.constant 0 : i32
    %c0_i32_0 = arith.constant 0 : i32
    %c0_i32_1 = arith.constant 0 : i32
    return %arg0, %c0_i32, %c0_i32_0 : i32, i32, i32
  }
  func.func @transform_2(%arg0: i32, %arg1: i32) -> (i32, i32) {
    %c0_i32 = arith.constant 0 : i32
    %c0_i32_0 = arith.constant 0 : i32
    %c0_i32_1 = arith.constant 0 : i32
    return %c0_i32, %c0_i32_0 : i32, i32
  }
  func.func @transform_3(%arg0: i32, %arg1: i32) -> (i32, i32) {
    %c0_i32 = arith.constant 0 : i32
    %c0_i32_0 = arith.constant 0 : i32
    %c0_i32_1 = arith.constant 0 : i32
    return %c0_i32, %c0_i32_0 : i32, i32
  }
  func.func @transform_4(%arg0: i32, %arg1: i32) -> (i32, i32, i32) {
    %c0_i32 = arith.constant 0 : i32
    %c0_i32_0 = arith.constant 0 : i32
    %c0_i32_1 = arith.constant 0 : i32
    return %arg1, %c0_i32, %c0_i32_0 : i32, i32, i32
  }
  func.func @transform_5(%arg0: i32, %arg1: i32) -> (i32, i32, i32) {
    %c0_i32 = arith.constant 0 : i32
    %c0_i32_0 = arith.constant 0 : i32
    %c0_i32_1 = arith.constant 0 : i32
    return %arg1, %c0_i32, %c0_i32_0 : i32, i32, i32
  }
  func.func @transform_6(%arg0: i32, %arg1: i32) -> (i32, i32, i32) {
    %c0_i32 = arith.constant 0 : i32
    %c0_i32_0 = arith.constant 0 : i32
    %c0_i32_1 = arith.constant 0 : i32
    return %arg1, %c0_i32, %c0_i32_0 : i32, i32, i32
  }
  func.func @transform_7(%arg0: i32, %arg1: i32) -> (i32, i32, i32) {
    %c0_i32 = arith.constant 0 : i32
    %c0_i32_0 = arith.constant 0 : i32
    %c0_i32_1 = arith.constant 0 : i32
    return %arg1, %c0_i32, %c0_i32_0 : i32, i32, i32
  }
  func.func @transform_8(%arg0: i32, %arg1: i32) -> (i32, i32, i32) {
    %c0_i32 = arith.constant 0 : i32
    %c0_i32_0 = arith.constant 0 : i32
    %c0_i32_1 = arith.constant 0 : i32
    return %arg1, %c0_i32, %c0_i32_0 : i32, i32, i32
  }
  func.func @transform_9(%arg0: i32, %arg1: i32) -> (i32, i32, i32) {
    %c0_i32 = arith.constant 0 : i32
    %c0_i32_0 = arith.constant 0 : i32
    %c0_i32_1 = arith.constant 0 : i32
    return %arg1, %c0_i32, %c0_i32_0 : i32, i32, i32
  }
  func.func @transform_10(%arg0: i32, %arg1: i32) -> (i32, i32, i32) {
    %c0_i32 = arith.constant 0 : i32
    %c0_i32_0 = arith.constant 0 : i32
    %c0_i32_1 = arith.constant 0 : i32
    return %arg1, %c0_i32, %c0_i32_0 : i32, i32, i32
  }
  func.func @transform_11(%arg0: i32, %arg1: i32) -> (i32, i32, i32) {
    %c0_i32 = arith.constant 0 : i32
    %c0_i32_0 = arith.constant 0 : i32
    %c0_i32_1 = arith.constant 0 : i32
    return %arg1, %c0_i32, %c0_i32_0 : i32, i32, i32
  }
  func.func @transform_12(%arg0: i32, %arg1: i32) -> (i32, i32, i32) {
    %c0_i32 = arith.constant 0 : i32
    %c0_i32_0 = arith.constant 0 : i32
    %c0_i32_1 = arith.constant 0 : i32
    return %arg1, %c0_i32, %c0_i32_0 : i32, i32, i32
  }
  func.func @transform_13(%arg0: i32, %arg1: i32) -> (i32, i32, i32) {
    %c0_i32 = arith.constant 0 : i32
    %c0_i32_0 = arith.constant 0 : i32
    %c0_i32_1 = arith.constant 0 : i32
    return %arg1, %c0_i32, %c0_i32_0 : i32, i32, i32
  }
  func.func @transform_14(%arg0: i32, %arg1: i32) -> (i32, i32, i32) {
    %c0_i32 = arith.constant 0 : i32
    %c0_i32_0 = arith.constant 0 : i32
    %c0_i32_1 = arith.constant 0 : i32
    return %arg1, %c0_i32, %c0_i32_0 : i32, i32, i32
  }
  func.func @transform_15(%arg0: i32, %arg1: i32) -> (i32, i32, i32) {
    %c0_i32 = arith.constant 0 : i32
    %c0_i32_0 = arith.constant 0 : i32
    %c0_i32_1 = arith.constant 0 : i32
    return %arg1, %c0_i32, %c0_i32_0 : i32, i32, i32
  }
  func.func @transform_16(%arg0: i32, %arg1: i32) -> (i32, i32, i32) {
    %c0_i32 = arith.constant 0 : i32
    %c0_i32_0 = arith.constant 0 : i32
    %c0_i32_1 = arith.constant 0 : i32
    return %arg1, %c0_i32, %c0_i32_0 : i32, i32, i32
  }
  func.func @transform_17(%arg0: i32, %arg1: i32) -> (i32, i32, i32) {
    %c0_i32 = arith.constant 0 : i32
    %c0_i32_0 = arith.constant 0 : i32
    %c0_i32_1 = arith.constant 0 : i32
    return %arg1, %c0_i32, %c0_i32_0 : i32, i32, i32
  }
  func.func @transform_18(%arg0: i32, %arg1: i32) -> (i32, i32, i32) {
    %c0_i32 = arith.constant 0 : i32
    %c0_i32_0 = arith.constant 0 : i32
    %c0_i32_1 = arith.constant 0 : i32
    return %arg1, %c0_i32, %c0_i32_0 : i32, i32, i32
  }
  func.func @transform_19(%arg0: i32, %arg1: i32) -> (i32, i32, i32) {
    %c0_i32 = arith.constant 0 : i32
    %c0_i32_0 = arith.constant 0 : i32
    %c0_i32_1 = arith.constant 0 : i32
    return %arg1, %c0_i32, %c0_i32_0 : i32, i32, i32
  }
  func.func @transform_20(%arg0: i32, %arg1: i32) -> (i32, i32, i32) {
    %c0_i32 = arith.constant 0 : i32
    %c0_i32_0 = arith.constant 0 : i32
    %c0_i32_1 = arith.constant 0 : i32
    return %arg1, %c0_i32, %c0_i32_0 : i32, i32, i32
  }
  func.func @transform_21(%arg0: i32, %arg1: i32) -> (i32, i32, i32) {
    %c0_i32 = arith.constant 0 : i32
    %c0_i32_0 = arith.constant 0 : i32
    %c0_i32_1 = arith.constant 0 : i32
    return %arg1, %c0_i32, %c0_i32_0 : i32, i32, i32
  }
  func.func @transform_22(%arg0: i32, %arg1: i32) -> (i32, i32, i32) {
    %c0_i32 = arith.constant 0 : i32
    %c0_i32_0 = arith.constant 0 : i32
    %c0_i32_1 = arith.constant 0 : i32
    return %arg1, %c0_i32, %c0_i32_0 : i32, i32, i32
  }
  func.func @transform_23(%arg0: i32, %arg1: i32) -> (i32, i32, i32) {
    %c0_i32 = arith.constant 0 : i32
    %c0_i32_0 = arith.constant 0 : i32
    %c0_i32_1 = arith.constant 0 : i32
    return %arg1, %c0_i32, %c0_i32_0 : i32, i32, i32
  }
  func.func @transform_24(%arg0: i32, %arg1: i32) -> (i32, i32, i32) {
    %c0_i32 = arith.constant 0 : i32
    %c0_i32_0 = arith.constant 0 : i32
    %c0_i32_1 = arith.constant 0 : i32
    return %arg1, %c0_i32, %c0_i32_0 : i32, i32, i32
  }
  func.func @transform_25(%arg0: i32, %arg1: i32) -> (i32, i32, i32) {
    %c0_i32 = arith.constant 0 : i32
    %c0_i32_0 = arith.constant 0 : i32
    %c0_i32_1 = arith.constant 0 : i32
    return %arg1, %c0_i32, %c0_i32_0 : i32, i32, i32
  }
  func.func @transform_26(%arg0: i32, %arg1: i32) -> (i32, i32, i32) {
    %c0_i32 = arith.constant 0 : i32
    %c0_i32_0 = arith.constant 0 : i32
    %c0_i32_1 = arith.constant 0 : i32
    return %arg1, %c0_i32, %c0_i32_0 : i32, i32, i32
  }
  func.func @transform_27(%arg0: i32, %arg1: i32) -> (i32, i32, i32) {
    %c0_i32 = arith.constant 0 : i32
    %c0_i32_0 = arith.constant 0 : i32
    %c0_i32_1 = arith.constant 0 : i32
    return %arg1, %c0_i32, %c0_i32_0 : i32, i32, i32
  }
  func.func @transform_28(%arg0: i32, %arg1: i32) -> (i32, i32, i32) {
    %c0_i32 = arith.constant 0 : i32
    %c0_i32_0 = arith.constant 0 : i32
    %c0_i32_1 = arith.constant 0 : i32
    return %arg1, %c0_i32, %c0_i32_0 : i32, i32, i32
  }
  func.func @transform_29(%arg0: i32, %arg1: i32) -> (i32, i32, i32) {
    %c0_i32 = arith.constant 0 : i32
    %c0_i32_0 = arith.constant 0 : i32
    %c0_i32_1 = arith.constant 0 : i32
    return %arg1, %c0_i32, %c0_i32_0 : i32, i32, i32
  }
  func.func @transform_30(%arg0: i32, %arg1: i32) -> (i32, i32) {
    %c0_i32 = arith.constant 0 : i32
    %c0_i32_0 = arith.constant 0 : i32
    %c0_i32_1 = arith.constant 0 : i32
    return %c0_i32, %c0_i32_0 : i32, i32
  }
  func.func @transform_31(%arg0: i32, %arg1: i32) -> (i32, i32) {
    %c0_i32 = arith.constant 0 : i32
    %c0_i32_0 = arith.constant 0 : i32
    %c0_i32_1 = arith.constant 0 : i32
    return %c0_i32, %c0_i32_0 : i32, i32
  }
  func.func @transform_32(%arg0: i32, %arg1: i32) -> (i32, i32, i32) {
    %c0_i32 = arith.constant 0 : i32
    %c0_i32_0 = arith.constant 0 : i32
    %c0_i32_1 = arith.constant 0 : i32
    return %arg0, %c0_i32, %c0_i32_0 : i32, i32, i32
  }
}

</mosaic_0001>

<llo_original>
// kernel: tpu_custom_call.1
$region0: #{tpu_custom_call.1}
  #allocation0 [shape = 'u32[]', space=smem, size = 0x4, offset = 0x4, fixed_abs, tag = 'smem constant byte address 0x4 - core index']
  #allocation1 [shape = 'u32[72,128]{1,0:T(1,128)}', space=vmem, size = 0x9000, scoped, tag = 'internal scratch']
  #allocation2 [shape = 'f32[8,32]{1,0:T(8,128)}', space=vmem, size = 0x1000, scoped, tag = 'scratch operand']
  %s0 = inlined_call_operand.smem [shape: u32[33], index: -1, kind: input, shape index: {}]
  %s1 = sld [smem:[%s0]]
  %s2 = scalar_lea.smem %s0, 1
  %s3 = sld [smem:[%s2]]
  %s4 = scalar_lea.smem %s0, 2
  %s5 = sld [smem:[%s4]]
  %s6 = scalar_lea.smem %s0, 3
  %s7 = sld [smem:[%s6]]
  %s8 = scalar_lea.smem %s0, 4
  %s9 = sld [smem:[%s8]]
  %s10 = scalar_lea.smem %s0, 5
  %s11 = sld [smem:[%s10]]
  %s12 = scalar_lea.smem %s0, 6
  %s13 = sld [smem:[%s12]]
  %s14 = scalar_lea.smem %s0, 7
  %s15 = sld [smem:[%s14]]
  %s16 = scalar_lea.smem %s0, 8
  %s17 = sld [smem:[%s16]]
  %s18 = scalar_lea.smem %s0, 9
  %s19 = sld [smem:[%s18]]
  %s20 = scalar_lea.smem %s0, 10
  %s21 = sld [smem:[%s20]]
  %s22 = scalar_lea.smem %s0, 11
  %s23 = sld [smem:[%s22]]
  %s24 = scalar_lea.smem %s0, 12
  %s25 = sld [smem:[%s24]]
  %s26 = scalar_lea.smem %s0, 13
  %s27 = sld [smem:[%s26]]
  %s28 = scalar_lea.smem %s0, 14
  %s29 = sld [smem:[%s28]]
  %s30 = scalar_lea.smem %s0, 15
  %s31 = sld [smem:[%s30]]
  %s32 = scalar_lea.smem %s0, 16
  %s33 = sld [smem:[%s32]]
  %s34 = scalar_lea.smem %s0, 17
  %s35 = sld [smem:[%s34]]
  %s36 = scalar_lea.smem %s0, 18
  %s37 = sld [smem:[%s36]]
  %s38 = scalar_lea.smem %s0, 19
  %s39 = sld [smem:[%s38]]
  %s40 = scalar_lea.smem %s0, 20
  %s41 = sld [smem:[%s40]]
  %s42 = scalar_lea.smem %s0, 21
  %s43 = sld [smem:[%s42]]
  %s44 = scalar_lea.smem %s0, 22
  %s45 = sld [smem:[%s44]]
  %s46 = scalar_lea.smem %s0, 23
  %s47 = sld [smem:[%s46]]
  %s48 = scalar_lea.smem %s0, 24
  %s49 = sld [smem:[%s48]]
  %s50 = scalar_lea.smem %s0, 25
  %s51 = sld [smem:[%s50]]
  %s52 = scalar_lea.smem %s0, 26
  %s53 = sld [smem:[%s52]]
  %s54 = scalar_lea.smem %s0, 27
  %s55 = sld [smem:[%s54]]
  %s56 = scalar_lea.smem %s0, 28
  %s57 = sld [smem:[%s56]]
  %s58 = scalar_lea.smem %s0, 29
  %s59 = sld [smem:[%s58]]
  %s60 = scalar_lea.smem %s0, 30
  %s61 = sld [smem:[%s60]]
  %s62 = scalar_lea.smem %s0, 31
  %s63 = sld [smem:[%s62]]
  %s64 = scalar_lea.smem %s0, 32
  %s65 = sld [smem:[%s64]]
  %s66 = sld [smem:[#allocation0]]
  $region221: #{tpu_custom_call.1} parent=0
    _
  %s68 = ssub.s32 1, %s66
  %s69 = scalar_select 0, %s68, %s66
  $region1: #{tpu_custom_call.1} parent=0
    #allocation3 [shape = 'u8[32768]{0}', space=vmem, size = 0x8000, scoped, tag = 'input window, operand 10']
    #allocation4 [shape = 's32[2]{0}', space=sflag, size = 0x8, scoped, tag = 'scoped memory for tpu_custom_call.1']
    #allocation5 [shape = 's32[2]{0}', space=sflag, size = 0x8, scoped, tag = 'scoped memory for tpu_custom_call.1']
    #allocation6 [shape = 'u8[32768]{0}', space=vmem, size = 0x8000, scoped, tag = 'input window, operand 14']
    #allocation7 [shape = 's32[2]{0}', space=sflag, size = 0x8, scoped, tag = 'scoped memory for tpu_custom_call.1']
    #allocation8 [shape = 'u8[32768]{0}', space=vmem, size = 0x8000, scoped, tag = 'input window, operand 16']
    #allocation9 [shape = 'u8[32768]{0}', space=vmem, size = 0x8000, scoped, tag = 'input window, operand 18']
    #allocation10 [shape = 's32[2]{0}', space=sflag, size = 0x8, scoped, tag = 'scoped memory for tpu_custom_call.1']
    #allocation11 [shape = 'u8[32768]{0}', space=vmem, size = 0x8000, scoped, tag = 'input window, operand 20']
    #allocation12 [shape = 'u8[1024]{0}', space=vmem, size = 0x400, scoped, tag = 'input window, operand 22']
    #allocation13 [shape = 's32[2]{0}', space=sflag, size = 0x8, scoped, tag = 'scoped memory for tpu_custom_call.1']
    #allocation14 [shape = 'u8[1024]{0}', space=vmem, size = 0x400, scoped, tag = 'input window, operand 23']
    #allocation15 [shape = 'u8[32768]{0}', space=vmem, size = 0x8000, scoped, tag = 'input window, operand 24']
    #allocation16 [shape = 's32[2]{0}', space=sflag, size = 0x8, scoped, tag = 'scoped memory for tpu_custom_call.1']
    #allocation17 [shape = 'u8[1024]{0}', space=vmem, size = 0x400, scoped, tag = 'input window, operand 25']
    #allocation18 [shape = 'u8[1024]{0}', space=vmem, size = 0x400, scoped, tag = 'input window, operand 27']
    #allocation19 [shape = 's32[2]{0}', space=sflag, size = 0x8, scoped, tag = 'scoped memory for tpu_custom_call.1']
    #allocation20 [shape = 'u8[1024]{0}', space=vmem, size = 0x400, scoped, tag = 'input window, operand 29']
    #allocation21 [shape = 'u8[512]{0}', space=vmem, size = 0x400, scoped, tag = 'input window, operand 30, single buffered']
    #allocation22 [shape = 's32[1]{0}', space=sflag, size = 0x4, scoped, tag = 'scoped memory for tpu_custom_call.1']
    #allocation23 [shape = 'u8[512]{0}', space=vmem, size = 0x400, scoped, tag = 'input window, operand 31, single buffered']
    #allocation24 [shape = 'u8[8192]{0}', space=vmem, size = 0x2000, scoped, tag = 'output window, operand 0']
    %70 = vsyncpa [#allocation4], 0
    %s71 = scalar_lea.sflag [#allocation4], 1
    %72 = vsyncpa %s71, 0
    %73 = vsyncpa [#allocation7], 0
    %s74 = scalar_lea.sflag [#allocation7], 1
    %75 = vsyncpa %s74, 0
    %76 = vsyncpa [#allocation10], 0
    %s77 = scalar_lea.sflag [#allocation10], 1
    %78 = vsyncpa %s77, 0
    %79 = vsyncpa [#allocation13], 0
    %s80 = scalar_lea.sflag [#allocation13], 1
    %81 = vsyncpa %s80, 0
    %82 = vsyncpa [#allocation16], 0
    %s83 = scalar_lea.sflag [#allocation16], 1
    %84 = vsyncpa %s83, 0
    %85 = vsyncpa [#allocation19], 0
    %s86 = scalar_lea.sflag [#allocation19], 1
    %87 = vsyncpa %s86, 0
    %88 = vsyncpa [#allocation22], 0
    %89 = vsyncpa [#allocation5], 0
    %s90 = scalar_lea.sflag [#allocation5], 1
    %91 = vsyncpa %s90, 0
    loop: start=0, step=1, limit=6
    $region2: #{tpu_custom_call.1} parent=1 // loop_pre_header
      _
    $region3: #{tpu_custom_call.1} parent=1 // loop_header
      %s93 = sphi 0, %s97
      %p94 = scmp.ge.s32.totalorder %s93, 6
      %s100 = sphi 0, %s112
      %s101 = sphi 0, %s108
      %s102 = sphi 0, %s100
      %s103 = sphi 0, %s101
      %s104 = sphi 0, %s102
      %s105 = sphi 0, %s103
      %s115 = sphi 0, %s117
      %s118 = sphi 0, %s115
      %s119 = sphi 0, %s118
      %s135 = sphi 0, %s119
      %s141 = sphi 0, %s143
      %s144 = sphi 0, %s141
      %s145 = sphi 0, %s144
      %s161 = sphi 0, %s145
      %s165 = sphi 0, %s165
      %s167 = sphi 0, %s165
      %s168 = sphi 0, %s167
      %s182 = sphi 0, %s168
      %s186 = sphi 0, %s186
      %s188 = sphi 0, %s186
      %s189 = sphi 0, %s188
      %s203 = sphi 0, %s189
      %s209 = sphi 0, %s211
      %s212 = sphi 0, %s209
      %s213 = sphi 0, %s212
      %s229 = sphi 0, %s213
      %s235 = sphi 0, %s237
      %s238 = sphi 0, %s235
      %s239 = sphi 0, %s238
      %s255 = sphi 0, %s239
      %s261 = sphi 0, %s263
      %s264 = sphi 0, %s261
      %s265 = sphi 0, %s264
      %s281 = sphi 0, %s265
      %s287 = sphi 0, %s289
      %s290 = sphi 0, %s287
      %s291 = sphi 0, %s290
      %s307 = sphi 0, %s291
      %s313 = sphi 0, %s315
      %s316 = sphi 0, %s313
      %s317 = sphi 0, %s316
      %s333 = sphi 0, %s317
      %s339 = sphi 0, %s341
      %s342 = sphi 0, %s339
      %s343 = sphi 0, %s342
      %s359 = sphi 0, %s343
      %s365 = sphi 0, %s367
      %s368 = sphi 0, %s365
      %s369 = sphi 0, %s368
      %s385 = sphi 0, %s369
      %s391 = sphi 0, %s393
      %s394 = sphi 0, %s391
      %s395 = sphi 0, %s394
      %s411 = sphi 0, %s395
      %s417 = sphi 0, %s419
      %s420 = sphi 0, %s417
      %s421 = sphi 0, %s420
      %s437 = sphi 0, %s421
      %s443 = sphi 0, %s445
      %s446 = sphi 0, %s443
      %s447 = sphi 0, %s446
      %s463 = sphi 0, %s447
      %s469 = sphi 0, %s471
      %s472 = sphi 0, %s469
      %s473 = sphi 0, %s472
      %s489 = sphi 0, %s473
      %s495 = sphi 0, %s497
      %s498 = sphi 0, %s495
      %s499 = sphi 0, %s498
      %s515 = sphi 0, %s499
      %s521 = sphi 0, %s523
      %s524 = sphi 0, %s521
      %s525 = sphi 0, %s524
      %s541 = sphi 0, %s525
      %s547 = sphi 0, %s549
      %s550 = sphi 0, %s547
      %s551 = sphi 0, %s550
      %s567 = sphi 0, %s551
      %s573 = sphi 0, %s575
      %s576 = sphi 0, %s573
      %s577 = sphi 0, %s576
      %s593 = sphi 0, %s577
      %s599 = sphi 0, %s601
      %s602 = sphi 0, %s599
      %s603 = sphi 0, %s602
      %s619 = sphi 0, %s603
      %s625 = sphi 0, %s627
      %s628 = sphi 0, %s625
      %s629 = sphi 0, %s628
      %s645 = sphi 0, %s629
      %s651 = sphi 0, %s653
      %s654 = sphi 0, %s651
      %s655 = sphi 0, %s654
      %s671 = sphi 0, %s655
      %s677 = sphi 0, %s679
      %s680 = sphi 0, %s677
      %s681 = sphi 0, %s680
      %s697 = sphi 0, %s681
      %s703 = sphi 0, %s705
      %s706 = sphi 0, %s703
      %s707 = sphi 0, %s706
      %s723 = sphi 0, %s707
      %s729 = sphi 0, %s731
      %s732 = sphi 0, %s729
      %s733 = sphi 0, %s732
      %s749 = sphi 0, %s733
      %s755 = sphi 0, %s757
      %s758 = sphi 0, %s755
      %s759 = sphi 0, %s758
      %s775 = sphi 0, %s759
      %s781 = sphi 0, %s783
      %s784 = sphi 0, %s781
      %s785 = sphi 0, %s784
      %s801 = sphi 0, %s785
      %s807 = sphi 0, %s809
      %s810 = sphi 0, %s807
      %s811 = sphi 0, %s810
      %s827 = sphi 0, %s811
      %s833 = sphi 0, %s835
      %s836 = sphi 0, %s833
      %s837 = sphi 0, %s836
      %s853 = sphi 0, %s837
      %s859 = sphi 0, %s861
      %s862 = sphi 0, %s859
      %s863 = sphi 0, %s862
      %s879 = sphi 0, %s863
      %s883 = sphi 0, %s883
      %s885 = sphi 0, %s883
      %s886 = sphi 0, %s885
      %s900 = sphi 0, %s886
      %s904 = sphi 0, %s904
      %s906 = sphi 0, %s904
      %s907 = sphi 0, %s906
      %s921 = sphi 0, %s907
      %s927 = sphi 0, %s929
      %s930 = sphi 0, %s927
      %s931 = sphi 0, %s930
      %s947 = sphi 0, %s931
    $region4: #{tpu_custom_call.1} parent=1 // loop_header_branch
      %96 = sbr.rel (%p94) target = $region8
    $region5: #{tpu_custom_call.1} parent=1 // loop_body
      %s98 = ssub.s32 %s93, 1
      %s99 = ssub.s32 %s93, 2
      %s106 = sadd.s32 1, %s101
      %p107 = scmp.ge.s32.totalorder %s106, 2
      %s108 = scalar_select %p107, 0, %s106
      %s109 = sadd.s32 1, %s100
      %s110 = scalar_select %p107, %s109, %s100
      %p111 = scmp.ge.s32.totalorder %s110, 2
      %s112 = scalar_select %p111, 0, %s110
      %s113 = ssub.s32 %s100, %s112
      %p114 = scmp.eq.s32.totalorder %s113, 0
      %s116 = sadd.s32 %s115, 1
      %s117 = scalar_select %p114, %s115, %s116
      %p120 = pneg %p114
      %p121 = scmp.eq.s32.totalorder %s93, 3
      %p122 = por %p120, %p121
      %p123 = scmp.ne.s32.totalorder %s115, %s118
      %p124 = scmp.eq.s32.totalorder %s93, 0
      %p125 = por %p123, %p124
      %p126 = scmp.ne.s32.totalorder %s115, %s118
      %p127 = scmp.eq.s32.totalorder %s98, 3
      %p128 = por %p126, %p127
      %p129 = scmp.ne.s32.totalorder %s118, %s119
      %p130 = scmp.eq.s32.totalorder %s98, 0
      %p131 = por %p129, %p130
      %p132 = scmp.ne.s32.totalorder %s118, %s119
      %p133 = scmp.eq.s32.totalorder %s99, 3
      %p134 = por %p132, %p133
      %p136 = scmp.ne.s32.totalorder %s119, %s135
      %p137 = scmp.eq.s32.totalorder %s99, 0
      %p138 = por %p136, %p137
      %s139 = ssub.s32 %s100, %s112
      %p140 = scmp.eq.s32.totalorder %s139, 0
      %s142 = sadd.s32 %s141, 1
      %s143 = scalar_select %p140, %s141, %s142
      %p146 = pneg %p140
      %p147 = scmp.eq.s32.totalorder %s93, 3
      %p148 = por %p146, %p147
      %p149 = scmp.ne.s32.totalorder %s141, %s144
      %p150 = scmp.eq.s32.totalorder %s93, 0
      %p151 = por %p149, %p150
      %p152 = scmp.ne.s32.totalorder %s141, %s144
      %p153 = scmp.eq.s32.totalorder %s98, 3
      %p154 = por %p152, %p153
      %p155 = scmp.ne.s32.totalorder %s144, %s145
      %p156 = scmp.eq.s32.totalorder %s98, 0
      %p157 = por %p155, %p156
      %p158 = scmp.ne.s32.totalorder %s144, %s145
      %p159 = scmp.eq.s32.totalorder %s99, 3
      %p160 = por %p158, %p159
      %p162 = scmp.ne.s32.totalorder %s145, %s161
      %p163 = scmp.eq.s32.totalorder %s99, 0
      %p164 = por %p162, %p163
      %s166 = sadd.s32 %s165, 1
      %p169 = scmp.eq.s32.totalorder %s93, 3
      %p170 = scmp.ne.s32.totalorder %s165, %s167
      %p171 = scmp.eq.s32.totalorder %s93, 0
      %p172 = por %p170, %p171
      %p173 = scmp.ne.s32.totalorder %s165, %s167
      %p174 = scmp.eq.s32.totalorder %s98, 3
      %p175 = por %p173, %p174
      %p176 = scmp.ne.s32.totalorder %s167, %s168
      %p177 = scmp.eq.s32.totalorder %s98, 0
      %p178 = por %p176, %p177
      %p179 = scmp.ne.s32.totalorder %s167, %s168
      %p180 = scmp.eq.s32.totalorder %s99, 3
      %p181 = por %p179, %p180
      %p183 = scmp.ne.s32.totalorder %s168, %s182
      %p184 = scmp.eq.s32.totalorder %s99, 0
      %p185 = por %p183, %p184
      %s187 = sadd.s32 %s186, 1
      %p190 = scmp.eq.s32.totalorder %s93, 3
      %p191 = scmp.ne.s32.totalorder %s186, %s188
      %p192 = scmp.eq.s32.totalorder %s93, 0
      %p193 = por %p191, %p192
      %p194 = scmp.ne.s32.totalorder %s186, %s188
      %p195 = scmp.eq.s32.totalorder %s98, 3
      %p196 = por %p194, %p195
      %p197 = scmp.ne.s32.totalorder %s188, %s189
      %p198 = scmp.eq.s32.totalorder %s98, 0
      %p199 = por %p197, %p198
      %p200 = scmp.ne.s32.totalorder %s188, %s189
      %p201 = scmp.eq.s32.totalorder %s99, 3
      %p202 = por %p200, %p201
      %p204 = scmp.ne.s32.totalorder %s189, %s203
      %p205 = scmp.eq.s32.totalorder %s99, 0
      %p206 = por %p204, %p205
      %s207 = ssub.s32 %s101, %s108
      %p208 = scmp.eq.s32.totalorder %s207, 0
      %s210 = sadd.s32 %s209, 1
      %s211 = scalar_select %p208, %s209, %s210
      %p214 = pneg %p208
      %p215 = scmp.eq.s32.totalorder %s93, 3
      %p216 = por %p214, %p215
      %p217 = scmp.ne.s32.totalorder %s209, %s212
      %p218 = scmp.eq.s32.totalorder %s93, 0
      %p219 = por %p217, %p218
      %p220 = scmp.ne.s32.totalorder %s209, %s212
      %p221 = scmp.eq.s32.totalorder %s98, 3
      %p222 = por %p220, %p221
      %p223 = scmp.ne.s32.totalorder %s212, %s213
      %p224 = scmp.eq.s32.totalorder %s98, 0
      %p225 = por %p223, %p224
      %p226 = scmp.ne.s32.totalorder %s212, %s213
      %p227 = scmp.eq.s32.totalorder %s99, 3
      %p228 = por %p226, %p227
      %p230 = scmp.ne.s32.totalorder %s213, %s229
      %p231 = scmp.eq.s32.totalorder %s99, 0
      %p232 = por %p230, %p231
      %s233 = ssub.s32 %s101, %s108
      %p234 = scmp.eq.s32.totalorder %s233, 0
      %s236 = sadd.s32 %s235, 1
      %s237 = scalar_select %p234, %s235, %s236
      %p240 = pneg %p234
      %p241 = scmp.eq.s32.totalorder %s93, 3
      %p242 = por %p240, %p241
      %p243 = scmp.ne.s32.totalorder %s235, %s238
      %p244 = scmp.eq.s32.totalorder %s93, 0
      %p245 = por %p243, %p244
      %p246 = scmp.ne.s32.totalorder %s235, %s238
      %p247 = scmp.eq.s32.totalorder %s98, 3
      %p248 = por %p246, %p247
      %p249 = scmp.ne.s32.totalorder %s238, %s239
      %p250 = scmp.eq.s32.totalorder %s98, 0
      %p251 = por %p249, %p250
      %p252 = scmp.ne.s32.totalorder %s238, %s239
      %p253 = scmp.eq.s32.totalorder %s99, 3
      %p254 = por %p252, %p253
      %p256 = scmp.ne.s32.totalorder %s239, %s255
      %p257 = scmp.eq.s32.totalorder %s99, 0
      %p258 = por %p256, %p257
      %s259 = ssub.s32 %s101, %s108
      %p260 = scmp.eq.s32.totalorder %s259, 0
      %s262 = sadd.s32 %s261, 1
      %s263 = scalar_select %p260, %s261, %s262
      %p266 = pneg %p260
      %p267 = scmp.eq.s32.totalorder %s93, 3
      %p268 = por %p266, %p267
      %p269 = scmp.ne.s32.totalorder %s261, %s264
      %p270 = scmp.eq.s32.totalorder %s93, 0
      %p271 = por %p269, %p270
      %p272 = scmp.ne.s32.totalorder %s261, %s264
      %p273 = scmp.eq.s32.totalorder %s98, 3
      %p274 = por %p272, %p273
      %p275 = scmp.ne.s32.totalorder %s264, %s265
      %p276 = scmp.eq.s32.totalorder %s98, 0
      %p277 = por %p275, %p276
      %p278 = scmp.ne.s32.totalorder %s264, %s265
      %p279 = scmp.eq.s32.totalorder %s99, 3
      %p280 = por %p278, %p279
      %p282 = scmp.ne.s32.totalorder %s265, %s281
      %p283 = scmp.eq.s32.totalorder %s99, 0
      %p284 = por %p282, %p283
      %s285 = ssub.s32 %s101, %s108
      %p286 = scmp.eq.s32.totalorder %s285, 0
      %s288 = sadd.s32 %s287, 1
      %s289 = scalar_select %p286, %s287, %s288
      %p292 = pneg %p286
      %p293 = scmp.eq.s32.totalorder %s93, 3
      %p294 = por %p292, %p293
      %p295 = scmp.ne.s32.totalorder %s287, %s290
      %p296 = scmp.eq.s32.totalorder %s93, 0
      %p297 = por %p295, %p296
      %p298 = scmp.ne.s32.totalorder %s287, %s290
      %p299 = scmp.eq.s32.totalorder %s98, 3
      %p300 = por %p298, %p299
      %p301 = scmp.ne.s32.totalorder %s290, %s291
      %p302 = scmp.eq.s32.totalorder %s98, 0
      %p303 = por %p301, %p302
      %p304 = scmp.ne.s32.totalorder %s290, %s291
      %p305 = scmp.eq.s32.totalorder %s99, 3
      %p306 = por %p304, %p305
      %p308 = scmp.ne.s32.totalorder %s291, %s307
      %p309 = scmp.eq.s32.totalorder %s99, 0
      %p310 = por %p308, %p309
      %s311 = ssub.s32 %s101, %s108
      %p312 = scmp.eq.s32.totalorder %s311, 0
      %s314 = sadd.s32 %s313, 1
      %s315 = scalar_select %p312, %s313, %s314
      %p318 = pneg %p312
      %p319 = scmp.eq.s32.totalorder %s93, 3
      %p320 = por %p318, %p319
      %p321 = scmp.ne.s32.totalorder %s313, %s316
      %p322 = scmp.eq.s32.totalorder %s93, 0
      %p323 = por %p321, %p322
      %p324 = scmp.ne.s32.totalorder %s313, %s316
      %p325 = scmp.eq.s32.totalorder %s98, 3
      %p326 = por %p324, %p325
      %p327 = scmp.ne.s32.totalorder %s316, %s317
      %p328 = scmp.eq.s32.totalorder %s98, 0
      %p329 = por %p327, %p328
      %p330 = scmp.ne.s32.totalorder %s316, %s317
      %p331 = scmp.eq.s32.totalorder %s99, 3
      %p332 = por %p330, %p331
      %p334 = scmp.ne.s32.totalorder %s317, %s333
      %p335 = scmp.eq.s32.totalorder %s99, 0
      %p336 = por %p334, %p335
      %s337 = ssub.s32 %s101, %s108
      %p338 = scmp.eq.s32.totalorder %s337, 0
      %s340 = sadd.s32 %s339, 1
      %s341 = scalar_select %p338, %s339, %s340
      %p344 = pneg %p338
      %p345 = scmp.eq.s32.totalorder %s93, 3
      %p346 = por %p344, %p345
      %p347 = scmp.ne.s32.totalorder %s339, %s342
      %p348 = scmp.eq.s32.totalorder %s93, 0
      %p349 = por %p347, %p348
      %p350 = scmp.ne.s32.totalorder %s339, %s342
      %p351 = scmp.eq.s32.totalorder %s98, 3
      %p352 = por %p350, %p351
      %p353 = scmp.ne.s32.totalorder %s342, %s343
      %p354 = scmp.eq.s32.totalorder %s98, 0
      %p355 = por %p353, %p354
      %p356 = scmp.ne.s32.totalorder %s342, %s343
      %p357 = scmp.eq.s32.totalorder %s99, 3
      %p358 = por %p356, %p357
      %p360 = scmp.ne.s32.totalorder %s343, %s359
      %p361 = scmp.eq.s32.totalorder %s99, 0
      %p362 = por %p360, %p361
      %s363 = ssub.s32 %s101, %s108
      %p364 = scmp.eq.s32.totalorder %s363, 0
      %s366 = sadd.s32 %s365, 1
      %s367 = scalar_select %p364, %s365, %s366
      %p370 = pneg %p364
      %p371 = scmp.eq.s32.totalorder %s93, 3
      %p372 = por %p370, %p371
      %p373 = scmp.ne.s32.totalorder %s365, %s368
      %p374 = scmp.eq.s32.totalorder %s93, 0
      %p375 = por %p373, %p374
      %p376 = scmp.ne.s32.totalorder %s365, %s368
      %p377 = scmp.eq.s32.totalorder %s98, 3
      %p378 = por %p376, %p377
      %p379 = scmp.ne.s32.totalorder %s368, %s369
      %p380 = scmp.eq.s32.totalorder %s98, 0
      %p381 = por %p379, %p380
      %p382 = scmp.ne.s32.totalorder %s368, %s369
      %p383 = scmp.eq.s32.totalorder %s99, 3
      %p384 = por %p382, %p383
      %p386 = scmp.ne.s32.totalorder %s369, %s385
      %p387 = scmp.eq.s32.totalorder %s99, 0
      %p388 = por %p386, %p387
      %s389 = ssub.s32 %s101, %s108
      %p390 = scmp.eq.s32.totalorder %s389, 0
      %s392 = sadd.s32 %s391, 1
      %s393 = scalar_select %p390, %s391, %s392
      %p396 = pneg %p390
      %p397 = scmp.eq.s32.totalorder %s93, 3
      %p398 = por %p396, %p397
      %p399 = scmp.ne.s32.totalorder %s391, %s394
      %p400 = scmp.eq.s32.totalorder %s93, 0
      %p401 = por %p399, %p400
      %p402 = scmp.ne.s32.totalorder %s391, %s394
      %p403 = scmp.eq.s32.totalorder %s98, 3
      %p404 = por %p402, %p403
      %p405 = scmp.ne.s32.totalorder %s394, %s395
      %p406 = scmp.eq.s32.totalorder %s98, 0
      %p407 = por %p405, %p406
      %p408 = scmp.ne.s32.totalorder %s394, %s395
      %p409 = scmp.eq.s32.totalorder %s99, 3
      %p410 = por %p408, %p409
      %p412 = scmp.ne.s32.totalorder %s395, %s411
      %p413 = scmp.eq.s32.totalorder %s99, 0
      %p414 = por %p412, %p413
      %s415 = ssub.s32 %s101, %s108
      %p416 = scmp.eq.s32.totalorder %s415, 0
      %s418 = sadd.s32 %s417, 1
      %s419 = scalar_select %p416, %s417, %s418
      %p422 = pneg %p416
      %p423 = scmp.eq.s32.totalorder %s93, 3
      %p424 = por %p422, %p423
      %p425 = scmp.ne.s32.totalorder %s417, %s420
      %p426 = scmp.eq.s32.totalorder %s93, 0
      %p427 = por %p425, %p426
      %p428 = scmp.ne.s32.totalorder %s417, %s420
      %p429 = scmp.eq.s32.totalorder %s98, 3
      %p430 = por %p428, %p429
      %p431 = scmp.ne.s32.totalorder %s420, %s421
      %p432 = scmp.eq.s32.totalorder %s98, 0
      %p433 = por %p431, %p432
      %p434 = scmp.ne.s32.totalorder %s420, %s421
      %p435 = scmp.eq.s32.totalorder %s99, 3
      %p436 = por %p434, %p435
      %p438 = scmp.ne.s32.totalorder %s421, %s437
      %p439 = scmp.eq.s32.totalorder %s99, 0
      %p440 = por %p438, %p439
      %s441 = ssub.s32 %s101, %s108
      %p442 = scmp.eq.s32.totalorder %s441, 0
      %s444 = sadd.s32 %s443, 1
      %s445 = scalar_select %p442, %s443, %s444
      %p448 = pneg %p442
      %p449 = scmp.eq.s32.totalorder %s93, 3
      %p450 = por %p448, %p449
      %p451 = scmp.ne.s32.totalorder %s443, %s446
      %p452 = scmp.eq.s32.totalorder %s93, 0
      %p453 = por %p451, %p452
      %p454 = scmp.ne.s32.totalorder %s443, %s446
      %p455 = scmp.eq.s32.totalorder %s98, 3
      %p456 = por %p454, %p455
      %p457 = scmp.ne.s32.totalorder %s446, %s447
      %p458 = scmp.eq.s32.totalorder %s98, 0
      %p459 = por %p457, %p458
      %p460 = scmp.ne.s32.totalorder %s446, %s447
      %p461 = scmp.eq.s32.totalorder %s99, 3
      %p462 = por %p460, %p461
      %p464 = scmp.ne.s32.totalorder %s447, %s463
      %p465 = scmp.eq.s32.totalorder %s99, 0
      %p466 = por %p464, %p465
      %s467 = ssub.s32 %s101, %s108
      %p468 = scmp.eq.s32.totalorder %s467, 0
      %s470 = sadd.s32 %s469, 1
      %s471 = scalar_select %p468, %s469, %s470
      %p474 = pneg %p468
      %p475 = scmp.eq.s32.totalorder %s93, 3
      %p476 = por %p474, %p475
      %p477 = scmp.ne.s32.totalorder %s469, %s472
      %p478 = scmp.eq.s32.totalorder %s93, 0
      %p479 = por %p477, %p478
      %p480 = scmp.ne.s32.totalorder %s469, %s472
      %p481 = scmp.eq.s32.totalorder %s98, 3
      %p482 = por %p480, %p481
      %p483 = scmp.ne.s32.totalorder %s472, %s473
      %p484 = scmp.eq.s32.totalorder %s98, 0
      %p485 = por %p483, %p484
      %p486 = scmp.ne.s32.totalorder %s472, %s473
      %p487 = scmp.eq.s32.totalorder %s99, 3
      %p488 = por %p486, %p487
      %p490 = scmp.ne.s32.totalorder %s473, %s489
      %p491 = scmp.eq.s32.totalorder %s99, 0
      %p492 = por %p490, %p491
      %s493 = ssub.s32 %s101, %s108
      %p494 = scmp.eq.s32.totalorder %s493, 0
      %s496 = sadd.s32 %s495, 1
      %s497 = scalar_select %p494, %s495, %s496
      %p500 = pneg %p494
      %p501 = scmp.eq.s32.totalorder %s93, 3
      %p502 = por %p500, %p501
      %p503 = scmp.ne.s32.totalorder %s495, %s498
      %p504 = scmp.eq.s32.totalorder %s93, 0
      %p505 = por %p503, %p504
      %p506 = scmp.ne.s32.totalorder %s495, %s498
      %p507 = scmp.eq.s32.totalorder %s98, 3
      %p508 = por %p506, %p507
      %p509 = scmp.ne.s32.totalorder %s498, %s499
      %p510 = scmp.eq.s32.totalorder %s98, 0
      %p511 = por %p509, %p510
      %p512 = scmp.ne.s32.totalorder %s498, %s499
      %p513 = scmp.eq.s32.totalorder %s99, 3
      %p514 = por %p512, %p513
      %p516 = scmp.ne.s32.totalorder %s499, %s515
      %p517 = scmp.eq.s32.totalorder %s99, 0
      %p518 = por %p516, %p517
      %s519 = ssub.s32 %s101, %s108
      %p520 = scmp.eq.s32.totalorder %s519, 0
      %s522 = sadd.s32 %s521, 1
      %s523 = scalar_select %p520, %s521, %s522
      %p526 = pneg %p520
      %p527 = scmp.eq.s32.totalorder %s93, 3
      %p528 = por %p526, %p527
      %p529 = scmp.ne.s32.totalorder %s521, %s524
      %p530 = scmp.eq.s32.totalorder %s93, 0
      %p531 = por %p529, %p530
      %p532 = scmp.ne.s32.totalorder %s521, %s524
      %p533 = scmp.eq.s32.totalorder %s98, 3
      %p534 = por %p532, %p533
      %p535 = scmp.ne.s32.totalorder %s524, %s525
      %p536 = scmp.eq.s32.totalorder %s98, 0
      %p537 = por %p535, %p536
      %p538 = scmp.ne.s32.totalorder %s524, %s525
      %p539 = scmp.eq.s32.totalorder %s99, 3
      %p540 = por %p538, %p539
      %p542 = scmp.ne.s32.totalorder %s525, %s541
      %p543 = scmp.eq.s32.totalorder %s99, 0
      %p544 = por %p542, %p543
      %s545 = ssub.s32 %s101, %s108
      %p546 = scmp.eq.s32.totalorder %s545, 0
      %s548 = sadd.s32 %s547, 1
      %s549 = scalar_select %p546, %s547, %s548
      %p552 = pneg %p546
      %p553 = scmp.eq.s32.totalorder %s93, 3
      %p554 = por %p552, %p553
      %p555 = scmp.ne.s32.totalorder %s547, %s550
      %p556 = scmp.eq.s32.totalorder %s93, 0
      %p557 = por %p555, %p556
      %p558 = scmp.ne.s32.totalorder %s547, %s550
      %p559 = scmp.eq.s32.totalorder %s98, 3
      %p560 = por %p558, %p559
      %p561 = scmp.ne.s32.totalorder %s550, %s551
      %p562 = scmp.eq.s32.totalorder %s98, 0
      %p563 = por %p561, %p562
      %p564 = scmp.ne.s32.totalorder %s550, %s551
      %p565 = scmp.eq.s32.totalorder %s99, 3
      %p566 = por %p564, %p565
      %p568 = scmp.ne.s32.totalorder %s551, %s567
      %p569 = scmp.eq.s32.totalorder %s99, 0
      %p570 = por %p568, %p569
      %s571 = ssub.s32 %s101, %s108
      %p572 = scmp.eq.s32.totalorder %s571, 0
      %s574 = sadd.s32 %s573, 1
      %s575 = scalar_select %p572, %s573, %s574
      %p578 = pneg %p572
      %p579 = scmp.eq.s32.totalorder %s93, 3
      %p580 = por %p578, %p579
      %p581 = scmp.ne.s32.totalorder %s573, %s576
      %p582 = scmp.eq.s32.totalorder %s93, 0
      %p583 = por %p581, %p582
      %p584 = scmp.ne.s32.totalorder %s573, %s576
      %p585 = scmp.eq.s32.totalorder %s98, 3
      %p586 = por %p584, %p585
      %p587 = scmp.ne.s32.totalorder %s576, %s577
      %p588 = scmp.eq.s32.totalorder %s98, 0
      %p589 = por %p587, %p588
      %p590 = scmp.ne.s32.totalorder %s576, %s577
      %p591 = scmp.eq.s32.totalorder %s99, 3
      %p592 = por %p590, %p591
      %p594 = scmp.ne.s32.totalorder %s577, %s593
      %p595 = scmp.eq.s32.totalorder %s99, 0
      %p596 = por %p594, %p595
      %s597 = ssub.s32 %s101, %s108
      %p598 = scmp.eq.s32.totalorder %s597, 0
      %s600 = sadd.s32 %s599, 1
      %s601 = scalar_select %p598, %s599, %s600
      %p604 = pneg %p598
      %p605 = scmp.eq.s32.totalorder %s93, 3
      %p606 = por %p604, %p605
      %p607 = scmp.ne.s32.totalorder %s599, %s602
      %p608 = scmp.eq.s32.totalorder %s93, 0
      %p609 = por %p607, %p608
      %p610 = scmp.ne.s32.totalorder %s599, %s602
      %p611 = scmp.eq.s32.totalorder %s98, 3
      %p612 = por %p610, %p611
      %p613 = scmp.ne.s32.totalorder %s602, %s603
      %p614 = scmp.eq.s32.totalorder %s98, 0
      %p615 = por %p613, %p614
      %p616 = scmp.ne.s32.totalorder %s602, %s603
      %p617 = scmp.eq.s32.totalorder %s99, 3
      %p618 = por %p616, %p617
      %p620 = scmp.ne.s32.totalorder %s603, %s619
      %p621 = scmp.eq.s32.totalorder %s99, 0
      %p622 = por %p620, %p621
      %s623 = ssub.s32 %s101, %s108
      %p624 = scmp.eq.s32.totalorder %s623, 0
      %s626 = sadd.s32 %s625, 1
      %s627 = scalar_select %p624, %s625, %s626
      %p630 = pneg %p624
      %p631 = scmp.eq.s32.totalorder %s93, 3
      %p632 = por %p630, %p631
      %p633 = scmp.ne.s32.totalorder %s625, %s628
      %p634 = scmp.eq.s32.totalorder %s93, 0
      %p635 = por %p633, %p634
      %p636 = scmp.ne.s32.totalorder %s625, %s628
      %p637 = scmp.eq.s32.totalorder %s98, 3
      %p638 = por %p636, %p637
      %p639 = scmp.ne.s32.totalorder %s628, %s629
      %p640 = scmp.eq.s32.totalorder %s98, 0
      %p641 = por %p639, %p640
      %p642 = scmp.ne.s32.totalorder %s628, %s629
      %p643 = scmp.eq.s32.totalorder %s99, 3
      %p644 = por %p642, %p643
      %p646 = scmp.ne.s32.totalorder %s629, %s645
      %p647 = scmp.eq.s32.totalorder %s99, 0
      %p648 = por %p646, %p647
      %s649 = ssub.s32 %s101, %s108
      %p650 = scmp.eq.s32.totalorder %s649, 0
      %s652 = sadd.s32 %s651, 1
      %s653 = scalar_select %p650, %s651, %s652
      %p656 = pneg %p650
      %p657 = scmp.eq.s32.totalorder %s93, 3
      %p658 = por %p656, %p657
      %p659 = scmp.ne.s32.totalorder %s651, %s654
      %p660 = scmp.eq.s32.totalorder %s93, 0
      %p661 = por %p659, %p660
      %p662 = scmp.ne.s32.totalorder %s651, %s654
      %p663 = scmp.eq.s32.totalorder %s98, 3
      %p664 = por %p662, %p663
      %p665 = scmp.ne.s32.totalorder %s654, %s655
      %p666 = scmp.eq.s32.totalorder %s98, 0
      %p667 = por %p665, %p666
      %p668 = scmp.ne.s32.totalorder %s654, %s655
      %p669 = scmp.eq.s32.totalorder %s99, 3
      %p670 = por %p668, %p669
      %p672 = scmp.ne.s32.totalorder %s655, %s671
      %p673 = scmp.eq.s32.totalorder %s99, 0
      %p674 = por %p672, %p673
      %s675 = ssub.s32 %s101, %s108
      %p676 = scmp.eq.s32.totalorder %s675, 0
      %s678 = sadd.s32 %s677, 1
      %s679 = scalar_select %p676, %s677, %s678
      %p682 = pneg %p676
      %p683 = scmp.eq.s32.totalorder %s93, 3
      %p684 = por %p682, %p683
      %p685 = scmp.ne.s32.totalorder %s677, %s680
      %p686 = scmp.eq.s32.totalorder %s93, 0
      %p687 = por %p685, %p686
      %p688 = scmp.ne.s32.totalorder %s677, %s680
      %p689 = scmp.eq.s32.totalorder %s98, 3
      %p690 = por %p688, %p689
      %p691 = scmp.ne.s32.totalorder %s680, %s681
      %p692 = scmp.eq.s32.totalorder %s98, 0
      %p693 = por %p691, %p692
      %p694 = scmp.ne.s32.totalorder %s680, %s681
      %p695 = scmp.eq.s32.totalorder %s99, 3
      %p696 = por %p694, %p695
      %p698 = scmp.ne.s32.totalorder %s681, %s697
      %p699 = scmp.eq.s32.totalorder %s99, 0
      %p700 = por %p698, %p699
      %s701 = ssub.s32 %s101, %s108
      %p702 = scmp.eq.s32.totalorder %s701, 0
      %s704 = sadd.s32 %s703, 1
      %s705 = scalar_select %p702, %s703, %s704
      %p708 = pneg %p702
      %p709 = scmp.eq.s32.totalorder %s93, 3
      %p710 = por %p708, %p709
      %p711 = scmp.ne.s32.totalorder %s703, %s706
      %p712 = scmp.eq.s32.totalorder %s93, 0
      %p713 = por %p711, %p712
      %p714 = scmp.ne.s32.totalorder %s703, %s706
      %p715 = scmp.eq.s32.totalorder %s98, 3
      %p716 = por %p714, %p715
      %p717 = scmp.ne.s32.totalorder %s706, %s707
      %p718 = scmp.eq.s32.totalorder %s98, 0
      %p719 = por %p717, %p718
      %p720 = scmp.ne.s32.totalorder %s706, %s707
      %p721 = scmp.eq.s32.totalorder %s99, 3
      %p722 = por %p720, %p721
      %p724 = scmp.ne.s32.totalorder %s707, %s723
      %p725 = scmp.eq.s32.totalorder %s99, 0
      %p726 = por %p724, %p725
      %s727 = ssub.s32 %s101, %s108
      %p728 = scmp.eq.s32.totalorder %s727, 0
      %s730 = sadd.s32 %s729, 1
      %s731 = scalar_select %p728, %s729, %s730
      %p734 = pneg %p728
      %p735 = scmp.eq.s32.totalorder %s93, 3
      %p736 = por %p734, %p735
      %p737 = scmp.ne.s32.totalorder %s729, %s732
      %p738 = scmp.eq.s32.totalorder %s93, 0
      %p739 = por %p737, %p738
      %p740 = scmp.ne.s32.totalorder %s729, %s732
      %p741 = scmp.eq.s32.totalorder %s98, 3
      %p742 = por %p740, %p741
      %p743 = scmp.ne.s32.totalorder %s732, %s733
      %p744 = scmp.eq.s32.totalorder %s98, 0
      %p745 = por %p743, %p744
      %p746 = scmp.ne.s32.totalorder %s732, %s733
      %p747 = scmp.eq.s32.totalorder %s99, 3
      %p748 = por %p746, %p747
      %p750 = scmp.ne.s32.totalorder %s733, %s749
      %p751 = scmp.eq.s32.totalorder %s99, 0
      %p752 = por %p750, %p751
      %s753 = ssub.s32 %s101, %s108
      %p754 = scmp.eq.s32.totalorder %s753, 0
      %s756 = sadd.s32 %s755, 1
      %s757 = scalar_select %p754, %s755, %s756
      %p760 = pneg %p754
      %p761 = scmp.eq.s32.totalorder %s93, 3
      %p762 = por %p760, %p761
      %p763 = scmp.ne.s32.totalorder %s755, %s758
      %p764 = scmp.eq.s32.totalorder %s93, 0
      %p765 = por %p763, %p764
      %p766 = scmp.ne.s32.totalorder %s755, %s758
      %p767 = scmp.eq.s32.totalorder %s98, 3
      %p768 = por %p766, %p767
      %p769 = scmp.ne.s32.totalorder %s758, %s759
      %p770 = scmp.eq.s32.totalorder %s98, 0
      %p771 = por %p769, %p770
      %p772 = scmp.ne.s32.totalorder %s758, %s759
      %p773 = scmp.eq.s32.totalorder %s99, 3
      %p774 = por %p772, %p773
      %p776 = scmp.ne.s32.totalorder %s759, %s775
      %p777 = scmp.eq.s32.totalorder %s99, 0
      %p778 = por %p776, %p777
      %s779 = ssub.s32 %s101, %s108
      %p780 = scmp.eq.s32.totalorder %s779, 0
      %s782 = sadd.s32 %s781, 1
      %s783 = scalar_select %p780, %s781, %s782
      %p786 = pneg %p780
      %p787 = scmp.eq.s32.totalorder %s93, 3
      %p788 = por %p786, %p787
      %p789 = scmp.ne.s32.totalorder %s781, %s784
      %p790 = scmp.eq.s32.totalorder %s93, 0
      %p791 = por %p789, %p790
      %p792 = scmp.ne.s32.totalorder %s781, %s784
      %p793 = scmp.eq.s32.totalorder %s98, 3
      %p794 = por %p792, %p793
      %p795 = scmp.ne.s32.totalorder %s784, %s785
      %p796 = scmp.eq.s32.totalorder %s98, 0
      %p797 = por %p795, %p796
      %p798 = scmp.ne.s32.totalorder %s784, %s785
      %p799 = scmp.eq.s32.totalorder %s99, 3
      %p800 = por %p798, %p799
      %p802 = scmp.ne.s32.totalorder %s785, %s801
      %p803 = scmp.eq.s32.totalorder %s99, 0
      %p804 = por %p802, %p803
      %s805 = ssub.s32 %s101, %s108
      %p806 = scmp.eq.s32.totalorder %s805, 0
      %s808 = sadd.s32 %s807, 1
      %s809 = scalar_select %p806, %s807, %s808
      %p812 = pneg %p806
      %p813 = scmp.eq.s32.totalorder %s93, 3
      %p814 = por %p812, %p813
      %p815 = scmp.ne.s32.totalorder %s807, %s810
      %p816 = scmp.eq.s32.totalorder %s93, 0
      %p817 = por %p815, %p816
      %p818 = scmp.ne.s32.totalorder %s807, %s810
      %p819 = scmp.eq.s32.totalorder %s98, 3
      %p820 = por %p818, %p819
      %p821 = scmp.ne.s32.totalorder %s810, %s811
      %p822 = scmp.eq.s32.totalorder %s98, 0
      %p823 = por %p821, %p822
      %p824 = scmp.ne.s32.totalorder %s810, %s811
      %p825 = scmp.eq.s32.totalorder %s99, 3
      %p826 = por %p824, %p825
      %p828 = scmp.ne.s32.totalorder %s811, %s827
      %p829 = scmp.eq.s32.totalorder %s99, 0
      %p830 = por %p828, %p829
      %s831 = ssub.s32 %s101, %s108
      %p832 = scmp.eq.s32.totalorder %s831, 0
      %s834 = sadd.s32 %s833, 1
      %s835 = scalar_select %p832, %s833, %s834
      %p838 = pneg %p832
      %p839 = scmp.eq.s32.totalorder %s93, 3
      %p840 = por %p838, %p839
      %p841 = scmp.ne.s32.totalorder %s833, %s836
      %p842 = scmp.eq.s32.totalorder %s93, 0
      %p843 = por %p841, %p842
      %p844 = scmp.ne.s32.totalorder %s833, %s836
      %p845 = scmp.eq.s32.totalorder %s98, 3
      %p846 = por %p844, %p845
      %p847 = scmp.ne.s32.totalorder %s836, %s837
      %p848 = scmp.eq.s32.totalorder %s98, 0
      %p849 = por %p847, %p848
      %p850 = scmp.ne.s32.totalorder %s836, %s837
      %p851 = scmp.eq.s32.totalorder %s99, 3
      %p852 = por %p850, %p851
      %p854 = scmp.ne.s32.totalorder %s837, %s853
      %p855 = scmp.eq.s32.totalorder %s99, 0
      %p856 = por %p854, %p855
      %s857 = ssub.s32 %s101, %s108
      %p858 = scmp.eq.s32.totalorder %s857, 0
      %s860 = sadd.s32 %s859, 1
      %s861 = scalar_select %p858, %s859, %s860
      %p864 = pneg %p858
      %p865 = scmp.eq.s32.totalorder %s93, 3
      %p866 = por %p864, %p865
      %p867 = scmp.ne.s32.totalorder %s859, %s862
      %p868 = scmp.eq.s32.totalorder %s93, 0
      %p869 = por %p867, %p868
      %p870 = scmp.ne.s32.totalorder %s859, %s862
      %p871 = scmp.eq.s32.totalorder %s98, 3
      %p872 = por %p870, %p871
      %p873 = scmp.ne.s32.totalorder %s862, %s863
      %p874 = scmp.eq.s32.totalorder %s98, 0
      %p875 = por %p873, %p874
      %p876 = scmp.ne.s32.totalorder %s862, %s863
      %p877 = scmp.eq.s32.totalorder %s99, 3
      %p878 = por %p876, %p877
      %p880 = scmp.ne.s32.totalorder %s863, %s879
      %p881 = scmp.eq.s32.totalorder %s99, 0
      %p882 = por %p880, %p881
      %s884 = sadd.s32 %s883, 1
      %p887 = scmp.eq.s32.totalorder %s93, 3
      %p888 = scmp.ne.s32.totalorder %s883, %s885
      %p889 = scmp.eq.s32.totalorder %s93, 0
      %p890 = por %p888, %p889
      %p891 = scmp.ne.s32.totalorder %s883, %s885
      %p892 = scmp.eq.s32.totalorder %s98, 3
      %p893 = por %p891, %p892
      %p894 = scmp.ne.s32.totalorder %s885, %s886
      %p895 = scmp.eq.s32.totalorder %s98, 0
      %p896 = por %p894, %p895
      %p897 = scmp.ne.s32.totalorder %s885, %s886
      %p898 = scmp.eq.s32.totalorder %s99, 3
      %p899 = por %p897, %p898
      %p901 = scmp.ne.s32.totalorder %s886, %s900
      %p902 = scmp.eq.s32.totalorder %s99, 0
      %p903 = por %p901, %p902
      %s905 = sadd.s32 %s904, 1
      %p908 = scmp.eq.s32.totalorder %s93, 3
      %p909 = scmp.ne.s32.totalorder %s904, %s906
      %p910 = scmp.eq.s32.totalorder %s93, 0
      %p911 = por %p909, %p910
      %p912 = scmp.ne.s32.totalorder %s904, %s906
      %p913 = scmp.eq.s32.totalorder %s98, 3
      %p914 = por %p912, %p913
      %p915 = scmp.ne.s32.totalorder %s906, %s907
      %p916 = scmp.eq.s32.totalorder %s98, 0
      %p917 = por %p915, %p916
      %p918 = scmp.ne.s32.totalorder %s906, %s907
      %p919 = scmp.eq.s32.totalorder %s99, 3
      %p920 = por %p918, %p919
      %p922 = scmp.ne.s32.totalorder %s907, %s921
      %p923 = scmp.eq.s32.totalorder %s99, 0
      %p924 = por %p922, %p923
      %s925 = ssub.s32 %s100, %s112
      %p926 = scmp.eq.s32.totalorder %s925, 0
      %s928 = sadd.s32 %s927, 1
      %s929 = scalar_select %p926, %s927, %s928
      %p932 = pneg %p926
      %p933 = scmp.eq.s32.totalorder %s93, 3
      %p934 = por %p932, %p933
      %p935 = scmp.ne.s32.totalorder %s927, %s930
      %p936 = scmp.eq.s32.totalorder %s93, 0
      %p937 = por %p935, %p936
      %p938 = scmp.ne.s32.totalorder %s927, %s930
      %p939 = scmp.eq.s32.totalorder %s98, 3
      %p940 = por %p938, %p939
      %p941 = scmp.ne.s32.totalorder %s930, %s931
      %p942 = scmp.eq.s32.totalorder %s98, 0
      %p943 = por %p941, %p942
      %p944 = scmp.ne.s32.totalorder %s930, %s931
      %p945 = scmp.eq.s32.totalorder %s99, 3
      %p946 = por %p944, %p945
      %p948 = scmp.ne.s32.totalorder %s931, %s947
      %p949 = scmp.eq.s32.totalorder %s99, 0
      %p950 = por %p948, %p949
      %p951 = scmp.le.s32.totalorder 1, %s93
      %p952 = scmp.lt.s32.totalorder %s93, 5
      %p953 = pnand %p951, %p952
      %p954 = pneg %p953
      // Predicated region
      $region9: #{tpu_custom_call.1} parent=5 // pred_check
        _
      $region10: #{tpu_custom_call.1} parent=5 // pred_check_branch
        %956 = sbr.rel (%p953) target = $region12
      $region11: #{tpu_custom_call.1} parent=5 // pred_region
        %s957 = ssub.s32 %s93, 1
        // Predicated region
        $region13: #{tpu_custom_call.1} parent=11 // pred_check
          %p958 = pneg %p178
        $region14: #{tpu_custom_call.1} parent=11 // pred_check_branch
          %960 = sbr.rel (%p958) target = $region16
        $region15: #{tpu_custom_call.1} parent=11 // pred_region
          _
        $region16: #{tpu_custom_call.1} parent=11 // pred_fallthru
          _
        // Predicated region
        $region17: #{tpu_custom_call.1} parent=11 // pred_check
          %p961 = pneg %p199
        $region18: #{tpu_custom_call.1} parent=11 // pred_check_branch
          %963 = sbr.rel (%p961) target = $region20
        $region19: #{tpu_custom_call.1} parent=11 // pred_region
          _
        $region20: #{tpu_custom_call.1} parent=11 // pred_fallthru
          _
        // Predicated region
        $region21: #{tpu_custom_call.1} parent=11 // pred_check
          %p964 = pneg %p896
        $region22: #{tpu_custom_call.1} parent=11 // pred_check_branch
          %966 = sbr.rel (%p964) target = $region24
        $region23: #{tpu_custom_call.1} parent=11 // pred_region
          %968 = vsyncadd [#allocation22], 0
          %s970 = sshll.u32 %s61, 4
          %s971 = int_to_ptr.hbm [resolvable:$true] %s970
          %s972 = sshll.u32 [#allocation21], 4
          %s973 = int_to_ptr.vmem [resolvable:$true] %s972
          %975 = dma.hbm_to_vmem [thread:$0]  %s971, 16, %s973, [#allocation22]
        $region24: #{tpu_custom_call.1} parent=11 // pred_fallthru
          _
        // Predicated region
        $region25: #{tpu_custom_call.1} parent=11 // pred_check
          %p976 = pneg %p917
        $region26: #{tpu_custom_call.1} parent=11 // pred_check_branch
          %978 = sbr.rel (%p976) target = $region28
        $region27: #{tpu_custom_call.1} parent=11 // pred_region
          %980 = vsyncadd [#allocation22], 0
          %s982 = sshll.u32 %s63, 4
          %s983 = int_to_ptr.hbm [resolvable:$true] %s982
          %s984 = sshll.u32 [#allocation23], 4
          %s985 = int_to_ptr.vmem [resolvable:$true] %s984
          %987 = dma.hbm_to_vmem [thread:$0]  %s983, 16, %s985, [#allocation22]
        $region28: #{tpu_custom_call.1} parent=11 // pred_fallthru
          _
      $region12: #{tpu_custom_call.1} parent=5 // pred_fallthru
        _
      %p988 = scmp.lt.s32.totalorder %s93, 4
      // Predicated region
      $region29: #{tpu_custom_call.1} parent=5 // pred_check
        %p989 = pneg %p988
      $region30: #{tpu_custom_call.1} parent=5 // pred_check_branch
        %991 = sbr.rel (%p989) target = $region32
      $region31: #{tpu_custom_call.1} parent=5 // pred_region
        // Predicated region
        $region33: #{tpu_custom_call.1} parent=31 // pred_check
          %p992 = pneg %p125
        $region34: #{tpu_custom_call.1} parent=31 // pred_check_branch
          %994 = sbr.rel (%p992) target = $region36
        $region35: #{tpu_custom_call.1} parent=31 // pred_region
          %p995 = scmp.lt.s32.totalorder %s100, 1
          %s996 = scalar_select %p995, %s100, 1
          %s997 = smul.addr %s996, 8
          %s998 = scalar_lea.vmem %s1, %s997
        $region36: #{tpu_custom_call.1} parent=31 // pred_fallthru
          _
        // Predicated region
        $region37: #{tpu_custom_call.1} parent=31 // pred_check
          %p999 = pneg %p151
        $region38: #{tpu_custom_call.1} parent=31 // pred_check_branch
          %1001 = sbr.rel (%p999) target = $region40
        $region39: #{tpu_custom_call.1} parent=31 // pred_region
          %p1002 = scmp.lt.s32.totalorder %s100, 1
          %s1003 = scalar_select %p1002, %s100, 1
          %s1004 = smul.addr %s1003, 2
          %s1005 = smul.addr %s1004, 8
          %s1006 = scalar_lea.vmem %s3, %s1005
        $region40: #{tpu_custom_call.1} parent=31 // pred_fallthru
          _
        // Predicated region
        $region41: #{tpu_custom_call.1} parent=31 // pred_check
          %p1007 = pneg %p219
        $region42: #{tpu_custom_call.1} parent=31 // pred_check_branch
          %1009 = sbr.rel (%p1007) target = $region44
        $region43: #{tpu_custom_call.1} parent=31 // pred_region
          %p1010 = scmp.lt.s32.totalorder %s101, 1
          %s1011 = scalar_select %p1010, %s101, 1
          %s1012 = smul.addr %s1011, 4
          %s1013 = smul.addr %s1012, 8
          %s1014 = scalar_lea.vmem %s9, %s1013
        $region44: #{tpu_custom_call.1} parent=31 // pred_fallthru
          _
        // Predicated region
        $region45: #{tpu_custom_call.1} parent=31 // pred_check
          %p1015 = pneg %p245
        $region46: #{tpu_custom_call.1} parent=31 // pred_check_branch
          %1017 = sbr.rel (%p1015) target = $region48
        $region47: #{tpu_custom_call.1} parent=31 // pred_region
          %p1018 = scmp.lt.s32.totalorder %s101, 1
          %s1019 = scalar_select %p1018, %s101, 1
          %s1020 = scalar_lea.vmem %s11, %s1019
        $region48: #{tpu_custom_call.1} parent=31 // pred_fallthru
          _
        // Predicated region
        $region49: #{tpu_custom_call.1} parent=31 // pred_check
          %p1021 = pneg %p271
        $region50: #{tpu_custom_call.1} parent=31 // pred_check_branch
          %1023 = sbr.rel (%p1021) target = $region52
        $region51: #{tpu_custom_call.1} parent=31 // pred_region
          %p1024 = scmp.lt.s32.totalorder %s101, 1
          %s1025 = scalar_select %p1024, %s101, 1
          %s1026 = smul.addr %s1025, 4
          %s1027 = smul.addr %s1026, 8
          %s1028 = scalar_lea.vmem %s13, %s1027
        $region52: #{tpu_custom_call.1} parent=31 // pred_fallthru
          _
        // Predicated region
        $region53: #{tpu_custom_call.1} parent=31 // pred_check
          %p1029 = pneg %p297
        $region54: #{tpu_custom_call.1} parent=31 // pred_check_branch
          %1031 = sbr.rel (%p1029) target = $region56
        $region55: #{tpu_custom_call.1} parent=31 // pred_region
          %p1032 = scmp.lt.s32.totalorder %s101, 1
          %s1033 = scalar_select %p1032, %s101, 1
          %s1034 = scalar_lea.vmem %s15, %s1033
        $region56: #{tpu_custom_call.1} parent=31 // pred_fallthru
          _
        // Predicated region
        $region57: #{tpu_custom_call.1} parent=31 // pred_check
          %p1035 = pneg %p323
        $region58: #{tpu_custom_call.1} parent=31 // pred_check_branch
          %1037 = sbr.rel (%p1035) target = $region60
        $region59: #{tpu_custom_call.1} parent=31 // pred_region
          %p1038 = scmp.lt.s32.totalorder %s101, 1
          %s1039 = scalar_select %p1038, %s101, 1
          %s1040 = smul.addr %s1039, 4
          %s1041 = smul.addr %s1040, 8
          %s1042 = scalar_lea.vmem %s17, %s1041
        $region60: #{tpu_custom_call.1} parent=31 // pred_fallthru
          _
        // Predicated region
        $region61: #{tpu_custom_call.1} parent=31 // pred_check
          %p1043 = pneg %p349
        $region62: #{tpu_custom_call.1} parent=31 // pred_check_branch
          %1045 = sbr.rel (%p1043) target = $region64
        $region63: #{tpu_custom_call.1} parent=31 // pred_region
          %p1046 = scmp.lt.s32.totalorder %s101, 1
          %s1047 = scalar_select %p1046, %s101, 1
          %s1048 = scalar_lea.vmem %s19, %s1047
        $region64: #{tpu_custom_call.1} parent=31 // pred_fallthru
          _
        // Predicated region
        $region65: #{tpu_custom_call.1} parent=31 // pred_check
          %p1049 = pneg %p375
        $region66: #{tpu_custom_call.1} parent=31 // pred_check_branch
          %1051 = sbr.rel (%p1049) target = $region68
        $region67: #{tpu_custom_call.1} parent=31 // pred_region
          %s1052 = sand.u32 %s365, 1
          %s1053 = scalar_lea.sflag [#allocation4], %s1052
          %s1054 = sand.u32 %s365, 1
          %s1055 = smul.addr %s1054, 32
          %s1056 = scalar_lea.vmem [#allocation3], %s1055
          %1058 = vsyncadd %s1053, 0
          %s1059 = smul.addr %s101, 4
          %s1060 = smul.addr %s1059, 8
          %s1061 = scalar_lea.hbm %s21, %s1060
          %s1062 = sshll.u32 %s1061, 4
          %s1063 = int_to_ptr.hbm [resolvable:$true] %s1062
          %s1064 = sshll.u32 %s1056, 4
          %s1065 = int_to_ptr.vmem [resolvable:$true] %s1064
          %1070 = dma.hbm_to_vmem [thread:$0]  %s1063, 512, %s1065, %s1053, 128, 128, 8
        $region68: #{tpu_custom_call.1} parent=31 // pred_fallthru
          _
        // Predicated region
        $region69: #{tpu_custom_call.1} parent=31 // pred_check
          %p1071 = pneg %p401
        $region70: #{tpu_custom_call.1} parent=31 // pred_check_branch
          %1073 = sbr.rel (%p1071) target = $region72
        $region71: #{tpu_custom_call.1} parent=31 // pred_region
          %p1074 = scmp.lt.s32.totalorder %s101, 1
          %s1075 = scalar_select %p1074, %s101, 1
          %s1076 = scalar_lea.vmem %s23, %s1075
        $region72: #{tpu_custom_call.1} parent=31 // pred_fallthru
          _
        // Predicated region
        $region73: #{tpu_custom_call.1} parent=31 // pred_check
          %p1077 = pneg %p427
        $region74: #{tpu_custom_call.1} parent=31 // pred_check_branch
          %1079 = sbr.rel (%p1077) target = $region76
        $region75: #{tpu_custom_call.1} parent=31 // pred_region
          %p1080 = scmp.lt.s32.totalorder %s101, 1
          %s1081 = scalar_select %p1080, %s101, 1
          %s1082 = scalar_lea.vmem %s25, %s1081
        $region76: #{tpu_custom_call.1} parent=31 // pred_fallthru
          _
        // Predicated region
        $region77: #{tpu_custom_call.1} parent=31 // pred_check
          %p1083 = pneg %p453
        $region78: #{tpu_custom_call.1} parent=31 // pred_check_branch
          %1085 = sbr.rel (%p1083) target = $region80
        $region79: #{tpu_custom_call.1} parent=31 // pred_region
          %p1086 = scmp.lt.s32.totalorder %s101, 1
          %s1087 = scalar_select %p1086, %s101, 1
          %s1088 = scalar_lea.vmem %s27, %s1087
        $region80: #{tpu_custom_call.1} parent=31 // pred_fallthru
          _
        // Predicated region
        $region81: #{tpu_custom_call.1} parent=31 // pred_check
          %p1089 = pneg %p479
        $region82: #{tpu_custom_call.1} parent=31 // pred_check_branch
          %1091 = sbr.rel (%p1089) target = $region84
        $region83: #{tpu_custom_call.1} parent=31 // pred_region
          %s1092 = sand.u32 %s93, 1
          %s1093 = scalar_lea.sflag [#allocation7], %s1092
          %s1094 = sand.u32 %s469, 1
          %s1095 = smul.addr %s1094, 32
          %s1096 = scalar_lea.vmem [#allocation6], %s1095
          %1098 = vsyncadd %s1093, 0
          %s1099 = smul.addr %s101, 4
          %s1100 = smul.addr %s1099, 8
          %s1101 = scalar_lea.hbm %s29, %s1100
          %s1102 = sshll.u32 %s1101, 4
          %s1103 = int_to_ptr.hbm [resolvable:$true] %s1102
          %s1104 = sshll.u32 %s1096, 4
          %s1105 = int_to_ptr.vmem [resolvable:$true] %s1104
          %1110 = dma.hbm_to_vmem [thread:$0]  %s1103, 512, %s1105, %s1093, 128, 128, 8
        $region84: #{tpu_custom_call.1} parent=31 // pred_fallthru
          _
        // Predicated region
        $region85: #{tpu_custom_call.1} parent=31 // pred_check
          %p1111 = pneg %p505
        $region86: #{tpu_custom_call.1} parent=31 // pred_check_branch
          %1113 = sbr.rel (%p1111) target = $region88
        $region87: #{tpu_custom_call.1} parent=31 // pred_region
          %p1114 = scmp.lt.s32.totalorder %s101, 1
          %s1115 = scalar_select %p1114, %s101, 1
          %s1116 = scalar_lea.vmem %s31, %s1115
        $region88: #{tpu_custom_call.1} parent=31 // pred_fallthru
          _
        // Predicated region
        $region89: #{tpu_custom_call.1} parent=31 // pred_check
          %p1117 = pneg %p531
        $region90: #{tpu_custom_call.1} parent=31 // pred_check_branch
          %1119 = sbr.rel (%p1117) target = $region92
        $region91: #{tpu_custom_call.1} parent=31 // pred_region
          %s1120 = sand.u32 %s93, 1
          %s1121 = scalar_lea.sflag [#allocation7], %s1120
          %s1122 = sand.u32 %s521, 1
          %s1123 = smul.addr %s1122, 32
          %s1124 = scalar_lea.vmem [#allocation8], %s1123
          %1126 = vsyncadd %s1121, 0
          %s1127 = smul.addr %s101, 4
          %s1128 = smul.addr %s1127, 8
          %s1129 = scalar_lea.hbm %s33, %s1128
          %s1130 = sshll.u32 %s1129, 4
          %s1131 = int_to_ptr.hbm [resolvable:$true] %s1130
          %s1132 = sshll.u32 %s1124, 4
          %s1133 = int_to_ptr.vmem [resolvable:$true] %s1132
          %1138 = dma.hbm_to_vmem [thread:$0]  %s1131, 512, %s1133, %s1121, 128, 128, 8
        $region92: #{tpu_custom_call.1} parent=31 // pred_fallthru
          _
        // Predicated region
        $region93: #{tpu_custom_call.1} parent=31 // pred_check
          %p1139 = pneg %p557
        $region94: #{tpu_custom_call.1} parent=31 // pred_check_branch
          %1141 = sbr.rel (%p1139) target = $region96
        $region95: #{tpu_custom_call.1} parent=31 // pred_region
          %p1142 = scmp.lt.s32.totalorder %s101, 1
          %s1143 = scalar_select %p1142, %s101, 1
          %s1144 = scalar_lea.vmem %s35, %s1143
        $region96: #{tpu_custom_call.1} parent=31 // pred_fallthru
          _
        // Predicated region
        $region97: #{tpu_custom_call.1} parent=31 // pred_check
          %p1145 = pneg %p583
        $region98: #{tpu_custom_call.1} parent=31 // pred_check_branch
          %1147 = sbr.rel (%p1145) target = $region100
        $region99: #{tpu_custom_call.1} parent=31 // pred_region
          %s1148 = sand.u32 %s93, 1
          %s1149 = scalar_lea.sflag [#allocation10], %s1148
          %s1150 = sand.u32 %s573, 1
          %s1151 = smul.addr %s1150, 32
          %s1152 = scalar_lea.vmem [#allocation9], %s1151
          %1154 = vsyncadd %s1149, 0
          %s1155 = smul.addr %s101, 4
          %s1156 = smul.addr %s1155, 8
          %s1157 = scalar_lea.hbm %s37, %s1156
          %s1158 = sshll.u32 %s1157, 4
          %s1159 = int_to_ptr.hbm [resolvable:$true] %s1158
          %s1160 = sshll.u32 %s1152, 4
          %s1161 = int_to_ptr.vmem [resolvable:$true] %s1160
          %1166 = dma.hbm_to_vmem [thread:$0]  %s1159, 512, %s1161, %s1149, 128, 128, 8
        $region100: #{tpu_custom_call.1} parent=31 // pred_fallthru
          _
        // Predicated region
        $region101: #{tpu_custom_call.1} parent=31 // pred_check
          %p1167 = pneg %p609
        $region102: #{tpu_custom_call.1} parent=31 // pred_check_branch
          %1169 = sbr.rel (%p1167) target = $region104
        $region103: #{tpu_custom_call.1} parent=31 // pred_region
          %p1170 = scmp.lt.s32.totalorder %s101, 1
          %s1171 = scalar_select %p1170, %s101, 1
          %s1172 = scalar_lea.vmem %s39, %s1171
        $region104: #{tpu_custom_call.1} parent=31 // pred_fallthru
          _
        // Predicated region
        $region105: #{tpu_custom_call.1} parent=31 // pred_check
          %p1173 = pneg %p635
        $region106: #{tpu_custom_call.1} parent=31 // pred_check_branch
          %1175 = sbr.rel (%p1173) target = $region108
        $region107: #{tpu_custom_call.1} parent=31 // pred_region
          %s1176 = sand.u32 %s93, 1
          %s1177 = scalar_lea.sflag [#allocation10], %s1176
          %s1178 = sand.u32 %s625, 1
          %s1179 = smul.addr %s1178, 32
          %s1180 = scalar_lea.vmem [#allocation11], %s1179
          %1182 = vsyncadd %s1177, 0
          %s1183 = smul.addr %s101, 4
          %s1184 = smul.addr %s1183, 8
          %s1185 = scalar_lea.hbm %s41, %s1184
          %s1186 = sshll.u32 %s1185, 4
          %s1187 = int_to_ptr.hbm [resolvable:$true] %s1186
          %s1188 = sshll.u32 %s1180, 4
          %s1189 = int_to_ptr.vmem [resolvable:$true] %s1188
          %1194 = dma.hbm_to_vmem [thread:$0]  %s1187, 512, %s1189, %s1177, 128, 128, 8
        $region108: #{tpu_custom_call.1} parent=31 // pred_fallthru
          _
        // Predicated region
        $region109: #{tpu_custom_call.1} parent=31 // pred_check
          %p1195 = pneg %p661
        $region110: #{tpu_custom_call.1} parent=31 // pred_check_branch
          %1197 = sbr.rel (%p1195) target = $region112
        $region111: #{tpu_custom_call.1} parent=31 // pred_region
          %p1198 = scmp.lt.s32.totalorder %s101, 1
          %s1199 = scalar_select %p1198, %s101, 1
          %s1200 = scalar_lea.vmem %s43, %s1199
        $region112: #{tpu_custom_call.1} parent=31 // pred_fallthru
          _
        // Predicated region
        $region113: #{tpu_custom_call.1} parent=31 // pred_check
          %p1201 = pneg %p687
        $region114: #{tpu_custom_call.1} parent=31 // pred_check_branch
          %1203 = sbr.rel (%p1201) target = $region116
        $region115: #{tpu_custom_call.1} parent=31 // pred_region
          %s1204 = sand.u32 %s93, 1
          %s1205 = scalar_lea.sflag [#allocation13], %s1204
          %s1206 = sand.u32 %s677, 1
          %s1207 = scalar_lea.vmem [#allocation12], %s1206
          %1209 = vsyncadd %s1205, 0
          %s1210 = scalar_lea.hbm %s45, %s101
          %s1212 = sshll.u32 %s1210, 4
          %s1213 = int_to_ptr.hbm [resolvable:$true] %s1212
          %s1214 = sshll.u32 %s1207, 4
          %s1215 = int_to_ptr.vmem [resolvable:$true] %s1214
          %1217 = dma.hbm_to_vmem [thread:$0]  %s1213, 16, %s1215, %s1205
        $region116: #{tpu_custom_call.1} parent=31 // pred_fallthru
          _
        // Predicated region
        $region117: #{tpu_custom_call.1} parent=31 // pred_check
          %p1218 = pneg %p713
        $region118: #{tpu_custom_call.1} parent=31 // pred_check_branch
          %1220 = sbr.rel (%p1218) target = $region120
        $region119: #{tpu_custom_call.1} parent=31 // pred_region
          %s1221 = sand.u32 %s93, 1
          %s1222 = scalar_lea.sflag [#allocation13], %s1221
          %s1223 = sand.u32 %s703, 1
          %s1224 = scalar_lea.vmem [#allocation14], %s1223
          %1226 = vsyncadd %s1222, 0
          %s1227 = scalar_lea.hbm %s47, %s101
          %s1229 = sshll.u32 %s1227, 4
          %s1230 = int_to_ptr.hbm [resolvable:$true] %s1229
          %s1231 = sshll.u32 %s1224, 4
          %s1232 = int_to_ptr.vmem [resolvable:$true] %s1231
          %1234 = dma.hbm_to_vmem [thread:$0]  %s1230, 16, %s1232, %s1222
        $region120: #{tpu_custom_call.1} parent=31 // pred_fallthru
          _
        // Predicated region
        $region121: #{tpu_custom_call.1} parent=31 // pred_check
          %p1235 = pneg %p739
        $region122: #{tpu_custom_call.1} parent=31 // pred_check_branch
          %1237 = sbr.rel (%p1235) target = $region124
        $region123: #{tpu_custom_call.1} parent=31 // pred_region
          %s1238 = sand.u32 %s93, 1
          %s1239 = scalar_lea.sflag [#allocation16], %s1238
          %s1240 = sand.u32 %s729, 1
          %s1241 = smul.addr %s1240, 32
          %s1242 = scalar_lea.vmem [#allocation15], %s1241
          %1244 = vsyncadd %s1239, 0
          %s1245 = smul.addr %s101, 4
          %s1246 = smul.addr %s1245, 8
          %s1247 = scalar_lea.hbm %s49, %s1246
          %s1248 = sshll.u32 %s1247, 4
          %s1249 = int_to_ptr.hbm [resolvable:$true] %s1248
          %s1250 = sshll.u32 %s1242, 4
          %s1251 = int_to_ptr.vmem [resolvable:$true] %s1250
          %1256 = dma.hbm_to_vmem [thread:$0]  %s1249, 512, %s1251, %s1239, 128, 128, 8
        $region124: #{tpu_custom_call.1} parent=31 // pred_fallthru
          _
        // Predicated region
        $region125: #{tpu_custom_call.1} parent=31 // pred_check
          %p1257 = pneg %p765
        $region126: #{tpu_custom_call.1} parent=31 // pred_check_branch
          %1259 = sbr.rel (%p1257) target = $region128
        $region127: #{tpu_custom_call.1} parent=31 // pred_region
          %s1260 = sand.u32 %s93, 1
          %s1261 = scalar_lea.sflag [#allocation16], %s1260
          %s1262 = sand.u32 %s755, 1
          %s1263 = scalar_lea.vmem [#allocation17], %s1262
          %1265 = vsyncadd %s1261, 0
          %s1266 = scalar_lea.hbm %s51, %s101
          %s1268 = sshll.u32 %s1266, 4
          %s1269 = int_to_ptr.hbm [resolvable:$true] %s1268
          %s1270 = sshll.u32 %s1263, 4
          %s1271 = int_to_ptr.vmem [resolvable:$true] %s1270
          %1273 = dma.hbm_to_vmem [thread:$0]  %s1269, 16, %s1271, %s1261
        $region128: #{tpu_custom_call.1} parent=31 // pred_fallthru
          _
        // Predicated region
        $region129: #{tpu_custom_call.1} parent=31 // pred_check
          %p1274 = pneg %p791
        $region130: #{tpu_custom_call.1} parent=31 // pred_check_branch
          %1276 = sbr.rel (%p1274) target = $region132
        $region131: #{tpu_custom_call.1} parent=31 // pred_region
          %p1277 = scmp.lt.s32.totalorder %s101, 1
          %s1278 = scalar_select %p1277, %s101, 1
          %s1279 = smul.addr %s1278, 8
          %s1280 = smul.addr %s1279, 8
          %s1281 = scalar_lea.vmem %s53, %s1280
        $region132: #{tpu_custom_call.1} parent=31 // pred_fallthru
          _
        // Predicated region
        $region133: #{tpu_custom_call.1} parent=31 // pred_check
          %p1282 = pneg %p817
        $region134: #{tpu_custom_call.1} parent=31 // pred_check_branch
          %1284 = sbr.rel (%p1282) target = $region136
        $region135: #{tpu_custom_call.1} parent=31 // pred_region
          %s1285 = sand.u32 %s93, 1
          %s1286 = scalar_lea.sflag [#allocation19], %s1285
          %s1287 = sand.u32 %s807, 1
          %s1288 = scalar_lea.vmem [#allocation18], %s1287
          %1290 = vsyncadd %s1286, 0
          %s1291 = scalar_lea.hbm %s55, %s101
          %s1293 = sshll.u32 %s1291, 4
          %s1294 = int_to_ptr.hbm [resolvable:$true] %s1293
          %s1295 = sshll.u32 %s1288, 4
          %s1296 = int_to_ptr.vmem [resolvable:$true] %s1295
          %1298 = dma.hbm_to_vmem [thread:$0]  %s1294, 16, %s1296, %s1286
        $region136: #{tpu_custom_call.1} parent=31 // pred_fallthru
          _
        // Predicated region
        $region137: #{tpu_custom_call.1} parent=31 // pred_check
          %p1299 = pneg %p843
        $region138: #{tpu_custom_call.1} parent=31 // pred_check_branch
          %1301 = sbr.rel (%p1299) target = $region140
        $region139: #{tpu_custom_call.1} parent=31 // pred_region
          %p1302 = scmp.lt.s32.totalorder %s101, 1
          %s1303 = scalar_select %p1302, %s101, 1
          %s1304 = scalar_lea.vmem %s57, %s1303
        $region140: #{tpu_custom_call.1} parent=31 // pred_fallthru
          _
        // Predicated region
        $region141: #{tpu_custom_call.1} parent=31 // pred_check
          %p1305 = pneg %p869
        $region142: #{tpu_custom_call.1} parent=31 // pred_check_branch
          %1307 = sbr.rel (%p1305) target = $region144
        $region143: #{tpu_custom_call.1} parent=31 // pred_region
          %s1308 = sand.u32 %s93, 1
          %s1309 = scalar_lea.sflag [#allocation19], %s1308
          %s1310 = sand.u32 %s859, 1
          %s1311 = scalar_lea.vmem [#allocation20], %s1310
          %1313 = vsyncadd %s1309, 0
          %s1314 = scalar_lea.hbm %s59, %s101
          %s1316 = sshll.u32 %s1314, 4
          %s1317 = int_to_ptr.hbm [resolvable:$true] %s1316
          %s1318 = sshll.u32 %s1311, 4
          %s1319 = int_to_ptr.vmem [resolvable:$true] %s1318
          %1321 = dma.hbm_to_vmem [thread:$0]  %s1317, 16, %s1319, %s1309
        $region144: #{tpu_custom_call.1} parent=31 // pred_fallthru
          _
      $region32: #{tpu_custom_call.1} parent=5 // pred_fallthru
        _
      %p1322 = scmp.le.s32.totalorder 1, %s93
      %p1323 = scmp.lt.s32.totalorder %s93, 5
      %p1324 = pnand %p1322, %p1323
      %p1325 = pneg %p1324
      // Predicated region
      $region145: #{tpu_custom_call.1} parent=5 // pred_check
        _
      $region146: #{tpu_custom_call.1} parent=5 // pred_check_branch
        %1327 = sbr.rel (%p1324) target = $region148
      $region147: #{tpu_custom_call.1} parent=5 // pred_region
        %s1328 = ssub.s32 %s93, 1
        %s1329 = sand.u32 %s368, 1
        %s1330 = scalar_lea.sflag [#allocation4], %s1329
        %s1331 = sand.u32 %s368, 1
        %s1332 = smul.addr %s1331, 32
        %s1333 = scalar_lea.vmem [#allocation3], %s1332
        // Predicated region
        $region149: #{tpu_custom_call.1} parent=147 // pred_check
          %p1334 = pneg %p381
        $region150: #{tpu_custom_call.1} parent=147 // pred_check_branch
          %1336 = sbr.rel (%p1334) target = $region152
        $region151: #{tpu_custom_call.1} parent=147 // pred_region
          %1338 = dma.done %s1330, 512
        $region152: #{tpu_custom_call.1} parent=147 // pred_fallthru
          _
        %s1339 = sand.u32 %s98, 1
        %s1340 = scalar_lea.sflag [#allocation7], %s1339
        %s1341 = sand.u32 %s472, 1
        %s1342 = smul.addr %s1341, 32
        %s1343 = scalar_lea.vmem [#allocation6], %s1342
        // Predicated region
        $region153: #{tpu_custom_call.1} parent=147 // pred_check
          %p1344 = pneg %p485
        $region154: #{tpu_custom_call.1} parent=147 // pred_check_branch
          %1346 = sbr.rel (%p1344) target = $region156
        $region155: #{tpu_custom_call.1} parent=147 // pred_region
          %1348 = dma.done %s1340, 512
        $region156: #{tpu_custom_call.1} parent=147 // pred_fallthru
          _
        %s1349 = sand.u32 %s98, 1
        %s1350 = scalar_lea.sflag [#allocation7], %s1349
        %s1351 = sand.u32 %s524, 1
        %s1352 = smul.addr %s1351, 32
        %s1353 = scalar_lea.vmem [#allocation8], %s1352
        // Predicated region
        $region157: #{tpu_custom_call.1} parent=147 // pred_check
          %p1354 = pneg %p537
        $region158: #{tpu_custom_call.1} parent=147 // pred_check_branch
          %1356 = sbr.rel (%p1354) target = $region160
        $region159: #{tpu_custom_call.1} parent=147 // pred_region
          %1358 = dma.done %s1350, 512
        $region160: #{tpu_custom_call.1} parent=147 // pred_fallthru
          _
        %s1359 = sand.u32 %s98, 1
        %s1360 = scalar_lea.sflag [#allocation10], %s1359
        %s1361 = sand.u32 %s576, 1
        %s1362 = smul.addr %s1361, 32
        %s1363 = scalar_lea.vmem [#allocation9], %s1362
        // Predicated region
        $region161: #{tpu_custom_call.1} parent=147 // pred_check
          %p1364 = pneg %p589
        $region162: #{tpu_custom_call.1} parent=147 // pred_check_branch
          %1366 = sbr.rel (%p1364) target = $region164
        $region163: #{tpu_custom_call.1} parent=147 // pred_region
          %1368 = dma.done %s1360, 512
        $region164: #{tpu_custom_call.1} parent=147 // pred_fallthru
          _
        %s1369 = sand.u32 %s98, 1
        %s1370 = scalar_lea.sflag [#allocation10], %s1369
        %s1371 = sand.u32 %s628, 1
        %s1372 = smul.addr %s1371, 32
        %s1373 = scalar_lea.vmem [#allocation11], %s1372
        // Predicated region
        $region165: #{tpu_custom_call.1} parent=147 // pred_check
          %p1374 = pneg %p641
        $region166: #{tpu_custom_call.1} parent=147 // pred_check_branch
          %1376 = sbr.rel (%p1374) target = $region168
        $region167: #{tpu_custom_call.1} parent=147 // pred_region
          %1378 = dma.done %s1370, 512
        $region168: #{tpu_custom_call.1} parent=147 // pred_fallthru
          _
        %s1379 = sand.u32 %s98, 1
        %s1380 = scalar_lea.sflag [#allocation13], %s1379
        %s1381 = sand.u32 %s680, 1
        %s1382 = scalar_lea.vmem [#allocation12], %s1381
        // Predicated region
        $region169: #{tpu_custom_call.1} parent=147 // pred_check
          %p1383 = pneg %p693
        $region170: #{tpu_custom_call.1} parent=147 // pred_check_branch
          %1385 = sbr.rel (%p1383) target = $region172
        $region171: #{tpu_custom_call.1} parent=147 // pred_region
          %1387 = dma.done %s1380, 16
        $region172: #{tpu_custom_call.1} parent=147 // pred_fallthru
          _
        %s1388 = sand.u32 %s98, 1
        %s1389 = scalar_lea.sflag [#allocation13], %s1388
        %s1390 = sand.u32 %s706, 1
        %s1391 = scalar_lea.vmem [#allocation14], %s1390
        // Predicated region
        $region173: #{tpu_custom_call.1} parent=147 // pred_check
          %p1392 = pneg %p719
        $region174: #{tpu_custom_call.1} parent=147 // pred_check_branch
          %1394 = sbr.rel (%p1392) target = $region176
        $region175: #{tpu_custom_call.1} parent=147 // pred_region
          %1396 = dma.done %s1389, 16
        $region176: #{tpu_custom_call.1} parent=147 // pred_fallthru
          _
        %s1397 = sand.u32 %s98, 1
        %s1398 = scalar_lea.sflag [#allocation16], %s1397
        %s1399 = sand.u32 %s732, 1
        %s1400 = smul.addr %s1399, 32
        %s1401 = scalar_lea.vmem [#allocation15], %s1400
        // Predicated region
        $region177: #{tpu_custom_call.1} parent=147 // pred_check
          %p1402 = pneg %p745
        $region178: #{tpu_custom_call.1} parent=147 // pred_check_branch
          %1404 = sbr.rel (%p1402) target = $region180
        $region179: #{tpu_custom_call.1} parent=147 // pred_region
          %1406 = dma.done %s1398, 512
        $region180: #{tpu_custom_call.1} parent=147 // pred_fallthru
          _
        %s1407 = sand.u32 %s98, 1
        %s1408 = scalar_lea.sflag [#allocation16], %s1407
        %s1409 = sand.u32 %s758, 1
        %s1410 = scalar_lea.vmem [#allocation17], %s1409
        // Predicated region
        $region181: #{tpu_custom_call.1} parent=147 // pred_check
          %p1411 = pneg %p771
        $region182: #{tpu_custom_call.1} parent=147 // pred_check_branch
          %1413 = sbr.rel (%p1411) target = $region184
        $region183: #{tpu_custom_call.1} parent=147 // pred_region
          %1415 = dma.done %s1408, 16
        $region184: #{tpu_custom_call.1} parent=147 // pred_fallthru
          _
        %s1416 = sand.u32 %s98, 1
        %s1417 = scalar_lea.sflag [#allocation19], %s1416
        %s1418 = sand.u32 %s810, 1
        %s1419 = scalar_lea.vmem [#allocation18], %s1418
        // Predicated region
        $region185: #{tpu_custom_call.1} parent=147 // pred_check
          %p1420 = pneg %p823
        $region186: #{tpu_custom_call.1} parent=147 // pred_check_branch
          %1422 = sbr.rel (%p1420) target = $region188
        $region187: #{tpu_custom_call.1} parent=147 // pred_region
          %1424 = dma.done %s1417, 16
        $region188: #{tpu_custom_call.1} parent=147 // pred_fallthru
          _
        %s1425 = sand.u32 %s98, 1
        %s1426 = scalar_lea.sflag [#allocation19], %s1425
        %s1427 = sand.u32 %s862, 1
        %s1428 = scalar_lea.vmem [#allocation20], %s1427
        // Predicated region
        $region189: #{tpu_custom_call.1} parent=147 // pred_check
          %p1429 = pneg %p875
        $region190: #{tpu_custom_call.1} parent=147 // pred_check_branch
          %1431 = sbr.rel (%p1429) target = $region192
        $region191: #{tpu_custom_call.1} parent=147 // pred_region
          %1433 = dma.done %s1426, 16
        $region192: #{tpu_custom_call.1} parent=147 // pred_fallthru
          _
        // Predicated region
        $region193: #{tpu_custom_call.1} parent=147 // pred_check
          %p1434 = pneg %p896
        $region194: #{tpu_custom_call.1} parent=147 // pred_check_branch
          %1436 = sbr.rel (%p1434) target = $region196
        $region195: #{tpu_custom_call.1} parent=147 // pred_region
          %1438 = dma.done [#allocation22], 16
        $region196: #{tpu_custom_call.1} parent=147 // pred_fallthru
          _
        // Predicated region
        $region197: #{tpu_custom_call.1} parent=147 // pred_check
          %p1439 = pneg %p917
        $region198: #{tpu_custom_call.1} parent=147 // pred_check_branch
          %1441 = sbr.rel (%p1439) target = $region200
        $region199: #{tpu_custom_call.1} parent=147 // pred_region
          %1443 = dma.done [#allocation22], 16
        $region200: #{tpu_custom_call.1} parent=147 // pred_fallthru
          _
        %p1444 = scmp.lt.s32.totalorder %s102, 1
        %s1445 = scalar_select %p1444, %s102, 1
        %s1446 = smul.addr %s1445, 8
        %s1447 = scalar_lea.vmem %s1, %s1446
        %p1448 = pneg %p131
        %p1449 = pneg %p128
        %p1450 = scmp.lt.s32.totalorder %s102, 1
        %s1451 = scalar_select %p1450, %s102, 1
        %s1452 = smul.addr %s1451, 2
        %s1453 = smul.addr %s1452, 8
        %s1454 = scalar_lea.vmem %s3, %s1453
        %p1455 = pneg %p157
        %p1456 = pneg %p154
        %p1457 = pneg %p178
        %p1458 = pneg %p175
        %p1459 = pneg %p199
        %p1460 = pneg %p196
        %p1461 = scmp.lt.s32.totalorder %s103, 1
        %s1462 = scalar_select %p1461, %s103, 1
        %s1463 = smul.addr %s1462, 4
        %s1464 = smul.addr %s1463, 8
        %s1465 = scalar_lea.vmem %s9, %s1464
        %p1466 = pneg %p225
        %p1467 = pneg %p222
        %p1468 = scmp.lt.s32.totalorder %s103, 1
        %s1469 = scalar_select %p1468, %s103, 1
        %s1470 = scalar_lea.vmem %s11, %s1469
        %p1471 = pneg %p251
        %p1472 = pneg %p248
        %p1473 = scmp.lt.s32.totalorder %s103, 1
        %s1474 = scalar_select %p1473, %s103, 1
        %s1475 = smul.addr %s1474, 4
        %s1476 = smul.addr %s1475, 8
        %s1477 = scalar_lea.vmem %s13, %s1476
        %p1478 = pneg %p277
        %p1479 = pneg %p274
        %p1480 = scmp.lt.s32.totalorder %s103, 1
        %s1481 = scalar_select %p1480, %s103, 1
        %s1482 = scalar_lea.vmem %s15, %s1481
        %p1483 = pneg %p303
        %p1484 = pneg %p300
        %p1485 = scmp.lt.s32.totalorder %s103, 1
        %s1486 = scalar_select %p1485, %s103, 1
        %s1487 = smul.addr %s1486, 4
        %s1488 = smul.addr %s1487, 8
        %s1489 = scalar_lea.vmem %s17, %s1488
        %p1490 = pneg %p329
        %p1491 = pneg %p326
        %p1492 = scmp.lt.s32.totalorder %s103, 1
        %s1493 = scalar_select %p1492, %s103, 1
        %s1494 = scalar_lea.vmem %s19, %s1493
        %p1495 = pneg %p355
        %p1496 = pneg %p352
        %s1497 = sand.u32 %s368, 1
        %s1498 = scalar_lea.sflag [#allocation4], %s1497
        %s1499 = sand.u32 %s368, 1
        %s1500 = smul.addr %s1499, 32
        %s1501 = scalar_lea.vmem [#allocation3], %s1500
        %p1502 = pneg %p381
        %p1503 = pneg %p378
        %p1504 = scmp.lt.s32.totalorder %s103, 1
        %s1505 = scalar_select %p1504, %s103, 1
        %s1506 = scalar_lea.vmem %s23, %s1505
        %p1507 = pneg %p407
        %p1508 = pneg %p404
        %p1509 = scmp.lt.s32.totalorder %s103, 1
        %s1510 = scalar_select %p1509, %s103, 1
        %s1511 = scalar_lea.vmem %s25, %s1510
        %p1512 = pneg %p433
        %p1513 = pneg %p430
        %p1514 = scmp.lt.s32.totalorder %s103, 1
        %s1515 = scalar_select %p1514, %s103, 1
        %s1516 = scalar_lea.vmem %s27, %s1515
        %p1517 = pneg %p459
        %p1518 = pneg %p456
        %s1519 = sand.u32 %s98, 1
        %s1520 = scalar_lea.sflag [#allocation7], %s1519
        %s1521 = sand.u32 %s472, 1
        %s1522 = smul.addr %s1521, 32
        %s1523 = scalar_lea.vmem [#allocation6], %s1522
        %p1524 = pneg %p485
        %p1525 = pneg %p482
        %p1526 = scmp.lt.s32.totalorder %s103, 1
        %s1527 = scalar_select %p1526, %s103, 1
        %s1528 = scalar_lea.vmem %s31, %s1527
        %p1529 = pneg %p511
        %p1530 = pneg %p508
        %s1531 = sand.u32 %s98, 1
        %s1532 = scalar_lea.sflag [#allocation7], %s1531
        %s1533 = sand.u32 %s524, 1
        %s1534 = smul.addr %s1533, 32
        %s1535 = scalar_lea.vmem [#allocation8], %s1534
        %p1536 = pneg %p537
        %p1537 = pneg %p534
        %p1538 = scmp.lt.s32.totalorder %s103, 1
        %s1539 = scalar_select %p1538, %s103, 1
        %s1540 = scalar_lea.vmem %s35, %s1539
        %p1541 = pneg %p563
        %p1542 = pneg %p560
        %s1543 = sand.u32 %s98, 1
        %s1544 = scalar_lea.sflag [#allocation10], %s1543
        %s1545 = sand.u32 %s576, 1
        %s1546 = smul.addr %s1545, 32
        %s1547 = scalar_lea.vmem [#allocation9], %s1546
        %p1548 = pneg %p589
        %p1549 = pneg %p586
        %p1550 = scmp.lt.s32.totalorder %s103, 1
        %s1551 = scalar_select %p1550, %s103, 1
        %s1552 = scalar_lea.vmem %s39, %s1551
        %p1553 = pneg %p615
        %p1554 = pneg %p612
        %s1555 = sand.u32 %s98, 1
        %s1556 = scalar_lea.sflag [#allocation10], %s1555
        %s1557 = sand.u32 %s628, 1
        %s1558 = smul.addr %s1557, 32
        %s1559 = scalar_lea.vmem [#allocation11], %s1558
        %p1560 = pneg %p641
        %p1561 = pneg %p638
        %p1562 = scmp.lt.s32.totalorder %s103, 1
        %s1563 = scalar_select %p1562, %s103, 1
        %s1564 = scalar_lea.vmem %s43, %s1563
        %p1565 = pneg %p667
        %p1566 = pneg %p664
        %s1567 = sand.u32 %s98, 1
        %s1568 = scalar_lea.sflag [#allocation13], %s1567
        %s1569 = sand.u32 %s680, 1
        %s1570 = scalar_lea.vmem [#allocation12], %s1569
        %p1571 = pneg %p693
        %p1572 = pneg %p690
        %s1573 = sand.u32 %s98, 1
        %s1574 = scalar_lea.sflag [#allocation13], %s1573
        %s1575 = sand.u32 %s706, 1
        %s1576 = scalar_lea.vmem [#allocation14], %s1575
        %p1577 = pneg %p719
        %p1578 = pneg %p716
        %s1579 = sand.u32 %s98, 1
        %s1580 = scalar_lea.sflag [#allocation16], %s1579
        %s1581 = sand.u32 %s732, 1
        %s1582 = smul.addr %s1581, 32
        %s1583 = scalar_lea.vmem [#allocation15], %s1582
        %p1584 = pneg %p745
        %p1585 = pneg %p742
        %s1586 = sand.u32 %s98, 1
        %s1587 = scalar_lea.sflag [#allocation16], %s1586
        %s1588 = sand.u32 %s758, 1
        %s1589 = scalar_lea.vmem [#allocation17], %s1588
        %p1590 = pneg %p771
        %p1591 = pneg %p768
        %p1592 = scmp.lt.s32.totalorder %s103, 1
        %s1593 = scalar_select %p1592, %s103, 1
        %s1594 = smul.addr %s1593, 8
        %s1595 = smul.addr %s1594, 8
        %s1596 = scalar_lea.vmem %s53, %s1595
        %p1597 = pneg %p797
        %p1598 = pneg %p794
        %s1599 = sand.u32 %s98, 1
        %s1600 = scalar_lea.sflag [#allocation19], %s1599
        %s1601 = sand.u32 %s810, 1
        %s1602 = scalar_lea.vmem [#allocation18], %s1601
        %p1603 = pneg %p823
        %p1604 = pneg %p820
        %p1605 = scmp.lt.s32.totalorder %s103, 1
        %s1606 = scalar_select %p1605, %s103, 1
        %s1607 = scalar_lea.vmem %s57, %s1606
        %p1608 = pneg %p849
        %p1609 = pneg %p846
        %s1610 = sand.u32 %s98, 1
        %s1611 = scalar_lea.sflag [#allocation19], %s1610
        %s1612 = sand.u32 %s862, 1
        %s1613 = scalar_lea.vmem [#allocation20], %s1612
        %p1614 = pneg %p875
        %p1615 = pneg %p872
        %p1616 = pneg %p896
        %p1617 = pneg %p893
        %p1618 = pneg %p917
        %p1619 = pneg %p914
        %p1620 = pneg %p943
        %p1621 = pneg %p940
        %s1622 = sand.u32 %s930, 1
        %s1623 = scalar_lea.sflag [#allocation5], %s1622
        %s1624 = sand.u32 %s930, 1
        %s1625 = smul.addr %s1624, 8
        %s1626 = scalar_lea.vmem [#allocation24], %s1625
        %p1627 = scmp.lt.s32.totalorder %s102, 1
        %s1628 = scalar_select %p1627, %s102, 1
        %s1629 = smul.addr %s1628, 8
        %s1630 = scalar_lea.vmem %s1, %s1629
        %p1631 = scmp.lt.s32.totalorder %s102, 1
        %s1632 = scalar_select %p1631, %s102, 1
        %s1633 = smul.addr %s1632, 2
        %s1634 = smul.addr %s1633, 8
        %s1635 = scalar_lea.vmem %s3, %s1634
        %p1636 = scmp.lt.s32.totalorder %s103, 1
        %s1637 = scalar_select %p1636, %s103, 1
        %s1638 = smul.addr %s1637, 4
        %s1639 = smul.addr %s1638, 8
        %s1640 = scalar_lea.vmem %s9, %s1639
        %p1641 = scmp.lt.s32.totalorder %s103, 1
        %s1642 = scalar_select %p1641, %s103, 1
        %s1643 = scalar_lea.vmem %s11, %s1642
        %p1644 = scmp.lt.s32.totalorder %s103, 1
        %s1645 = scalar_select %p1644, %s103, 1
        %s1646 = smul.addr %s1645, 4
        %s1647 = smul.addr %s1646, 8
        %s1648 = scalar_lea.vmem %s13, %s1647
        %p1649 = scmp.lt.s32.totalorder %s103, 1
        %s1650 = scalar_select %p1649, %s103, 1
        %s1651 = scalar_lea.vmem %s15, %s1650
        %p1652 = scmp.lt.s32.totalorder %s103, 1
        %s1653 = scalar_select %p1652, %s103, 1
        %s1654 = smul.addr %s1653, 4
        %s1655 = smul.addr %s1654, 8
        %s1656 = scalar_lea.vmem %s17, %s1655
        %p1657 = scmp.lt.s32.totalorder %s103, 1
        %s1658 = scalar_select %p1657, %s103, 1
        %s1659 = scalar_lea.vmem %s19, %s1658
        %p1660 = scmp.lt.s32.totalorder %s103, 1
        %s1661 = scalar_select %p1660, %s103, 1
        %s1662 = scalar_lea.vmem %s23, %s1661
        %p1663 = scmp.lt.s32.totalorder %s103, 1
        %s1664 = scalar_select %p1663, %s103, 1
        %s1665 = scalar_lea.vmem %s25, %s1664
        %p1666 = scmp.lt.s32.totalorder %s103, 1
        %s1667 = scalar_select %p1666, %s103, 1
        %s1668 = scalar_lea.vmem %s27, %s1667
        %p1669 = scmp.lt.s32.totalorder %s103, 1
        %s1670 = scalar_select %p1669, %s103, 1
        %s1671 = scalar_lea.vmem %s31, %s1670
        %p1672 = scmp.lt.s32.totalorder %s103, 1
        %s1673 = scalar_select %p1672, %s103, 1
        %s1674 = scalar_lea.vmem %s35, %s1673
        %p1675 = scmp.lt.s32.totalorder %s103, 1
        %s1676 = scalar_select %p1675, %s103, 1
        %s1677 = scalar_lea.vmem %s39, %s1676
        %p1678 = scmp.lt.s32.totalorder %s103, 1
        %s1679 = scalar_select %p1678, %s103, 1
        %s1680 = scalar_lea.vmem %s43, %s1679
        %p1681 = scmp.lt.s32.totalorder %s103, 1
        %s1682 = scalar_select %p1681, %s103, 1
        %s1683 = smul.addr %s1682, 8
        %s1684 = smul.addr %s1683, 8
        %s1685 = scalar_lea.vmem %s53, %s1684
        %p1686 = scmp.lt.s32.totalorder %s103, 1
        %s1687 = scalar_select %p1686, %s103, 1
        %s1688 = scalar_lea.vmem %s57, %s1687
        %p1689 = scmp.eq.s32.totalorder %s103, 0
        // Predicated region
        $region201: #{tpu_custom_call.1} parent=147 // pred_check
          %p1690 = pneg %p1689
        $region202: #{tpu_custom_call.1} parent=147 // pred_check_branch
          %1692 = sbr.rel (%p1690) target = $region204
        $region203: #{tpu_custom_call.1} parent=147 // pred_region
          %v1693 = vld [vmem:[%s1630] sm:$0xff]
          %vm1694 = vcmask 261120
          %1695 = vst.msk [vmem:[#allocation2] sm:$0xff] %vm1694, %v1693
        $region204: #{tpu_custom_call.1} parent=147 // pred_fallthru
          _
        %v1696 = vld [vmem:[#allocation2] sm:$0xff]
        %v1697 = vld [vmem:[%s1635] sm:$0xff]
        %v1698 = vld [vmem:[%s1635 + $0x8] sm:$0x3]
        %v1699 = vld [vmem:[%s5] sm:$0xff]
        %v1700 = vld [vmem:[%s7] sm:$0xff]
        %v1701 = vld [vmem:[%s1640] sm:$0xff]
        %v1702 = vld [vmem:[%s1640 + $0x8] sm:$0xff]
        %v1703 = vld [vmem:[%s1640 + $0x10] sm:$0xff]
        %v1704 = vld [vmem:[%s1640 + $0x18] sm:$0xff]
        %v1705 = vld [vmem:[%s1643] sm:$0x1]
        %v1707 = vperm.slane %v1705, 0
        %vm1709 = vcmask 261120
        %v1711 = vsel %vm1709, %v1696, 0
        %1713 = vmatpush.msra.mxu0 0.0
        %1714 = vmatpush.msra.mxu0 0.0
        %1715 = vmatpush.msra.mxu0 0.0
        %1716 = vmatpush.msra.mxu0 0.0
        %1717 = vmatpush.msra.mxu0 0.0
        %1718 = vmatpush.msra.mxu0 0.0
        %1719 = vmatpush.msra.mxu0 0.0
        %1720 = vmatpush.msra.mxu0 0.0
        %1721 = vmatpush.msra.mxu0 0.0
        %1722 = vmatpush.msra.mxu0 0.0
        %1723 = vmatpush.msra.mxu0 0.0
        %1724 = vmatpush.msra.mxu0 0.0
        %1725 = vmatpush.msra.mxu0 %v1704
        %1726 = vmatpush.msra.mxu0 %v1703
        %1727 = vmatpush.msra.mxu0 %v1702
        %1728 = vmatpush.msra.mxu0 %v1701
        %1729 = vmatmul.f32.gmra.mxu0 %v1711
        %v1730 = vpop.f32.mrf.mxu0
        %v1731 = vadd.f32 %v1707, %v1730
        %1732 = vdwg.mxu0
        %v1733 = vld [vmem:[%s1648] sm:$0xff]
        %v1734 = vld [vmem:[%s1648 + $0x8] sm:$0xff]
        %v1735 = vld [vmem:[%s1648 + $0x10] sm:$0xff]
        %v1736 = vld [vmem:[%s1648 + $0x18] sm:$0xff]
        %v1737 = vld [vmem:[%s1651] sm:$0x1]
        %v1739 = vperm.slane %v1737, 0
        %1741 = vmatpush.msra.mxu0 0.0
        %1742 = vmatpush.msra.mxu0 0.0
        %1743 = vmatpush.msra.mxu0 0.0
        %1744 = vmatpush.msra.mxu0 0.0
        %1745 = vmatpush.msra.mxu0 0.0
        %1746 = vmatpush.msra.mxu0 0.0
        %1747 = vmatpush.msra.mxu0 0.0
        %1748 = vmatpush.msra.mxu0 0.0
        %1749 = vmatpush.msra.mxu0 0.0
        %1750 = vmatpush.msra.mxu0 0.0
        %1751 = vmatpush.msra.mxu0 0.0
        %1752 = vmatpush.msra.mxu0 0.0
        %1753 = vmatpush.msra.mxu0 %v1736
        %1754 = vmatpush.msra.mxu0 %v1735
        %1755 = vmatpush.msra.mxu0 %v1734
        %1756 = vmatpush.msra.mxu0 %v1733
        %1757 = vmatmul.f32.gmra.mxu0 %v1711
        %v1758 = vpop.f32.mrf.mxu0
        %v1759 = vadd.f32 %v1739, %v1758
        %1760 = vdwg.mxu0
        %v1761 = vld [vmem:[%s1656] sm:$0xff]
        %v1762 = vld [vmem:[%s1656 + $0x8] sm:$0xff]
        %v1763 = vld [vmem:[%s1656 + $0x10] sm:$0xff]
        %v1764 = vld [vmem:[%s1656 + $0x18] sm:$0xff]
        %v1765 = vld [vmem:[%s1659] sm:$0x1]
        %v1767 = vperm.slane %v1765, 0
        %1769 = vmatpush.msra.mxu0 0.0
        %1770 = vmatpush.msra.mxu0 0.0
        %1771 = vmatpush.msra.mxu0 0.0
        %1772 = vmatpush.msra.mxu0 0.0
        %1773 = vmatpush.msra.mxu0 0.0
        %1774 = vmatpush.msra.mxu0 0.0
        %1775 = vmatpush.msra.mxu0 0.0
        %1776 = vmatpush.msra.mxu0 0.0
        %1777 = vmatpush.msra.mxu0 0.0
        %1778 = vmatpush.msra.mxu0 0.0
        %1779 = vmatpush.msra.mxu0 0.0
        %1780 = vmatpush.msra.mxu0 0.0
        %1781 = vmatpush.msra.mxu0 %v1764
        %1782 = vmatpush.msra.mxu0 %v1763
        %1783 = vmatpush.msra.mxu0 %v1762
        %1784 = vmatpush.msra.mxu0 %v1761
        %1785 = vmatmul.f32.gmra.mxu0 %v1711
        %v1786 = vpop.f32.mrf.mxu0
        %v1787 = vadd.f32 %v1767, %v1786
        %1788 = vdwg.mxu0
        %v1789 = vmul.f32 %v1731, %v1699
        %1791 = vrot.lane.b32.xlu0 %v1700, 4
        %v1792 = vpop.permute.xlu0 %1791
        %v1794 = vmul.f32 %v1731, %v1792
        %1796 = vrot.lane.b32.xlu0 %v1794, 124
        %v1797 = vpop.permute.xlu0 %1796
        %v1799 = vsub.f32 %v1789, %v1797
        %v1800 = vmul.f32 %v1731, %v1700
        %1802 = vrot.lane.b32.xlu0 %v1699, 4
        %v1803 = vpop.permute.xlu0 %1802
        %v1805 = vmul.f32 %v1731, %v1803
        %1807 = vrot.lane.b32.xlu0 %v1805, 124
        %v1808 = vpop.permute.xlu0 %1807
        %v1810 = vadd.f32 %v1800, %v1808
        %1812 = vrot.lane.b32.xlu0 %v1810, 4
        %v1813 = vpop.permute.xlu0 %1812
        %vm1815 = vcmask 31744
        %v1816 = vsel %vm1815, %v1799, %v1813
        %v1817 = vmul.f32 %v1759, %v1699
        %v1818 = vmul.f32 %v1759, %v1792
        %1820 = vrot.lane.b32.xlu0 %v1818, 124
        %v1821 = vpop.permute.xlu0 %1820
        %v1823 = vsub.f32 %v1817, %v1821
        %v1824 = vmul.f32 %v1759, %v1700
        %v1825 = vmul.f32 %v1759, %v1803
        %1827 = vrot.lane.b32.xlu0 %v1825, 124
        %v1828 = vpop.permute.xlu0 %1827
        %v1830 = vadd.f32 %v1824, %v1828
        %1832 = vrot.lane.b32.xlu0 %v1830, 4
        %v1833 = vpop.permute.xlu0 %1832
        %v1835 = vsel %vm1815, %v1823, %v1833
        %vm1836 = vcmask 64512
        %v1838 = vsel %vm1836, %v1816, 0
        %v1841 = vsel %vm1836, %v1835, 0
        %1843 = vmatpush.xpose.msra.mxu0 0.0
        %1844 = vmatpush.xpose.msra.mxu0 0.0
        %1845 = vmatpush.xpose.msra.mxu0 0.0
        %1846 = vmatpush.xpose.msra.mxu0 0.0
        %1847 = vmatpush.xpose.msra.mxu0 0.0
        %1848 = vmatpush.xpose.msra.mxu0 0.0
        %1849 = vmatpush.xpose.msra.mxu0 0.0
        %1850 = vmatpush.xpose.msra.mxu0 0.0
        %1851 = vmatpush.xpose.msra.mxu0 0.0
        %1852 = vmatpush.xpose.msra.mxu0 0.0
        %1853 = vmatpush.xpose.msra.mxu0 0.0
        %1854 = vmatpush.xpose.msra.mxu0 0.0
        %1855 = vmatpush.xpose.msra.mxu0 0.0
        %1856 = vmatpush.xpose.msra.mxu0 0.0
        %1857 = vmatpush.xpose.msra.mxu0 0.0
        %1858 = vmatpush.xpose.msra.mxu0 %v1841
        %1859 = vmatmul.f32.gmra.mxu0 %v1838
        %v1860 = vpop.f32.mrf.mxu0
        %v1861 = vadd.f32 0.0, %v1860
        %1862 = vdwg.mxu0
        %v1863 = vsel %vm1836, %v1861, -inf
        %1864 = vmax.xlane.f32.xlu0 %v1863
        %v1865 = vpop.xlane.xlu0 %1864
        %v1866 = vsub.f32 %v1861, %v1865
        %v1867 = vmul.f32 %v1866, 1.442695
        %v1868 = vpow.pop %v1867
        %v1869 = vsel %vm1836, %v1868, 0.0
        %1870 = vadd.xlane.f32.xlu0 %v1869
        %v1871 = vpop.xlane.xlu0 %1870
        %v1872 = vrcp.pop %v1871
        %v1873 = vmul.f32 %v1871, %v1872
        %v1874 = vsub.f32 1.0, %v1873
        %v1875 = vmul.f32 %v1872, %v1874
        %v1876 = vadd.f32 %v1872, %v1875
        %vm1877 = vweird.f32 %v1871
        %vm1878 = vweird.f32 %v1872
        %vm1879 = vmor %vm1877, %vm1878
        %v1880 = vsel %vm1879, %v1872, %v1876
        %v1881 = vand.u32 2147483647, %v1871
        %vm1882 = vcmp.eq.f32.partialorder %v1881, 8.507059e+37
        %v1883 = vand.u32 %v1871, 2147483648
        %v1884 = vor.u32 1.1754944e-38, %v1883
        %v1885 = vsel %vm1882, %v1884, %v1880
        %v1886 = vmul.f32 1.0, %v1885
        %v1888 = vsel %vm1836, %v1868, 0
        %1890 = vmatpush.msra.mxu0 0.0
        %1891 = vmatpush.msra.mxu0 0.0
        %1892 = vmatpush.msra.mxu0 0.0
        %1893 = vmatpush.msra.mxu0 0.0
        %1894 = vmatpush.msra.mxu0 0.0
        %1895 = vmatpush.msra.mxu0 0.0
        %1896 = vmatpush.msra.mxu0 0.0
        %1897 = vmatpush.msra.mxu0 0.0
        %1898 = vmatpush.msra.mxu0 0.0
        %1899 = vmatpush.msra.mxu0 0.0
        %1900 = vmatpush.msra.mxu0 0.0
        %1901 = vmatpush.msra.mxu0 0.0
        %1902 = vmatpush.msra.mxu0 0.0
        %1903 = vmatpush.msra.mxu0 0.0
        %1904 = vmatpush.msra.mxu0 0.0
        %1905 = vmatpush.msra.mxu0 %v1787
        %1906 = vmatmul.f32.gmra.mxu0 %v1888
        %v1907 = vpop.f32.mrf.mxu0
        %v1908 = vadd.f32 0.0, %v1907
        %1909 = vdwg.mxu0
        %v1910 = vmul.f32 %v1908, %v1886
        %1911 = vrot.lane.b32.xlu0 %v1699, 8
        %v1912 = vpop.permute.xlu0 %1911
        %v1914 = vmul.f32 %v1731, %v1912
        %1915 = vrot.lane.b32.xlu0 %v1700, 12
        %v1916 = vpop.permute.xlu0 %1915
        %v1918 = vmul.f32 %v1731, %v1916
        %1920 = vrot.lane.b32.xlu0 %v1918, 124
        %v1921 = vpop.permute.xlu0 %1920
        %v1923 = vsub.f32 %v1914, %v1921
        %1924 = vrot.lane.b32.xlu0 %v1700, 8
        %v1925 = vpop.permute.xlu0 %1924
        %v1927 = vmul.f32 %v1731, %v1925
        %1928 = vrot.lane.b32.xlu0 %v1699, 12
        %v1929 = vpop.permute.xlu0 %1928
        %v1931 = vmul.f32 %v1731, %v1929
        %1933 = vrot.lane.b32.xlu0 %v1931, 124
        %v1934 = vpop.permute.xlu0 %1933
        %v1936 = vadd.f32 %v1927, %v1934
        %1938 = vrot.lane.b32.xlu0 %v1923, 120
        %v1939 = vpop.permute.xlu0 %1938
        %1942 = vrot.lane.b32.xlu0 %v1936, 124
        %v1943 = vpop.permute.xlu0 %1942
        %v1945 = vsel %vm1815, %v1939, %v1943
        %v1946 = vmul.f32 %v1759, %v1912
        %v1947 = vmul.f32 %v1759, %v1916
        %1949 = vrot.lane.b32.xlu0 %v1947, 124
        %v1950 = vpop.permute.xlu0 %1949
        %v1952 = vsub.f32 %v1946, %v1950
        %v1953 = vmul.f32 %v1759, %v1925
        %v1954 = vmul.f32 %v1759, %v1929
        %1956 = vrot.lane.b32.xlu0 %v1954, 124
        %v1957 = vpop.permute.xlu0 %1956
        %v1959 = vadd.f32 %v1953, %v1957
        %1961 = vrot.lane.b32.xlu0 %v1952, 120
        %v1962 = vpop.permute.xlu0 %1961
        %1965 = vrot.lane.b32.xlu0 %v1959, 124
        %v1966 = vpop.permute.xlu0 %1965
        %v1968 = vsel %vm1815, %v1962, %v1966
        %v1970 = vsel %vm1836, %v1945, 0
        %v1973 = vsel %vm1836, %v1968, 0
        %1975 = vmatpush.xpose.msra.mxu0 0.0
        %1976 = vmatpush.xpose.msra.mxu0 0.0
        %1977 = vmatpush.xpose.msra.mxu0 0.0
        %1978 = vmatpush.xpose.msra.mxu0 0.0
        %1979 = vmatpush.xpose.msra.mxu0 0.0
        %1980 = vmatpush.xpose.msra.mxu0 0.0
        %1981 = vmatpush.xpose.msra.mxu0 0.0
        %1982 = vmatpush.xpose.msra.mxu0 0.0
        %1983 = vmatpush.xpose.msra.mxu0 0.0
        %1984 = vmatpush.xpose.msra.mxu0 0.0
        %1985 = vmatpush.xpose.msra.mxu0 0.0
        %1986 = vmatpush.xpose.msra.mxu0 0.0
        %1987 = vmatpush.xpose.msra.mxu0 0.0
        %1988 = vmatpush.xpose.msra.mxu0 0.0
        %1989 = vmatpush.xpose.msra.mxu0 0.0
        %1990 = vmatpush.xpose.msra.mxu0 %v1973
        %1991 = vmatmul.f32.gmra.mxu0 %v1970
        %v1992 = vpop.f32.mrf.mxu0
        %v1993 = vadd.f32 0.0, %v1992
        %1994 = vdwg.mxu0
        %v1995 = vsel %vm1836, %v1993, -inf
        %1996 = vmax.xlane.f32.xlu0 %v1995
        %v1997 = vpop.xlane.xlu0 %1996
        %v1998 = vsub.f32 %v1993, %v1997
        %v1999 = vmul.f32 %v1998, 1.442695
        %v2000 = vpow.pop %v1999
        %v2001 = vsel %vm1836, %v2000, 0.0
        %2002 = vadd.xlane.f32.xlu0 %v2001
        %v2003 = vpop.xlane.xlu0 %2002
        %v2004 = vrcp.pop %v2003
        %v2005 = vmul.f32 %v2003, %v2004
        %v2006 = vsub.f32 1.0, %v2005
        %v2007 = vmul.f32 %v2004, %v2006
        %v2008 = vadd.f32 %v2004, %v2007
        %vm2009 = vweird.f32 %v2003
        %vm2010 = vweird.f32 %v2004
        %vm2011 = vmor %vm2009, %vm2010
        %v2012 = vsel %vm2011, %v2004, %v2008
        %v2013 = vand.u32 2147483647, %v2003
        %vm2014 = vcmp.eq.f32.partialorder %v2013, 8.507059e+37
        %v2015 = vand.u32 %v2003, 2147483648
        %v2016 = vor.u32 1.1754944e-38, %v2015
        %v2017 = vsel %vm2014, %v2016, %v2012
        %v2018 = vmul.f32 1.0, %v2017
        %2020 = vrot.lane.b32.xlu0 %v1787, 120
        %v2021 = vpop.permute.xlu0 %2020
        %v2024 = vsel %vm1836, %v2000, 0
        %2026 = vmatpush.msra.mxu0 0.0
        %2027 = vmatpush.msra.mxu0 0.0
        %2028 = vmatpush.msra.mxu0 0.0
        %2029 = vmatpush.msra.mxu0 0.0
        %2030 = vmatpush.msra.mxu0 0.0
        %2031 = vmatpush.msra.mxu0 0.0
        %2032 = vmatpush.msra.mxu0 0.0
        %2033 = vmatpush.msra.mxu0 0.0
        %2034 = vmatpush.msra.mxu0 0.0
        %2035 = vmatpush.msra.mxu0 0.0
        %2036 = vmatpush.msra.mxu0 0.0
        %2037 = vmatpush.msra.mxu0 0.0
        %2038 = vmatpush.msra.mxu0 0.0
        %2039 = vmatpush.msra.mxu0 0.0
        %2040 = vmatpush.msra.mxu0 0.0
        %2041 = vmatpush.msra.mxu0 %v2021
        %2042 = vmatmul.f32.gmra.mxu0 %v2024
        %v2043 = vpop.f32.mrf.mxu0
        %v2044 = vadd.f32 0.0, %v2043
        %2045 = vdwg.mxu0
        %v2046 = vmul.f32 %v2044, %v2018
        %2047 = vrot.lane.b32.xlu0 %v1699, 16
        %v2048 = vpop.permute.xlu0 %2047
        %v2050 = vmul.f32 %v1731, %v2048
        %2051 = vrot.lane.b32.xlu0 %v1700, 20
        %v2052 = vpop.permute.xlu0 %2051
        %v2054 = vmul.f32 %v1731, %v2052
        %2056 = vrot.lane.b32.xlu0 %v2054, 124
        %v2057 = vpop.permute.xlu0 %2056
        %v2059 = vsub.f32 %v2050, %v2057
        %2060 = vrot.lane.b32.xlu0 %v1700, 16
        %v2061 = vpop.permute.xlu0 %2060
        %v2063 = vmul.f32 %v1731, %v2061
        %2064 = vrot.lane.b32.xlu0 %v1699, 20
        %v2065 = vpop.permute.xlu0 %2064
        %v2067 = vmul.f32 %v1731, %v2065
        %2069 = vrot.lane.b32.xlu0 %v2067, 124
        %v2070 = vpop.permute.xlu0 %2069
        %v2072 = vadd.f32 %v2063, %v2070
        %2074 = vrot.lane.b32.xlu0 %v2059, 112
        %v2075 = vpop.permute.xlu0 %2074
        %2078 = vrot.lane.b32.xlu0 %v2072, 116
        %v2079 = vpop.permute.xlu0 %2078
        %v2081 = vsel %vm1815, %v2075, %v2079
        %v2082 = vmul.f32 %v1759, %v2048
        %v2083 = vmul.f32 %v1759, %v2052
        %2085 = vrot.lane.b32.xlu0 %v2083, 124
        %v2086 = vpop.permute.xlu0 %2085
        %v2088 = vsub.f32 %v2082, %v2086
        %v2089 = vmul.f32 %v1759, %v2061
        %v2090 = vmul.f32 %v1759, %v2065
        %2092 = vrot.lane.b32.xlu0 %v2090, 124
        %v2093 = vpop.permute.xlu0 %2092
        %v2095 = vadd.f32 %v2089, %v2093
        %2097 = vrot.lane.b32.xlu0 %v2088, 112
        %v2098 = vpop.permute.xlu0 %2097
        %2101 = vrot.lane.b32.xlu0 %v2095, 116
        %v2102 = vpop.permute.xlu0 %2101
        %v2104 = vsel %vm1815, %v2098, %v2102
        %v2106 = vsel %vm1836, %v2081, 0
        %v2109 = vsel %vm1836, %v2104, 0
        %2111 = vmatpush.xpose.msra.mxu0 0.0
        %2112 = vmatpush.xpose.msra.mxu0 0.0
        %2113 = vmatpush.xpose.msra.mxu0 0.0
        %2114 = vmatpush.xpose.msra.mxu0 0.0
        %2115 = vmatpush.xpose.msra.mxu0 0.0
        %2116 = vmatpush.xpose.msra.mxu0 0.0
        %2117 = vmatpush.xpose.msra.mxu0 0.0
        %2118 = vmatpush.xpose.msra.mxu0 0.0
        %2119 = vmatpush.xpose.msra.mxu0 0.0
        %2120 = vmatpush.xpose.msra.mxu0 0.0
        %2121 = vmatpush.xpose.msra.mxu0 0.0
        %2122 = vmatpush.xpose.msra.mxu0 0.0
        %2123 = vmatpush.xpose.msra.mxu0 0.0
        %2124 = vmatpush.xpose.msra.mxu0 0.0
        %2125 = vmatpush.xpose.msra.mxu0 0.0
        %2126 = vmatpush.xpose.msra.mxu0 %v2109
        %2127 = vmatmul.f32.gmra.mxu0 %v2106
        %v2128 = vpop.f32.mrf.mxu0
        %v2129 = vadd.f32 0.0, %v2128
        %2130 = vdwg.mxu0
        %v2131 = vsel %vm1836, %v2129, -inf
        %2132 = vmax.xlane.f32.xlu0 %v2131
        %v2133 = vpop.xlane.xlu0 %2132
        %v2134 = vsub.f32 %v2129, %v2133
        %v2135 = vmul.f32 %v2134, 1.442695
        %v2136 = vpow.pop %v2135
        %v2137 = vsel %vm1836, %v2136, 0.0
        %2138 = vadd.xlane.f32.xlu0 %v2137
        %v2139 = vpop.xlane.xlu0 %2138
        %v2140 = vrcp.pop %v2139
        %v2141 = vmul.f32 %v2139, %v2140
        %v2142 = vsub.f32 1.0, %v2141
        %v2143 = vmul.f32 %v2140, %v2142
        %v2144 = vadd.f32 %v2140, %v2143
        %vm2145 = vweird.f32 %v2139
        %vm2146 = vweird.f32 %v2140
        %vm2147 = vmor %vm2145, %vm2146
        %v2148 = vsel %vm2147, %v2140, %v2144
        %v2149 = vand.u32 2147483647, %v2139
        %vm2150 = vcmp.eq.f32.partialorder %v2149, 8.507059e+37
        %v2151 = vand.u32 %v2139, 2147483648
        %v2152 = vor.u32 1.1754944e-38, %v2151
        %v2153 = vsel %vm2150, %v2152, %v2148
        %v2154 = vmul.f32 1.0, %v2153
        %2155 = vrot.lane.b32.xlu0 %v1787, 112
        %v2156 = vpop.permute.xlu0 %2155
        %v2159 = vsel %vm1836, %v2136, 0
        %2161 = vmatpush.msra.mxu0 0.0
        %2162 = vmatpush.msra.mxu0 0.0
        %2163 = vmatpush.msra.mxu0 0.0
        %2164 = vmatpush.msra.mxu0 0.0
        %2165 = vmatpush.msra.mxu0 0.0
        %2166 = vmatpush.msra.mxu0 0.0
        %2167 = vmatpush.msra.mxu0 0.0
        %2168 = vmatpush.msra.mxu0 0.0
        %2169 = vmatpush.msra.mxu0 0.0
        %2170 = vmatpush.msra.mxu0 0.0
        %2171 = vmatpush.msra.mxu0 0.0
        %2172 = vmatpush.msra.mxu0 0.0
        %2173 = vmatpush.msra.mxu0 0.0
        %2174 = vmatpush.msra.mxu0 0.0
        %2175 = vmatpush.msra.mxu0 0.0
        %2176 = vmatpush.msra.mxu0 %v2156
        %2177 = vmatmul.f32.gmra.mxu0 %v2159
        %v2178 = vpop.f32.mrf.mxu0
        %v2179 = vadd.f32 0.0, %v2178
        %2180 = vdwg.mxu0
        %v2181 = vmul.f32 %v2179, %v2154
        %2182 = vrot.lane.b32.xlu0 %v1699, 24
        %v2183 = vpop.permute.xlu0 %2182
        %v2185 = vmul.f32 %v1731, %v2183
        %2186 = vrot.lane.b32.xlu0 %v1700, 28
        %v2187 = vpop.permute.xlu0 %2186
        %v2189 = vmul.f32 %v1731, %v2187
        %2191 = vrot.lane.b32.xlu0 %v2189, 124
        %v2192 = vpop.permute.xlu0 %2191
        %v2194 = vsub.f32 %v2185, %v2192
        %2195 = vrot.lane.b32.xlu0 %v1700, 24
        %v2196 = vpop.permute.xlu0 %2195
        %v2198 = vmul.f32 %v1731, %v2196
        %2199 = vrot.lane.b32.xlu0 %v1699, 28
        %v2200 = vpop.permute.xlu0 %2199
        %v2202 = vmul.f32 %v1731, %v2200
        %2204 = vrot.lane.b32.xlu0 %v2202, 124
        %v2205 = vpop.permute.xlu0 %2204
        %v2207 = vadd.f32 %v2198, %v2205
        %2209 = vrot.lane.b32.xlu0 %v2194, 104
        %v2210 = vpop.permute.xlu0 %2209
        %2213 = vrot.lane.b32.xlu0 %v2207, 108
        %v2214 = vpop.permute.xlu0 %2213
        %v2216 = vsel %vm1815, %v2210, %v2214
        %v2217 = vmul.f32 %v1759, %v2183
        %v2218 = vmul.f32 %v1759, %v2187
        %2220 = vrot.lane.b32.xlu0 %v2218, 124
        %v2221 = vpop.permute.xlu0 %2220
        %v2223 = vsub.f32 %v2217, %v2221
        %v2224 = vmul.f32 %v1759, %v2196
        %v2225 = vmul.f32 %v1759, %v2200
        %2227 = vrot.lane.b32.xlu0 %v2225, 124
        %v2228 = vpop.permute.xlu0 %2227
        %v2230 = vadd.f32 %v2224, %v2228
        %2232 = vrot.lane.b32.xlu0 %v2223, 104
        %v2233 = vpop.permute.xlu0 %2232
        %2236 = vrot.lane.b32.xlu0 %v2230, 108
        %v2237 = vpop.permute.xlu0 %2236
        %v2239 = vsel %vm1815, %v2233, %v2237
        %v2241 = vsel %vm1836, %v2216, 0
        %v2244 = vsel %vm1836, %v2239, 0
        %2246 = vmatpush.xpose.msra.mxu0 0.0
        %2247 = vmatpush.xpose.msra.mxu0 0.0
        %2248 = vmatpush.xpose.msra.mxu0 0.0
        %2249 = vmatpush.xpose.msra.mxu0 0.0
        %2250 = vmatpush.xpose.msra.mxu0 0.0
        %2251 = vmatpush.xpose.msra.mxu0 0.0
        %2252 = vmatpush.xpose.msra.mxu0 0.0
        %2253 = vmatpush.xpose.msra.mxu0 0.0
        %2254 = vmatpush.xpose.msra.mxu0 0.0
        %2255 = vmatpush.xpose.msra.mxu0 0.0
        %2256 = vmatpush.xpose.msra.mxu0 0.0
        %2257 = vmatpush.xpose.msra.mxu0 0.0
        %2258 = vmatpush.xpose.msra.mxu0 0.0
        %2259 = vmatpush.xpose.msra.mxu0 0.0
        %2260 = vmatpush.xpose.msra.mxu0 0.0
        %2261 = vmatpush.xpose.msra.mxu0 %v2244
        %2262 = vmatmul.f32.gmra.mxu0 %v2241
        %v2263 = vpop.f32.mrf.mxu0
        %v2264 = vadd.f32 0.0, %v2263
        %2265 = vdwg.mxu0
        %v2266 = vsel %vm1836, %v2264, -inf
        %2267 = vmax.xlane.f32.xlu0 %v2266
        %v2268 = vpop.xlane.xlu0 %2267
        %v2269 = vsub.f32 %v2264, %v2268
        %v2270 = vmul.f32 %v2269, 1.442695
        %v2271 = vpow.pop %v2270
        %v2272 = vsel %vm1836, %v2271, 0.0
        %2273 = vadd.xlane.f32.xlu0 %v2272
        %v2274 = vpop.xlane.xlu0 %2273
        %v2275 = vrcp.pop %v2274
        %v2276 = vmul.f32 %v2274, %v2275
        %v2277 = vsub.f32 1.0, %v2276
        %v2278 = vmul.f32 %v2275, %v2277
        %v2279 = vadd.f32 %v2275, %v2278
        %vm2280 = vweird.f32 %v2274
        %vm2281 = vweird.f32 %v2275
        %vm2282 = vmor %vm2280, %vm2281
        %v2283 = vsel %vm2282, %v2275, %v2279
        %v2284 = vand.u32 2147483647, %v2274
        %vm2285 = vcmp.eq.f32.partialorder %v2284, 8.507059e+37
        %v2286 = vand.u32 %v2274, 2147483648
        %v2287 = vor.u32 1.1754944e-38, %v2286
        %v2288 = vsel %vm2285, %v2287, %v2283
        %v2289 = vmul.f32 1.0, %v2288
        %2290 = vrot.lane.b32.xlu0 %v1787, 104
        %v2291 = vpop.permute.xlu0 %2290
        %v2294 = vsel %vm1836, %v2271, 0
        %2296 = vmatpush.msra.mxu0 0.0
        %2297 = vmatpush.msra.mxu0 0.0
        %2298 = vmatpush.msra.mxu0 0.0
        %2299 = vmatpush.msra.mxu0 0.0
        %2300 = vmatpush.msra.mxu0 0.0
        %2301 = vmatpush.msra.mxu0 0.0
        %2302 = vmatpush.msra.mxu0 0.0
        %2303 = vmatpush.msra.mxu0 0.0
        %2304 = vmatpush.msra.mxu0 0.0
        %2305 = vmatpush.msra.mxu0 0.0
        %2306 = vmatpush.msra.mxu0 0.0
        %2307 = vmatpush.msra.mxu0 0.0
        %2308 = vmatpush.msra.mxu0 0.0
        %2309 = vmatpush.msra.mxu0 0.0
        %2310 = vmatpush.msra.mxu0 0.0
        %2311 = vmatpush.msra.mxu0 %v2291
        %2312 = vmatmul.f32.gmra.mxu0 %v2294
        %v2313 = vpop.f32.mrf.mxu0
        %v2314 = vadd.f32 0.0, %v2313
        %2315 = vdwg.mxu0
        %v2316 = vmul.f32 %v2314, %v2289
        %2318 = vrot.lane.b32.xlu0 %v2046, 8
        %v2319 = vpop.permute.xlu0 %2318
        %2322 = vrot.lane.b32.xlu0 %v2181, 16
        %v2323 = vpop.permute.xlu0 %2322
        %2326 = vrot.lane.b32.xlu0 %v2316, 24
        %v2327 = vpop.permute.xlu0 %2326
        %v2329 = vsel %vm1836, %v1910, %v2319
        %vm2330 = vcmask 130048
        %v2331 = vsel %vm2330, %v2329, %v2323
        %vm2332 = vcmask 195584
        %v2333 = vsel %vm2332, %v2331, %v2327
        %v2334 = vld [vmem:[%s1333] sm:$0xff]
        %v2335 = vld [vmem:[%s1333 + $0x8] sm:$0xff]
        %v2336 = vld [vmem:[%s1333 + $0x10] sm:$0xff]
        %v2337 = vld [vmem:[%s1333 + $0x18] sm:$0xff]
        %v2338 = vld [vmem:[%s1662] sm:$0x1]
        %v2340 = vperm.slane %v2338, 0
        %v2343 = vsel %vm1709, %v2333, 0
        %2345 = vmatpush.msra.mxu0 0.0
        %2346 = vmatpush.msra.mxu0 0.0
        %2347 = vmatpush.msra.mxu0 0.0
        %2348 = vmatpush.msra.mxu0 0.0
        %2349 = vmatpush.msra.mxu0 0.0
        %2350 = vmatpush.msra.mxu0 0.0
        %2351 = vmatpush.msra.mxu0 0.0
        %2352 = vmatpush.msra.mxu0 0.0
        %2353 = vmatpush.msra.mxu0 0.0
        %2354 = vmatpush.msra.mxu0 0.0
        %2355 = vmatpush.msra.mxu0 0.0
        %2356 = vmatpush.msra.mxu0 0.0
        %2357 = vmatpush.msra.mxu0 %v2337
        %2358 = vmatpush.msra.mxu0 %v2336
        %2359 = vmatpush.msra.mxu0 %v2335
        %2360 = vmatpush.msra.mxu0 %v2334
        %2361 = vmatmul.f32.gmra.mxu0 %v2343
        %v2362 = vpop.f32.mrf.mxu0
        %v2363 = vadd.f32 %v2340, %v2362
        %2364 = vdwg.mxu0
        %v2365 = vadd.f32 %v1696, %v2363
        %v2366 = vld [vmem:[%s1665] sm:$0x1]
        %v2367 = vld [vmem:[%s1668] sm:$0x1]
        %v2368 = vsel %vm1709, %v2365, 0.0
        %2369 = vadd.xlane.f32.xlu0 %v2368
        %v2370 = vpop.xlane.xlu0 %2369
        %v2371 = vrcp.pop 32.0
        %v2372 = vmul.f32 32.0, %v2371
        %v2373 = vsub.f32 1.0, %v2372
        %v2374 = vmul.f32 %v2371, %v2373
        %v2375 = vadd.f32 %v2371, %v2374
        %vm2376 = vweird.f32 %v2371
        %v2377 = vsel %vm2376, %v2371, %v2375
        %v2378 = vmul.f32 %v2370, %v2377
        %v2379 = vsub.f32 %v2365, %v2378
        %v2380 = vmul.f32 %v2379, %v2379
        %v2381 = vsel %vm1709, %v2380, 0.0
        %2382 = vadd.xlane.f32.xlu0 %v2381
        %v2383 = vpop.xlane.xlu0 %2382
        %v2384 = vmul.f32 %v2383, %v2377
        %v2385 = vadd.f32 %v2384, 1e-05
        %v2386 = vrsqrt.pop %v2385
        %v2387 = vmul.f32 %v2386, %v2385
        %v2388 = vmul.f32 %v2387, %v2386
        %v2389 = vmul.f32 0.5, %v2388
        %v2390 = vsub.f32 1.5, %v2389
        %v2391 = vmul.f32 %v2386, %v2390
        %vm2392 = vweird.f32 %v2385
        %vm2393 = vweird.f32 %v2386
        %vm2394 = vmor %vm2392, %vm2393
        %v2395 = vsel %vm2394, %v2386, %v2391
        %v2396 = vmul.f32 %v2379, %v2395
        %v2398 = vperm.slane %v2366, 0
        %v2400 = vmul.f32 %v2396, %v2398
        %v2402 = vperm.slane %v2367, 0
        %v2404 = vadd.f32 %v2400, %v2402
        %v2405 = vld [vmem:[%s1343] sm:$0xff]
        %v2406 = vld [vmem:[%s1343 + $0x8] sm:$0xff]
        %v2407 = vld [vmem:[%s1343 + $0x10] sm:$0xff]
        %v2408 = vld [vmem:[%s1343 + $0x18] sm:$0xff]
        %v2409 = vld [vmem:[%s1671] sm:$0x1]
        %v2411 = vperm.slane %v2409, 0
        %v2414 = vsel %vm1709, %v2404, 0
        %2416 = vmatpush.msra.mxu0 0.0
        %2417 = vmatpush.msra.mxu0 0.0
        %2418 = vmatpush.msra.mxu0 0.0
        %2419 = vmatpush.msra.mxu0 0.0
        %2420 = vmatpush.msra.mxu0 0.0
        %2421 = vmatpush.msra.mxu0 0.0
        %2422 = vmatpush.msra.mxu0 0.0
        %2423 = vmatpush.msra.mxu0 0.0
        %2424 = vmatpush.msra.mxu0 0.0
        %2425 = vmatpush.msra.mxu0 0.0
        %2426 = vmatpush.msra.mxu0 0.0
        %2427 = vmatpush.msra.mxu0 0.0
        %2428 = vmatpush.msra.mxu0 %v2408
        %2429 = vmatpush.msra.mxu0 %v2407
        %2430 = vmatpush.msra.mxu0 %v2406
        %2431 = vmatpush.msra.mxu0 %v2405
        %2432 = vmatmul.f32.gmra.mxu0 %v2414
        %v2433 = vpop.f32.mrf.mxu0
        %v2434 = vadd.f32 %v2411, %v2433
        %2435 = vdwg.mxu0
        %v2436 = vld [vmem:[%s1353] sm:$0xff]
        %v2437 = vld [vmem:[%s1353 + $0x8] sm:$0xff]
        %v2438 = vld [vmem:[%s1353 + $0x10] sm:$0xff]
        %v2439 = vld [vmem:[%s1353 + $0x18] sm:$0xff]
        %v2440 = vld [vmem:[%s1674] sm:$0x1]
        %v2442 = vperm.slane %v2440, 0
        %v2445 = vsel %vm1709, %v1697, 0
        %v2448 = vsel %vm1709, %v1698, 0
        %2450 = vmatpush.msra.mxu0 0.0
        %2451 = vmatpush.msra.mxu0 0.0
        %2452 = vmatpush.msra.mxu0 0.0
        %2453 = vmatpush.msra.mxu0 0.0
        %2454 = vmatpush.msra.mxu0 0.0
        %2455 = vmatpush.msra.mxu0 0.0
        %2456 = vmatpush.msra.mxu0 0.0
        %2457 = vmatpush.msra.mxu0 0.0
        %2458 = vmatpush.msra.mxu0 0.0
        %2459 = vmatpush.msra.mxu0 0.0
        %2460 = vmatpush.msra.mxu0 0.0
        %2461 = vmatpush.msra.mxu0 0.0
        %2462 = vmatpush.msra.mxu0 %v2439
        %2463 = vmatpush.msra.mxu0 %v2438
        %2464 = vmatpush.msra.mxu0 %v2437
        %2465 = vmatpush.msra.mxu0 %v2436
        %2466 = vmatmul.f32.gmra.mxu0 %v2445
        %v2467 = vpop.f32.mrf.mxu0
        %v2468 = vadd.f32 %v2442, %v2467
        %2469 = vmatmul.f32.gmra.mxu0 %v2448
        %v2470 = vpop.f32.mrf.mxu0
        %v2471 = vadd.f32 %v2442, %v2470
        %2472 = vdwg.mxu0
        %v2473 = vld [vmem:[%s1363] sm:$0xff]
        %v2474 = vld [vmem:[%s1363 + $0x8] sm:$0xff]
        %v2475 = vld [vmem:[%s1363 + $0x10] sm:$0xff]
        %v2476 = vld [vmem:[%s1363 + $0x18] sm:$0xff]
        %v2477 = vld [vmem:[%s1677] sm:$0x1]
        %v2479 = vperm.slane %v2477, 0
        %2481 = vmatpush.msra.mxu0 0.0
        %2482 = vmatpush.msra.mxu0 0.0
        %2483 = vmatpush.msra.mxu0 0.0
        %2484 = vmatpush.msra.mxu0 0.0
        %2485 = vmatpush.msra.mxu0 0.0
        %2486 = vmatpush.msra.mxu0 0.0
        %2487 = vmatpush.msra.mxu0 0.0
        %2488 = vmatpush.msra.mxu0 0.0
        %2489 = vmatpush.msra.mxu0 0.0
        %2490 = vmatpush.msra.mxu0 0.0
        %2491 = vmatpush.msra.mxu0 0.0
        %2492 = vmatpush.msra.mxu0 0.0
        %2493 = vmatpush.msra.mxu0 %v2476
        %2494 = vmatpush.msra.mxu0 %v2475
        %2495 = vmatpush.msra.mxu0 %v2474
        %2496 = vmatpush.msra.mxu0 %v2473
        %2497 = vmatmul.f32.gmra.mxu0 %v2445
        %v2498 = vpop.f32.mrf.mxu0
        %v2499 = vadd.f32 %v2479, %v2498
        %2500 = vmatmul.f32.gmra.mxu0 %v2448
        %v2501 = vpop.f32.mrf.mxu0
        %v2502 = vadd.f32 %v2479, %v2501
        %2503 = vdwg.mxu0
        %v2505 = vsel %vm1836, %v2434, 0
        %v2508 = vsel %vm1836, %v2468, 0
        %v2511 = vsel %vm1836, %v2471, 0
        %2513 = vmatpush.xpose.msra.mxu0 0.0
        %2514 = vmatpush.xpose.msra.mxu0 0.0
        %2515 = vmatpush.xpose.msra.mxu0 0.0
        %2516 = vmatpush.xpose.msra.mxu0 0.0
        %2517 = vmatpush.xpose.msra.mxu0 0.0
        %2518 = vmatpush.xpose.msra.mxu0 0.0
        %2519 = vmatpush.xpose.msra.mxu0 0.0
        %2520 = vmatpush.xpose.msra.mxu0 0.0
        %2521 = vmatpush.xpose.msra.mxu0 0.0
        %2522 = vmatpush.xpose.msra.mxu0 0.0
        %2523 = vmatpush.xpose.msra.mxu0 0.0
        %2524 = vmatpush.xpose.msra.mxu0 0.0
        %2525 = vmatpush.xpose.msra.mxu0 0.0
        %2526 = vmatpush.xpose.msra.mxu0 0.0
        %2527 = vmatpush.xpose.msra.mxu0 %v2511
        %2528 = vmatpush.xpose.msra.mxu0 %v2508
        %2529 = vmatmul.f32.gmra.mxu0 %v2505
        %v2530 = vpop.f32.mrf.mxu0
        %v2531 = vadd.f32 0.0, %v2530
        %2532 = vdwg.mxu0
        %vm2533 = vcmask 80896
        %v2534 = vsel %vm2533, %v2531, -inf
        %2535 = vmax.xlane.f32.xlu0 %v2534
        %v2536 = vpop.xlane.xlu0 %2535
        %v2537 = vsub.f32 %v2531, %v2536
        %v2538 = vmul.f32 %v2537, 1.442695
        %v2539 = vpow.pop %v2538
        %v2540 = vsel %vm2533, %v2539, 0.0
        %2541 = vadd.xlane.f32.xlu0 %v2540
        %v2542 = vpop.xlane.xlu0 %2541
        %v2543 = vrcp.pop %v2542
        %v2544 = vmul.f32 %v2542, %v2543
        %v2545 = vsub.f32 1.0, %v2544
        %v2546 = vmul.f32 %v2543, %v2545
        %v2547 = vadd.f32 %v2543, %v2546
        %vm2548 = vweird.f32 %v2542
        %vm2549 = vweird.f32 %v2543
        %vm2550 = vmor %vm2548, %vm2549
        %v2551 = vsel %vm2550, %v2543, %v2547
        %v2552 = vand.u32 2147483647, %v2542
        %vm2553 = vcmp.eq.f32.partialorder %v2552, 8.507059e+37
        %v2554 = vand.u32 %v2542, 2147483648
        %v2555 = vor.u32 1.1754944e-38, %v2554
        %v2556 = vsel %vm2553, %v2555, %v2551
        %v2557 = vmul.f32 1.0, %v2556
        %v2559 = vsel %vm2533, %v2539, 0
        %vm2561 = vcmask 1041408
        %v2563 = vsel %vm2561, %v2502, 0
        %2565 = vmatpush.msra.mxu0 0.0
        %2566 = vmatpush.msra.mxu0 0.0
        %2567 = vmatpush.msra.mxu0 0.0
        %2568 = vmatpush.msra.mxu0 0.0
        %2569 = vmatpush.msra.mxu0 0.0
        %2570 = vmatpush.msra.mxu0 0.0
        %2571 = vmatpush.msra.mxu0 0.0
        %2572 = vmatpush.msra.mxu0 0.0
        %2573 = vmatpush.msra.mxu0 0.0
        %2574 = vmatpush.msra.mxu0 0.0
        %2575 = vmatpush.msra.mxu0 0.0
        %2576 = vmatpush.msra.mxu0 0.0
        %2577 = vmatpush.msra.mxu0 0.0
        %2578 = vmatpush.msra.mxu0 0.0
        %2579 = vmatpush.msra.mxu0 %v2563
        %2580 = vmatpush.msra.mxu0 %v2499
        %2581 = vmatmul.f32.gmra.mxu0 %v2559
        %v2582 = vpop.f32.mrf.mxu0
        %v2583 = vadd.f32 0.0, %v2582
        %2584 = vdwg.mxu0
        %v2585 = vmul.f32 %v2583, %v2557
        %2586 = vrot.lane.b32.xlu0 %v2434, 120
        %v2587 = vpop.permute.xlu0 %2586
        %2588 = vrot.lane.b32.xlu0 %v2468, 120
        %v2589 = vpop.permute.xlu0 %2588
        %2590 = vrot.lane.b32.xlu0 %v2471, 120
        %v2591 = vpop.permute.xlu0 %2590
        %v2592 = vsel %vm1836, %v2587, 0
        %v2594 = vsel %vm1836, %v2589, 0
        %v2596 = vsel %vm1836, %v2591, 0
        %2598 = vmatpush.xpose.msra.mxu0 0.0
        %2599 = vmatpush.xpose.msra.mxu0 0.0
        %2600 = vmatpush.xpose.msra.mxu0 0.0
        %2601 = vmatpush.xpose.msra.mxu0 0.0
        %2602 = vmatpush.xpose.msra.mxu0 0.0
        %2603 = vmatpush.xpose.msra.mxu0 0.0
        %2604 = vmatpush.xpose.msra.mxu0 0.0
        %2605 = vmatpush.xpose.msra.mxu0 0.0
        %2606 = vmatpush.xpose.msra.mxu0 0.0
        %2607 = vmatpush.xpose.msra.mxu0 0.0
        %2608 = vmatpush.xpose.msra.mxu0 0.0
        %2609 = vmatpush.xpose.msra.mxu0 0.0
        %2610 = vmatpush.xpose.msra.mxu0 0.0
        %2611 = vmatpush.xpose.msra.mxu0 0.0
        %2612 = vmatpush.xpose.msra.mxu0 %v2596
        %2613 = vmatpush.xpose.msra.mxu0 %v2594
        %2614 = vmatmul.f32.gmra.mxu0 %v2592
        %v2615 = vpop.f32.mrf.mxu0
        %v2616 = vadd.f32 0.0, %v2615
        %2617 = vdwg.mxu0
        %v2618 = vsel %vm2533, %v2616, -inf
        %2619 = vmax.xlane.f32.xlu0 %v2618
        %v2620 = vpop.xlane.xlu0 %2619
        %v2621 = vsub.f32 %v2616, %v2620
        %v2622 = vmul.f32 %v2621, 1.442695
        %v2623 = vpow.pop %v2622
        %v2624 = vsel %vm2533, %v2623, 0.0
        %2625 = vadd.xlane.f32.xlu0 %v2624
        %v2626 = vpop.xlane.xlu0 %2625
        %v2627 = vrcp.pop %v2626
        %v2628 = vmul.f32 %v2626, %v2627
        %v2629 = vsub.f32 1.0, %v2628
        %v2630 = vmul.f32 %v2627, %v2629
        %v2631 = vadd.f32 %v2627, %v2630
        %vm2632 = vweird.f32 %v2626
        %vm2633 = vweird.f32 %v2627
        %vm2634 = vmor %vm2632, %vm2633
        %v2635 = vsel %vm2634, %v2627, %v2631
        %v2636 = vand.u32 2147483647, %v2626
        %vm2637 = vcmp.eq.f32.partialorder %v2636, 8.507059e+37
        %v2638 = vand.u32 %v2626, 2147483648
        %v2639 = vor.u32 1.1754944e-38, %v2638
        %v2640 = vsel %vm2637, %v2639, %v2635
        %v2641 = vmul.f32 1.0, %v2640
        %2643 = vrot.lane.b32.xlu0 %v2499, 120
        %v2644 = vpop.permute.xlu0 %2643
        %2645 = vrot.lane.b32.xlu0 %v2502, 120
        %v2646 = vpop.permute.xlu0 %2645
        %v2649 = vsel %vm2533, %v2623, 0
        %v2651 = vsel %vm2561, %v2646, 0
        %2653 = vmatpush.msra.mxu0 0.0
        %2654 = vmatpush.msra.mxu0 0.0
        %2655 = vmatpush.msra.mxu0 0.0
        %2656 = vmatpush.msra.mxu0 0.0
        %2657 = vmatpush.msra.mxu0 0.0
        %2658 = vmatpush.msra.mxu0 0.0
        %2659 = vmatpush.msra.mxu0 0.0
        %2660 = vmatpush.msra.mxu0 0.0
        %2661 = vmatpush.msra.mxu0 0.0
        %2662 = vmatpush.msra.mxu0 0.0
        %2663 = vmatpush.msra.mxu0 0.0
        %2664 = vmatpush.msra.mxu0 0.0
        %2665 = vmatpush.msra.mxu0 0.0
        %2666 = vmatpush.msra.mxu0 0.0
        %2667 = vmatpush.msra.mxu0 %v2651
        %2668 = vmatpush.msra.mxu0 %v2644
        %2669 = vmatmul.f32.gmra.mxu0 %v2649
        %v2670 = vpop.f32.mrf.mxu0
        %v2671 = vadd.f32 0.0, %v2670
        %2672 = vdwg.mxu0
        %v2673 = vmul.f32 %v2671, %v2641
        %2674 = vrot.lane.b32.xlu0 %v2434, 112
        %v2675 = vpop.permute.xlu0 %2674
        %2676 = vrot.lane.b32.xlu0 %v2468, 112
        %v2677 = vpop.permute.xlu0 %2676
        %2678 = vrot.lane.b32.xlu0 %v2471, 112
        %v2679 = vpop.permute.xlu0 %2678
        %v2680 = vsel %vm1836, %v2675, 0
        %v2682 = vsel %vm1836, %v2677, 0
        %v2684 = vsel %vm1836, %v2679, 0
        %2686 = vmatpush.xpose.msra.mxu0 0.0
        %2687 = vmatpush.xpose.msra.mxu0 0.0
        %2688 = vmatpush.xpose.msra.mxu0 0.0
        %2689 = vmatpush.xpose.msra.mxu0 0.0
        %2690 = vmatpush.xpose.msra.mxu0 0.0
        %2691 = vmatpush.xpose.msra.mxu0 0.0
        %2692 = vmatpush.xpose.msra.mxu0 0.0
        %2693 = vmatpush.xpose.msra.mxu0 0.0
        %2694 = vmatpush.xpose.msra.mxu0 0.0
        %2695 = vmatpush.xpose.msra.mxu0 0.0
        %2696 = vmatpush.xpose.msra.mxu0 0.0
        %2697 = vmatpush.xpose.msra.mxu0 0.0
        %2698 = vmatpush.xpose.msra.mxu0 0.0
        %2699 = vmatpush.xpose.msra.mxu0 0.0
        %2700 = vmatpush.xpose.msra.mxu0 %v2684
        %2701 = vmatpush.xpose.msra.mxu0 %v2682
        %2702 = vmatmul.f32.gmra.mxu0 %v2680
        %v2703 = vpop.f32.mrf.mxu0
        %v2704 = vadd.f32 0.0, %v2703
        %2705 = vdwg.mxu0
        %v2706 = vsel %vm2533, %v2704, -inf
        %2707 = vmax.xlane.f32.xlu0 %v2706
        %v2708 = vpop.xlane.xlu0 %2707
        %v2709 = vsub.f32 %v2704, %v2708
        %v2710 = vmul.f32 %v2709, 1.442695
        %v2711 = vpow.pop %v2710
        %v2712 = vsel %vm2533, %v2711, 0.0
        %2713 = vadd.xlane.f32.xlu0 %v2712
        %v2714 = vpop.xlane.xlu0 %2713
        %v2715 = vrcp.pop %v2714
        %v2716 = vmul.f32 %v2714, %v2715
        %v2717 = vsub.f32 1.0, %v2716
        %v2718 = vmul.f32 %v2715, %v2717
        %v2719 = vadd.f32 %v2715, %v2718
        %vm2720 = vweird.f32 %v2714
        %vm2721 = vweird.f32 %v2715
        %vm2722 = vmor %vm2720, %vm2721
        %v2723 = vsel %vm2722, %v2715, %v2719
        %v2724 = vand.u32 2147483647, %v2714
        %vm2725 = vcmp.eq.f32.partialorder %v2724, 8.507059e+37
        %v2726 = vand.u32 %v2714, 2147483648
        %v2727 = vor.u32 1.1754944e-38, %v2726
        %v2728 = vsel %vm2725, %v2727, %v2723
        %v2729 = vmul.f32 1.0, %v2728
        %2730 = vrot.lane.b32.xlu0 %v2499, 112
        %v2731 = vpop.permute.xlu0 %2730
        %2732 = vrot.lane.b32.xlu0 %v2502, 112
        %v2733 = vpop.permute.xlu0 %2732
        %v2736 = vsel %vm2533, %v2711, 0
        %v2738 = vsel %vm2561, %v2733, 0
        %2740 = vmatpush.msra.mxu0 0.0
        %2741 = vmatpush.msra.mxu0 0.0
        %2742 = vmatpush.msra.mxu0 0.0
        %2743 = vmatpush.msra.mxu0 0.0
        %2744 = vmatpush.msra.mxu0 0.0
        %2745 = vmatpush.msra.mxu0 0.0
        %2746 = vmatpush.msra.mxu0 0.0
        %2747 = vmatpush.msra.mxu0 0.0
        %2748 = vmatpush.msra.mxu0 0.0
        %2749 = vmatpush.msra.mxu0 0.0
        %2750 = vmatpush.msra.mxu0 0.0
        %2751 = vmatpush.msra.mxu0 0.0
        %2752 = vmatpush.msra.mxu0 0.0
        %2753 = vmatpush.msra.mxu0 0.0
        %2754 = vmatpush.msra.mxu0 %v2738
        %2755 = vmatpush.msra.mxu0 %v2731
        %2756 = vmatmul.f32.gmra.mxu0 %v2736
        %v2757 = vpop.f32.mrf.mxu0
        %v2758 = vadd.f32 0.0, %v2757
        %2759 = vdwg.mxu0
        %v2760 = vmul.f32 %v2758, %v2729
        %2761 = vrot.lane.b32.xlu0 %v2434, 104
        %v2762 = vpop.permute.xlu0 %2761
        %2763 = vrot.lane.b32.xlu0 %v2468, 104
        %v2764 = vpop.permute.xlu0 %2763
        %2765 = vrot.lane.b32.xlu0 %v2471, 104
        %v2766 = vpop.permute.xlu0 %2765
        %v2767 = vsel %vm1836, %v2762, 0
        %v2769 = vsel %vm1836, %v2764, 0
        %v2771 = vsel %vm1836, %v2766, 0
        %2773 = vmatpush.xpose.msra.mxu0 0.0
        %2774 = vmatpush.xpose.msra.mxu0 0.0
        %2775 = vmatpush.xpose.msra.mxu0 0.0
        %2776 = vmatpush.xpose.msra.mxu0 0.0
        %2777 = vmatpush.xpose.msra.mxu0 0.0
        %2778 = vmatpush.xpose.msra.mxu0 0.0
        %2779 = vmatpush.xpose.msra.mxu0 0.0
        %2780 = vmatpush.xpose.msra.mxu0 0.0
        %2781 = vmatpush.xpose.msra.mxu0 0.0
        %2782 = vmatpush.xpose.msra.mxu0 0.0
        %2783 = vmatpush.xpose.msra.mxu0 0.0
        %2784 = vmatpush.xpose.msra.mxu0 0.0
        %2785 = vmatpush.xpose.msra.mxu0 0.0
        %2786 = vmatpush.xpose.msra.mxu0 0.0
        %2787 = vmatpush.xpose.msra.mxu0 %v2771
        %2788 = vmatpush.xpose.msra.mxu0 %v2769
        %2789 = vmatmul.f32.gmra.mxu0 %v2767
        %v2790 = vpop.f32.mrf.mxu0
        %v2791 = vadd.f32 0.0, %v2790
        %2792 = vdwg.mxu0
        %v2793 = vsel %vm2533, %v2791, -inf
        %2794 = vmax.xlane.f32.xlu0 %v2793
        %v2795 = vpop.xlane.xlu0 %2794
        %v2796 = vsub.f32 %v2791, %v2795
        %v2797 = vmul.f32 %v2796, 1.442695
        %v2798 = vpow.pop %v2797
        %v2799 = vsel %vm2533, %v2798, 0.0
        %2800 = vadd.xlane.f32.xlu0 %v2799
        %v2801 = vpop.xlane.xlu0 %2800
        %v2802 = vrcp.pop %v2801
        %v2803 = vmul.f32 %v2801, %v2802
        %v2804 = vsub.f32 1.0, %v2803
        %v2805 = vmul.f32 %v2802, %v2804
        %v2806 = vadd.f32 %v2802, %v2805
        %vm2807 = vweird.f32 %v2801
        %vm2808 = vweird.f32 %v2802
        %vm2809 = vmor %vm2807, %vm2808
        %v2810 = vsel %vm2809, %v2802, %v2806
        %v2811 = vand.u32 2147483647, %v2801
        %vm2812 = vcmp.eq.f32.partialorder %v2811, 8.507059e+37
        %v2813 = vand.u32 %v2801, 2147483648
        %v2814 = vor.u32 1.1754944e-38, %v2813
        %v2815 = vsel %vm2812, %v2814, %v2810
        %v2816 = vmul.f32 1.0, %v2815
        %2817 = vrot.lane.b32.xlu0 %v2499, 104
        %v2818 = vpop.permute.xlu0 %2817
        %2819 = vrot.lane.b32.xlu0 %v2502, 104
        %v2820 = vpop.permute.xlu0 %2819
        %v2823 = vsel %vm2533, %v2798, 0
        %v2825 = vsel %vm2561, %v2820, 0
        %2827 = vmatpush.msra.mxu0 0.0
        %2828 = vmatpush.msra.mxu0 0.0
        %2829 = vmatpush.msra.mxu0 0.0
        %2830 = vmatpush.msra.mxu0 0.0
        %2831 = vmatpush.msra.mxu0 0.0
        %2832 = vmatpush.msra.mxu0 0.0
        %2833 = vmatpush.msra.mxu0 0.0
        %2834 = vmatpush.msra.mxu0 0.0
        %2835 = vmatpush.msra.mxu0 0.0
        %2836 = vmatpush.msra.mxu0 0.0
        %2837 = vmatpush.msra.mxu0 0.0
        %2838 = vmatpush.msra.mxu0 0.0
        %2839 = vmatpush.msra.mxu0 0.0
        %2840 = vmatpush.msra.mxu0 0.0
        %2841 = vmatpush.msra.mxu0 %v2825
        %2842 = vmatpush.msra.mxu0 %v2818
        %2843 = vmatmul.f32.gmra.mxu0 %v2823
        %v2844 = vpop.f32.mrf.mxu0
        %v2845 = vadd.f32 0.0, %v2844
        %2846 = vdwg.mxu0
        %v2847 = vmul.f32 %v2845, %v2816
        %2849 = vrot.lane.b32.xlu0 %v2673, 8
        %v2850 = vpop.permute.xlu0 %2849
        %2853 = vrot.lane.b32.xlu0 %v2760, 16
        %v2854 = vpop.permute.xlu0 %2853
        %2857 = vrot.lane.b32.xlu0 %v2847, 24
        %v2858 = vpop.permute.xlu0 %2857
        %v2860 = vsel %vm1836, %v2585, %v2850
        %v2861 = vsel %vm2330, %v2860, %v2854
        %v2862 = vsel %vm2332, %v2861, %v2858
        %v2863 = vld [vmem:[%s1373] sm:$0xff]
        %v2864 = vld [vmem:[%s1373 + $0x8] sm:$0xff]
        %v2865 = vld [vmem:[%s1373 + $0x10] sm:$0xff]
        %v2866 = vld [vmem:[%s1373 + $0x18] sm:$0xff]
        %v2867 = vld [vmem:[%s1680] sm:$0x1]
        %v2869 = vperm.slane %v2867, 0
        %v2872 = vsel %vm1709, %v2862, 0
        %2874 = vmatpush.msra.mxu0 0.0
        %2875 = vmatpush.msra.mxu0 0.0
        %2876 = vmatpush.msra.mxu0 0.0
        %2877 = vmatpush.msra.mxu0 0.0
        %2878 = vmatpush.msra.mxu0 0.0
        %2879 = vmatpush.msra.mxu0 0.0
        %2880 = vmatpush.msra.mxu0 0.0
        %2881 = vmatpush.msra.mxu0 0.0
        %2882 = vmatpush.msra.mxu0 0.0
        %2883 = vmatpush.msra.mxu0 0.0
        %2884 = vmatpush.msra.mxu0 0.0
        %2885 = vmatpush.msra.mxu0 0.0
        %2886 = vmatpush.msra.mxu0 %v2866
        %2887 = vmatpush.msra.mxu0 %v2865
        %2888 = vmatpush.msra.mxu0 %v2864
        %2889 = vmatpush.msra.mxu0 %v2863
        %2890 = vmatmul.f32.gmra.mxu0 %v2872
        %v2891 = vpop.f32.mrf.mxu0
        %v2892 = vadd.f32 %v2869, %v2891
        %2893 = vdwg.mxu0
        %v2894 = vadd.f32 %v2404, %v2892
        %v2895 = vld [vmem:[%s1382] sm:$0x1]
        %v2896 = vld [vmem:[%s1391] sm:$0x1]
        %v2897 = vsel %vm1709, %v2894, 0.0
        %2898 = vadd.xlane.f32.xlu0 %v2897
        %v2899 = vpop.xlane.xlu0 %2898
        %v2900 = vmul.f32 %v2899, %v2377
        %v2901 = vsub.f32 %v2894, %v2900
        %v2902 = vmul.f32 %v2901, %v2901
        %v2903 = vsel %vm1709, %v2902, 0.0
        %2904 = vadd.xlane.f32.xlu0 %v2903
        %v2905 = vpop.xlane.xlu0 %2904
        %v2906 = vmul.f32 %v2905, %v2377
        %v2907 = vadd.f32 %v2906, 1e-05
        %v2908 = vrsqrt.pop %v2907
        %v2909 = vmul.f32 %v2908, %v2907
        %v2910 = vmul.f32 %v2909, %v2908
        %v2911 = vmul.f32 0.5, %v2910
        %v2912 = vsub.f32 1.5, %v2911
        %v2913 = vmul.f32 %v2908, %v2912
        %vm2914 = vweird.f32 %v2907
        %vm2915 = vweird.f32 %v2908
        %vm2916 = vmor %vm2914, %vm2915
        %v2917 = vsel %vm2916, %v2908, %v2913
        %v2918 = vmul.f32 %v2901, %v2917
        %v2920 = vperm.slane %v2895, 0
        %v2922 = vmul.f32 %v2918, %v2920
        %v2924 = vperm.slane %v2896, 0
        %v2926 = vadd.f32 %v2922, %v2924
        %v2927 = vld [vmem:[%s1401] sm:$0xff]
        %v2928 = vld [vmem:[%s1401 + $0x8] sm:$0xff]
        %v2929 = vld [vmem:[%s1401 + $0x10] sm:$0xff]
        %v2930 = vld [vmem:[%s1401 + $0x18] sm:$0xff]
        %v2931 = vld [vmem:[%s1410] sm:$0x1]
        %v2933 = vperm.slane %v2931, 0
        %v2936 = vsel %vm1709, %v2926, 0
        %2938 = vmatpush.msra.mxu0 0.0
        %2939 = vmatpush.msra.mxu0 0.0
        %2940 = vmatpush.msra.mxu0 0.0
        %2941 = vmatpush.msra.mxu0 0.0
        %2942 = vmatpush.msra.mxu0 0.0
        %2943 = vmatpush.msra.mxu0 0.0
        %2944 = vmatpush.msra.mxu0 0.0
        %2945 = vmatpush.msra.mxu0 0.0
        %2946 = vmatpush.msra.mxu0 0.0
        %2947 = vmatpush.msra.mxu0 0.0
        %2948 = vmatpush.msra.mxu0 0.0
        %2949 = vmatpush.msra.mxu0 0.0
        %2950 = vmatpush.msra.mxu0 %v2930
        %2951 = vmatpush.msra.mxu0 %v2929
        %2952 = vmatpush.msra.mxu0 %v2928
        %2953 = vmatpush.msra.mxu0 %v2927
        %2954 = vmatmul.f32.gmra.mxu0 %v2936
        %v2955 = vpop.f32.mrf.mxu0
        %v2956 = vadd.f32 %v2933, %v2955
        %2957 = vdwg.mxu0
        %v2958 = vmax.f32 %v2956, 0.0
        %v2959 = vld [vmem:[%s1685] sm:$0xff]
        %v2960 = vld [vmem:[%s1685 + $0x8] sm:$0xff]
        %v2961 = vld [vmem:[%s1685 + $0x10] sm:$0xff]
        %v2962 = vld [vmem:[%s1685 + $0x18] sm:$0xff]
        %v2963 = vld [vmem:[%s1685 + $0x20] sm:$0xff]
        %v2964 = vld [vmem:[%s1685 + $0x28] sm:$0xff]
        %v2965 = vld [vmem:[%s1685 + $0x30] sm:$0xff]
        %v2966 = vld [vmem:[%s1685 + $0x38] sm:$0xff]
        %vm2967 = vcmask 523264
        %v2969 = vsel %vm2967, %v2958, 0
        %2971 = vmatpush.msra.mxu0 0.0
        %2972 = vmatpush.msra.mxu0 0.0
        %2973 = vmatpush.msra.mxu0 0.0
        %2974 = vmatpush.msra.mxu0 0.0
        %2975 = vmatpush.msra.mxu0 0.0
        %2976 = vmatpush.msra.mxu0 0.0
        %2977 = vmatpush.msra.mxu0 0.0
        %2978 = vmatpush.msra.mxu0 0.0
        %2979 = vmatpush.msra.mxu0 %v2966
        %2980 = vmatpush.msra.mxu0 %v2965
        %2981 = vmatpush.msra.mxu0 %v2964
        %2982 = vmatpush.msra.mxu0 %v2963
        %2983 = vmatpush.msra.mxu0 %v2962
        %2984 = vmatpush.msra.mxu0 %v2961
        %2985 = vmatpush.msra.mxu0 %v2960
        %2986 = vmatpush.msra.mxu0 %v2959
        %2987 = vmatmul.f32.gmra.mxu0 %v2969
        %v2988 = vpop.f32.mrf.mxu0
        %v2989 = vadd.f32 0.0, %v2988
        %2990 = vdwg.mxu0
        %v2991 = vadd.f32 %v2926, %v2989
        %v2992 = vld [vmem:[%s1419] sm:$0x1]
        %v2994 = vperm.slane %v2992, 0
        %v2996 = vadd.f32 %v2991, %v2994
        %v2997 = vld [vmem:[%s1688] sm:$0x1]
        %v2998 = vld [vmem:[%s1428] sm:$0x1]
        %v2999 = vsel %vm1709, %v2996, 0.0
        %3000 = vadd.xlane.f32.xlu0 %v2999
        %v3001 = vpop.xlane.xlu0 %3000
        %v3002 = vmul.f32 %v3001, %v2377
        %v3003 = vsub.f32 %v2996, %v3002
        %v3004 = vmul.f32 %v3003, %v3003
        %v3005 = vsel %vm1709, %v3004, 0.0
        %3006 = vadd.xlane.f32.xlu0 %v3005
        %v3007 = vpop.xlane.xlu0 %3006
        %v3008 = vmul.f32 %v3007, %v2377
        %v3009 = vadd.f32 %v3008, 1e-05
        %v3010 = vrsqrt.pop %v3009
        %v3011 = vmul.f32 %v3010, %v3009
        %v3012 = vmul.f32 %v3011, %v3010
        %v3013 = vmul.f32 0.5, %v3012
        %v3014 = vsub.f32 1.5, %v3013
        %v3015 = vmul.f32 %v3010, %v3014
        %vm3016 = vweird.f32 %v3009
        %vm3017 = vweird.f32 %v3010
        %vm3018 = vmor %vm3016, %vm3017
        %v3019 = vsel %vm3018, %v3010, %v3015
        %v3020 = vmul.f32 %v3003, %v3019
        %v3022 = vperm.slane %v2997, 0
        %v3024 = vmul.f32 %v3020, %v3022
        %v3026 = vperm.slane %v2998, 0
        %v3028 = vadd.f32 %v3024, %v3026
        %3029 = vst.msk [vmem:[#allocation2] sm:$0xff] %vm1709, %v3028
        %p3030 = scmp.eq.s32.totalorder %s103, 1
        // Predicated region
        $region205: #{tpu_custom_call.1} parent=147 // pred_check
          %p3031 = pneg %p3030
        $region206: #{tpu_custom_call.1} parent=147 // pred_check_branch
          %3033 = sbr.rel (%p3031) target = $region208
        $region207: #{tpu_custom_call.1} parent=147 // pred_region
          %v3034 = vld [vmem:[#allocation21] sm:$0x1]
          %v3035 = vld [vmem:[#allocation23] sm:$0x1]
          %v3036 = vsel %vm1709, %v3028, 0.0
          %3037 = vadd.xlane.f32.xlu0 %v3036
          %v3038 = vpop.xlane.xlu0 %3037
          %v3039 = vmul.f32 %v3038, %v2377
          %v3040 = vsub.f32 %v3028, %v3039
          %v3041 = vmul.f32 %v3040, %v3040
          %v3042 = vsel %vm1709, %v3041, 0.0
          %3043 = vadd.xlane.f32.xlu0 %v3042
          %v3044 = vpop.xlane.xlu0 %3043
          %v3045 = vmul.f32 %v3044, %v2377
          %v3046 = vadd.f32 %v3045, 1e-05
          %v3047 = vrsqrt.pop %v3046
          %v3048 = vmul.f32 %v3047, %v3046
          %v3049 = vmul.f32 %v3048, %v3047
          %v3050 = vmul.f32 0.5, %v3049
          %v3051 = vsub.f32 1.5, %v3050
          %v3052 = vmul.f32 %v3047, %v3051
          %vm3053 = vweird.f32 %v3046
          %vm3054 = vweird.f32 %v3047
          %vm3055 = vmor %vm3053, %vm3054
          %v3056 = vsel %vm3055, %v3047, %v3052
          %v3057 = vmul.f32 %v3040, %v3056
          %v3059 = vperm.slane %v3034, 0
          %v3061 = vmul.f32 %v3057, %v3059
          %v3063 = vperm.slane %v3035, 0
          %v3065 = vadd.f32 %v3061, %v3063
          %3066 = vst.msk [vmem:[%s1626] sm:$0xff] %vm1709, %v3065
        $region208: #{tpu_custom_call.1} parent=147 // pred_fallthru
          _
        %s3067 = sand.u32 %s930, 1
        %s3068 = scalar_lea.sflag [#allocation5], %s3067
        %s3069 = sand.u32 %s930, 1
        %s3070 = smul.addr %s3069, 8
        %s3071 = scalar_lea.vmem [#allocation24], %s3070
        // Predicated region
        $region209: #{tpu_custom_call.1} parent=147 // pred_check
          %p3072 = pneg %p940
        $region210: #{tpu_custom_call.1} parent=147 // pred_check_branch
          %3074 = sbr.rel (%p3072) target = $region212
        $region211: #{tpu_custom_call.1} parent=147 // pred_region
          %3076 = vsyncadd %s3068, 0
          %s3077 = smul.addr %s102, 8
          %s3078 = scalar_lea.hbm %s65, %s3077
          %s3080 = sshll.u32 %s3071, 4
          %s3081 = int_to_ptr.vmem [resolvable:$true] %s3080
          %s3082 = sshll.u32 %s3078, 4
          %s3083 = int_to_ptr.hbm [resolvable:$true] %s3082
          %3085 = dma.vmem_to_hbm [thread:$0]  %s3081, 128, %s3083, %s3068
        $region212: #{tpu_custom_call.1} parent=147 // pred_fallthru
          _
      $region148: #{tpu_custom_call.1} parent=5 // pred_fallthru
        _
      %p3086 = scmp.le.s32.totalorder 2, %s93
      // Predicated region
      $region213: #{tpu_custom_call.1} parent=5 // pred_check
        %p3087 = pneg %p3086
      $region214: #{tpu_custom_call.1} parent=5 // pred_check_branch
        %3089 = sbr.rel (%p3087) target = $region216
      $region215: #{tpu_custom_call.1} parent=5 // pred_region
        %s3090 = ssub.s32 %s93, 2
        // Predicated region
        $region217: #{tpu_custom_call.1} parent=215 // pred_check
          %p3091 = pneg %p946
        $region218: #{tpu_custom_call.1} parent=215 // pred_check_branch
          %3093 = sbr.rel (%p3091) target = $region220
        $region219: #{tpu_custom_call.1} parent=215 // pred_region
          %s3094 = sand.u32 %s931, 1
          %s3095 = scalar_lea.sflag [#allocation5], %s3094
          %s3096 = sand.u32 %s931, 1
          %s3097 = smul.addr %s3096, 8
          %s3098 = scalar_lea.vmem [#allocation24], %s3097
          %3100 = dma.done %s3095, 128
        $region220: #{tpu_custom_call.1} parent=215 // pred_fallthru
          _
      $region216: #{tpu_custom_call.1} parent=5 // pred_fallthru
        _
    $region6: #{tpu_custom_call.1} parent=1 // loop_footer
      %s97 = sadd.s32 1, %s93
    $region7: #{tpu_custom_call.1} parent=1 // loop_footer_branch
      %92 = sbr.rel target = $region3
    $region8: #{tpu_custom_call.1} parent=1 // loop_exit
      _
    %3101 = vsyncpa [#allocation4], 1
    %s3102 = scalar_lea.sflag [#allocation4], 1
    %3103 = vsyncpa %s3102, 1
    %3104 = vsyncpa [#allocation7], 1
    %s3105 = scalar_lea.sflag [#allocation7], 1
    %3106 = vsyncpa %s3105, 1
    %3107 = vsyncpa [#allocation10], 1
    %s3108 = scalar_lea.sflag [#allocation10], 1
    %3109 = vsyncpa %s3108, 1
    %3110 = vsyncpa [#allocation13], 1
    %s3111 = scalar_lea.sflag [#allocation13], 1
    %3112 = vsyncpa %s3111, 1
    %3113 = vsyncpa [#allocation16], 1
    %s3114 = scalar_lea.sflag [#allocation16], 1
    %3115 = vsyncpa %s3114, 1
    %3116 = vsyncpa [#allocation19], 1
    %s3117 = scalar_lea.sflag [#allocation19], 1
    %3118 = vsyncpa %s3117, 1
    %3119 = vsyncpa [#allocation22], 1
    %3120 = vsyncpa [#allocation5], 1
    %s3121 = scalar_lea.sflag [#allocation5], 1
    %3122 = vsyncpa %s3121, 1

</llo_original>
